<compile_context>
chip_gen: v6e
topology: v6e:2x2x1
jax: 0.10.0
libtpu: 0.0.40
codegen_flags: <defaults>
</compile_context>

<pallas_src>
import functools
import math

import jax
import jax.numpy as jnp
from jax.experimental import pallas as pl
from jax.experimental.pallas import tpu as pltpu

EPS = 1e-6
NEG_INF = -1e9
# Contract the last dim of both operands: q @ k^T without an explicit transpose.
NT_DIM_NUMBERS = (((1,), (1,)), ((), ()))


def _layer_norm(z, a2, b2, feat):
    """Custom LayerNorm: unbiased std, eps added to std (not variance). f32 math."""
    mean = jnp.mean(z, axis=-1, keepdims=True)
    d = z - mean
    var = jnp.sum(d * d, axis=-1, keepdims=True) / (feat - 1)
    inv_std = pl.reciprocal(jnp.sqrt(var) + EPS, approx=True)   # EUP, not VALU divide
    return a2 * d * inv_std + b2


def _encoder_layer_kernel(x_ref, mask_ref,
                          ln1a_ref, ln1b_ref,
                          wqkv_ref, bqkv_ref,
                          wo_ref, bo_ref,
                          ln2a_ref, ln2b_ref,
                          w1_ref, b1_ref, w2_ref, b2_ref,
                          out_ref, *, num_heads):
    Bt, S, D = x_ref.shape
    dk = D // num_heads
    inv_sqrt_dk = 1.0 / math.sqrt(dk)

    x = x_ref[...].astype(jnp.float32).reshape(Bt * S, D)        # (Bt*S, D)

    # ---------------- sublayer 0: multi-head self-attention -------------------
    xn = _layer_norm(x, ln1a_ref[...], ln1b_ref[...], D)         # f32 (Bt*S, D)

    # Fused Q|K|V projection: one (Bt*S,128)@(128,384) bf16 MXU matmul, f32 accum.
    qkv = jnp.dot(xn.astype(jnp.bfloat16), wqkv_ref[...],
                  preferred_element_type=jnp.float32) + bqkv_ref[...]
    q = qkv[:, :D]
    k = qkv[:, D:2 * D]
    v = qkv[:, 2 * D:]

    wo = wo_ref[...]                                             # bf16 (D, D), VMEM-resident

    attn_rows = []
    for b in range(Bt):
        lo_r = b * S
        qb = q[lo_r:lo_r + S]                                    # (S, D)
        kb = k[lo_r:lo_r + S]
        vb = v[lo_r:lo_r + S]
        # Hoisted once per row (not per head): key-padding mask predicate.
        neg_b = mask_ref[b].astype(jnp.float32) == 0.0           # (1, S), broadcasts over queries

        attn_b = jnp.zeros((S, D), jnp.float32)
        for h in range(num_heads):
            lo = h * dk
            qh = qb[:, lo:lo + dk].astype(jnp.bfloat16)          # (S, dk)
            kh = kb[:, lo:lo + dk].astype(jnp.bfloat16)
            vh = vb[:, lo:lo + dk].astype(jnp.bfloat16)

            s = jax.lax.dot_general(qh, kh, NT_DIM_NUMBERS,
                                    preferred_element_type=jnp.float32) * inv_sqrt_dk
            s = jnp.where(neg_b, NEG_INF, s)                     # masked_fill(mask==0, -1e9)
            s = s - jnp.max(s, axis=-1, keepdims=True)
            e = jnp.exp(s)
            inv_l = pl.reciprocal(jnp.sum(e, axis=-1, keepdims=True), approx=True)
            p = (e * inv_l).astype(jnp.bfloat16)                 # softmax probs

            ctx_h = jnp.dot(p, vh, preferred_element_type=jnp.float32)          # (S, dk)
            # Fold the output projection into the head loop (sublane slice of WoT):
            # avoids the lane-axis head concat entirely.
            attn_b = attn_b + jnp.dot(ctx_h.astype(jnp.bfloat16), wo[lo:lo + dk, :],
                                      preferred_element_type=jnp.float32)
        attn_rows.append(attn_b)

    attn = jnp.concatenate(attn_rows, axis=0) + bo_ref[...]      # (Bt*S, D)
    x1 = x + attn                                                # residual (+ dropout == identity)

    # ---------------- sublayer 1: position-wise feed-forward ------------------
    x1n = _layer_norm(x1, ln2a_ref[...], ln2b_ref[...], D)
    hmid = jnp.dot(x1n.astype(jnp.bfloat16), w1_ref[...],
                   preferred_element_type=jnp.float32) + b1_ref[...]
    hmid = jnp.maximum(hmid, 0.0)
    ff = jnp.dot(hmid.astype(jnp.bfloat16), w2_ref[...],
                 preferred_element_type=jnp.float32) + b2_ref[...]

    out_ref[...] = (x1 + ff).reshape(Bt, S, D).astype(out_ref.dtype)


def _pick_rows_per_step(B, S):
    """Bt*S ~ 128 rows fed to the MXU, but keep grid >= 2 steps (v7x has 2 TensorCores)."""
    bt = min(B, max(1, 128 // max(S, 1)))
    if B >= 2:
        bt = min(bt, B // 2)
    bt = max(bt, 1)
    while B % bt:
        bt -= 1
    return bt


def encoder_layer_forward(x, mask, params, *, num_heads, rows_per_step=None):
    """x: (B, S, D), mask: (B, 1, S) with 1=valid / 0=masked key. Returns (B, S, D)."""
    B, S, D = x.shape
    assert D % num_heads == 0
    dff = params["w1"].shape[0]
    Bt = rows_per_step if rows_per_step is not None else _pick_rows_per_step(B, S)
    assert B % Bt == 0

    def row_f32(v):                                              # (N,) -> (1, N) f32
        return v.reshape(1, -1).astype(jnp.float32)

    # Weight prep: bf16 MXU operands, fused QKV weight / bias.
    wqkvT = jnp.concatenate(
        [params["wq"].T, params["wk"].T, params["wv"].T], axis=1).astype(jnp.bfloat16)  # (D, 3D)
    bqkv = jnp.concatenate(
        [params["bq"], params["bk"], params["bv"]]).reshape(1, 3 * D).astype(jnp.float32)
    woT = params["wo"].T.astype(jnp.bfloat16)                    # (D, D)
    w1T = params["w1"].T.astype(jnp.bfloat16)                    # (D, dff)
    w2T = params["w2"].T.astype(jnp.bfloat16)                    # (dff, D)

    def const(shape):
        return pl.BlockSpec(shape, lambda b: (0, 0))

    kernel = functools.partial(_encoder_layer_kernel, num_heads=num_heads)

    return pl.pallas_call(
        kernel,
        out_shape=jax.ShapeDtypeStruct((B, S, D), x.dtype),
        grid_spec=pltpu.PrefetchScalarGridSpec(
            num_scalar_prefetch=0,
            grid=(B // Bt,),
            in_specs=[
                pl.BlockSpec((Bt, S, D), lambda b: (b, 0, 0)),   # x   (Bt batch rows)
                pl.BlockSpec((Bt, 1, S), lambda b: (b, 0, 0)),   # mask(Bt batch rows)
                const((1, D)), const((1, D)),                    # LN1 a_2, b_2
                const((D, 3 * D)), const((1, 3 * D)),            # fused [Wq|Wk|Wv]^T, [bq|bk|bv]
                const((D, D)), const((1, D)),                    # Wo^T, bo
                const((1, D)), const((1, D)),                    # LN2 a_2, b_2
                const((D, dff)), const((1, dff)),                # W1^T, b1
                const((dff, D)), const((1, D)),                  # W2^T, b2
            ],
            out_specs=pl.BlockSpec((Bt, S, D), lambda b: (b, 0, 0)),
        ),
        compiler_params=pltpu.CompilerParams(
            dimension_semantics=("parallel",),                   # row blocks are independent
        ),
    )(x, mask,
      row_f32(params["ln1_a"]), row_f32(params["ln1_b"]),
      wqkvT, bqkv,
      woT, row_f32(params["bo"]),
      row_f32(params["ln2_a"]), row_f32(params["ln2_b"]),
      w1T, row_f32(params["b1"]), w2T, row_f32(params["b2"]))


# ----------------------- pure-JAX reference (mirrors PyTorch, f32) -----------------------
def _reference(x, mask, params, *, num_heads):
    B, S, D = x.shape
    dk = D // num_heads

    def ln(z, a, b):
        mean = z.mean(-1, keepdims=True)
        d = z - mean
        std = jnp.sqrt((d * d).sum(-1, keepdims=True) / (D - 1))
        return a * d / (std + EPS) + b

    def split_heads(t):
        return t.reshape(B, S, num_heads, dk).transpose(0, 2, 1, 3)

    def self_attn(z):
        q = z @ params["wq"].T + params["bq"]
        k = z @ params["wk"].T + params["bk"]
        v = z @ params["wv"].T + params["bv"]
        qh, kh, vh = split_heads(q), split_heads(k), split_heads(v)
        scores = jnp.einsum("bhqd,bhkd->bhqk", qh, kh) / math.sqrt(dk)
        scores = jnp.where(mask[:, None, :, :] == 0.0, NEG_INF, scores)
        p = jax.nn.softmax(scores, axis=-1)
        ctx = jnp.einsum("bhqk,bhkd->bhqd", p, vh)
        ctx = ctx.transpose(0, 2, 1, 3).reshape(B, S, D)
        return ctx @ params["wo"].T + params["bo"]

    def feed_forward(z):
        h = jnp.maximum(z @ params["w1"].T + params["b1"], 0.0)
        return h @ params["w2"].T + params["b2"]

    x1 = x + self_attn(ln(x, params["ln1_a"], params["ln1_b"]))
    return x1 + feed_forward(ln(x1, params["ln2_a"], params["ln2_b"]))


if __name__ == "__main__":
    B, S, D, H = 8, 16, 128, 4    # batch, seq, model size, heads
    DFF = 256                     # position-wise FFN hidden size

    key = jax.random.PRNGKey(0)
    keys = jax.random.split(key, 17)

    x = jax.random.normal(keys[0], (B, S, D), dtype=jnp.float32)

    # key-padding mask (B, 1, S): later batch rows have progressively more masked keys.
    mask = jnp.ones((B, 1, S), jnp.float32)
    for b in range(B):
        n_pad = b // 2                              # 0,0,1,1,2,2,3,3 masked keys
        if n_pad:
            mask = mask.at[b, 0, S - n_pad:].set(0.0)

    def uni(k, shape, fan_in):
        lim = 1.0 / math.sqrt(fan_in)
        return jax.random.uniform(k, shape, jnp.float32, -lim, lim)

    params = dict(
        ln1_a=1.0 + 0.1 * jax.random.normal(keys[1], (D,), jnp.float32),
        ln1_b=0.1 * jax.random.normal(keys[2], (D,), jnp.float32),
        wq=uni(keys[3], (D, D), D), bq=uni(keys[4], (D,), D),
        wk=uni(keys[5], (D, D), D), bk=uni(keys[6], (D,), D),
        wv=uni(keys[7], (D, D), D), bv=uni(keys[8], (D,), D),
        wo=uni(keys[9], (D, D), D), bo=uni(keys[10], (D,), D),
        ln2_a=1.0 + 0.1 * jax.random.normal(keys[11], (D,), jnp.float32),
        ln2_b=0.1 * jax.random.normal(keys[12], (D,), jnp.float32),
        w1=uni(keys[13], (DFF, D), D), b1=uni(keys[14], (DFF,), D),
        w2=uni(keys[15], (D, DFF), DFF), b2=uni(keys[16], (D,), DFF),
    )

    out = encoder_layer_forward(x, mask, params, num_heads=H)
    out = jax.block_until_ready(out)

    ref = _reference(x, mask, params, num_heads=H)
    assert out.shape == (B, S, D)
    # bf16 MXU operands + approx reciprocals vs. a pure-f32 reference -> looser tolerance.
    assert jnp.allclose(out, ref, atol=1e-1, rtol=1e-1), "mismatch vs reference"

    print("KERNEL_OK")
</pallas_src>

<mosaic_0001>
module attributes {stable_mosaic.version = 11 : i64} {
  func.func @_encoder_layer_kernel(%arg0: i32, %arg1: memref<4x16x128xf32, #tpu.memory_space<vmem>>, %arg2: memref<4x1x16xf32, #tpu.memory_space<vmem>>, %arg3: memref<1x128xf32, #tpu.memory_space<vmem>>, %arg4: memref<1x128xf32, #tpu.memory_space<vmem>>, %arg5: memref<128x384xbf16, #tpu.memory_space<vmem>>, %arg6: memref<1x384xf32, #tpu.memory_space<vmem>>, %arg7: memref<128x128xbf16, #tpu.memory_space<vmem>>, %arg8: memref<1x128xf32, #tpu.memory_space<vmem>>, %arg9: memref<1x128xf32, #tpu.memory_space<vmem>>, %arg10: memref<1x128xf32, #tpu.memory_space<vmem>>, %arg11: memref<128x256xbf16, #tpu.memory_space<vmem>>, %arg12: memref<1x256xf32, #tpu.memory_space<vmem>>, %arg13: memref<256x128xbf16, #tpu.memory_space<vmem>>, %arg14: memref<1x128xf32, #tpu.memory_space<vmem>>, %arg15: memref<4x16x128xf32, #tpu.memory_space<vmem>>) attributes {dimension_semantics = [#tpu.dimension_semantics<parallel>], iteration_bounds = array<i64: 2>, scalar_prefetch = 0 : i64, scratch_operands = 0 : i64, tpu.core_type = #tpu.core_type<tc>, window_params = [{transform_indices = @transform_0, window_bounds = array<i64: 4, 16, 128>}, {transform_indices = @transform_1, window_bounds = array<i64: 4, 1, 16>}, {pipeline_mode = #tpu.pipeline_mode<synchronous>, transform_indices = @transform_2, window_bounds = array<i64: 1, 128>}, {pipeline_mode = #tpu.pipeline_mode<synchronous>, transform_indices = @transform_3, window_bounds = array<i64: 1, 128>}, {pipeline_mode = #tpu.pipeline_mode<synchronous>, transform_indices = @transform_4, window_bounds = array<i64: 128, 384>}, {pipeline_mode = #tpu.pipeline_mode<synchronous>, transform_indices = @transform_5, window_bounds = array<i64: 1, 384>}, {pipeline_mode = #tpu.pipeline_mode<synchronous>, transform_indices = @transform_6, window_bounds = array<i64: 128, 128>}, {pipeline_mode = #tpu.pipeline_mode<synchronous>, transform_indices = @transform_7, window_bounds = array<i64: 1, 128>}, {pipeline_mode = #tpu.pipeline_mode<synchronous>, transform_indices = @transform_8, window_bounds = array<i64: 1, 128>}, {pipeline_mode = #tpu.pipeline_mode<synchronous>, transform_indices = @transform_9, window_bounds = array<i64: 1, 128>}, {pipeline_mode = #tpu.pipeline_mode<synchronous>, transform_indices = @transform_10, window_bounds = array<i64: 128, 256>}, {pipeline_mode = #tpu.pipeline_mode<synchronous>, transform_indices = @transform_11, window_bounds = array<i64: 1, 256>}, {pipeline_mode = #tpu.pipeline_mode<synchronous>, transform_indices = @transform_12, window_bounds = array<i64: 256, 128>}, {pipeline_mode = #tpu.pipeline_mode<synchronous>, transform_indices = @transform_13, window_bounds = array<i64: 1, 128>}, {transform_indices = @transform_14, window_bounds = array<i64: 4, 16, 128>}]} {
    %c0 = arith.constant 0 : index
    %c0_0 = arith.constant 0 : index
    %c0_1 = arith.constant 0 : index
    %0 = vector.load %arg1[%c0, %c0_0, %c0_1] : memref<4x16x128xf32, #tpu.memory_space<vmem>>, vector<4x16x128xf32>
    %1 = vector.shape_cast %0 : vector<4x16x128xf32> to vector<64x128xf32>
    %c0_2 = arith.constant 0 : index
    %c0_3 = arith.constant 0 : index
    %2 = vector.load %arg3[%c0_2, %c0_3] : memref<1x128xf32, #tpu.memory_space<vmem>>, vector<1x128xf32>
    %c0_4 = arith.constant 0 : index
    %c0_5 = arith.constant 0 : index
    %3 = vector.load %arg4[%c0_4, %c0_5] : memref<1x128xf32, #tpu.memory_space<vmem>>, vector<1x128xf32>
    %cst = arith.constant dense<0.000000e+00> : vector<64xf32>
    %4 = vector.multi_reduction <add>, %1, %cst [1] : vector<64x128xf32> to vector<64xf32>
    %5 = vector.shape_cast %4 : vector<64xf32> to vector<64x1xf32>
    %cst_6 = arith.constant 1.280000e+02 : f32
    %6 = vector.broadcast %cst_6 : f32 to vector<64x1xf32>
    %7 = arith.divf %5, %6 : vector<64x1xf32>
    %8 = vector.broadcast %7 : vector<64x1xf32> to vector<64x128xf32>
    %9 = arith.subf %1, %8 : vector<64x128xf32>
    %10 = arith.mulf %9, %9 : vector<64x128xf32>
    %cst_7 = arith.constant dense<0.000000e+00> : vector<64xf32>
    %11 = vector.multi_reduction <add>, %10, %cst_7 [1] : vector<64x128xf32> to vector<64xf32>
    %12 = vector.shape_cast %11 : vector<64xf32> to vector<64x1xf32>
    %cst_8 = arith.constant 1.270000e+02 : f32
    %13 = vector.broadcast %cst_8 : f32 to vector<64x1xf32>
    %14 = arith.divf %12, %13 : vector<64x1xf32>
    %15 = math.sqrt %14 : vector<64x1xf32>
    %cst_9 = arith.constant 9.99999997E-7 : f32
    %16 = vector.broadcast %cst_9 : f32 to vector<64x1xf32>
    %17 = arith.addf %15, %16 : vector<64x1xf32>
    %18 = tpu.reciprocal %17 {approx = true} : vector<64x1xf32> -> vector<64x1xf32>
    %19 = vector.broadcast %2 : vector<1x128xf32> to vector<64x128xf32>
    %20 = arith.mulf %19, %9 : vector<64x128xf32>
    %21 = vector.broadcast %18 : vector<64x1xf32> to vector<64x128xf32>
    %22 = arith.mulf %20, %21 : vector<64x128xf32>
    %23 = vector.broadcast %3 : vector<1x128xf32> to vector<64x128xf32>
    %24 = arith.addf %22, %23 : vector<64x128xf32>
    %25 = arith.truncf %24 : vector<64x128xf32> to vector<64x128xbf16>
    %c0_10 = arith.constant 0 : index
    %c0_11 = arith.constant 0 : index
    %26 = vector.load %arg5[%c0_10, %c0_11] : memref<128x384xbf16, #tpu.memory_space<vmem>>, vector<128x384xbf16>
    %cst_12 = arith.constant dense<0.000000e+00> : vector<64x384xf32>
    %27 = tpu.matmul %25, %26, %cst_12 {dimension_numbers = #tpu.dot_dimension_numbers<[1], [0], [0], [1], [0, 0, 1, 1], [], []>} : vector<64x128xbf16>, vector<128x384xbf16>, vector<64x384xf32> -> vector<64x384xf32>
    %c0_13 = arith.constant 0 : index
    %c0_14 = arith.constant 0 : index
    %28 = vector.load %arg6[%c0_13, %c0_14] : memref<1x384xf32, #tpu.memory_space<vmem>>, vector<1x384xf32>
    %29 = vector.broadcast %28 : vector<1x384xf32> to vector<64x384xf32>
    %30 = arith.addf %27, %29 : vector<64x384xf32>
    %31 = vector.extract_strided_slice %30 {offsets = [0, 0], sizes = [64, 128], strides = [1, 1]} : vector<64x384xf32> to vector<64x128xf32>
    %32 = vector.extract_strided_slice %30 {offsets = [0, 128], sizes = [64, 128], strides = [1, 1]} : vector<64x384xf32> to vector<64x128xf32>
    %33 = vector.extract_strided_slice %30 {offsets = [0, 256], sizes = [64, 128], strides = [1, 1]} : vector<64x384xf32> to vector<64x128xf32>
    %c0_15 = arith.constant 0 : index
    %c0_16 = arith.constant 0 : index
    %34 = vector.load %arg7[%c0_15, %c0_16] : memref<128x128xbf16, #tpu.memory_space<vmem>>, vector<128x128xbf16>
    %35 = vector.extract_strided_slice %31 {offsets = [0, 0], sizes = [16, 128], strides = [1, 1]} : vector<64x128xf32> to vector<16x128xf32>
    %36 = vector.extract_strided_slice %32 {offsets = [0, 0], sizes = [16, 128], strides = [1, 1]} : vector<64x128xf32> to vector<16x128xf32>
    %37 = vector.extract_strided_slice %33 {offsets = [0, 0], sizes = [16, 128], strides = [1, 1]} : vector<64x128xf32> to vector<16x128xf32>
    %c0_17 = arith.constant 0 : index
    %c0_18 = arith.constant 0 : index
    %c0_19 = arith.constant 0 : index
    %38 = vector.load %arg2[%c0_17, %c0_18, %c0_19] : memref<4x1x16xf32, #tpu.memory_space<vmem>>, vector<1x1x16xf32>
    %39 = vector.shape_cast %38 : vector<1x1x16xf32> to vector<1x16xf32>
    %cst_20 = arith.constant 0.000000e+00 : f32
    %40 = vector.broadcast %cst_20 : f32 to vector<1x16xf32>
    %41 = arith.cmpf oeq, %39, %40 : vector<1x16xf32>
    %cst_21 = arith.constant 0.000000e+00 : f32
    %42 = vector.broadcast %cst_21 : f32 to vector<16x128xf32>
    %43 = vector.extract_strided_slice %35 {offsets = [0, 0], sizes = [16, 32], strides = [1, 1]} : vector<16x128xf32> to vector<16x32xf32>
    %44 = arith.truncf %43 : vector<16x32xf32> to vector<16x32xbf16>
    %45 = vector.extract_strided_slice %36 {offsets = [0, 0], sizes = [16, 32], strides = [1, 1]} : vector<16x128xf32> to vector<16x32xf32>
    %46 = arith.truncf %45 : vector<16x32xf32> to vector<16x32xbf16>
    %47 = vector.extract_strided_slice %37 {offsets = [0, 0], sizes = [16, 32], strides = [1, 1]} : vector<16x128xf32> to vector<16x32xf32>
    %48 = arith.truncf %47 : vector<16x32xf32> to vector<16x32xbf16>
    %cst_22 = arith.constant dense<0.000000e+00> : vector<16x16xf32>
    %49 = tpu.matmul %44, %46, %cst_22 {dimension_numbers = #tpu.dot_dimension_numbers<[1], [1], [0], [0], [0, 0, 1, 0], [], []>} : vector<16x32xbf16>, vector<16x32xbf16>, vector<16x16xf32> -> vector<16x16xf32>
    %cst_23 = arith.constant 0.176776692 : f32
    %50 = vector.broadcast %cst_23 : f32 to vector<16x16xf32>
    %51 = arith.mulf %49, %50 : vector<16x16xf32>
    %cst_24 = arith.constant -1.000000e+09 : f32
    %52 = vector.shape_cast %41 : vector<1x16xi1> to vector<1x16xi1>
    %53 = vector.broadcast %52 : vector<1x16xi1> to vector<16x16xi1>
    %54 = vector.broadcast %cst_24 : f32 to vector<16x16xf32>
    %55 = arith.select %53, %54, %51 : vector<16x16xi1>, vector<16x16xf32>
    %cst_25 = arith.constant dense<0xFF800000> : vector<16xf32>
    %56 = vector.multi_reduction <maximumf>, %55, %cst_25 [1] : vector<16x16xf32> to vector<16xf32>
    %57 = vector.shape_cast %56 : vector<16xf32> to vector<16x1xf32>
    %58 = vector.broadcast %57 : vector<16x1xf32> to vector<16x16xf32>
    %59 = arith.subf %55, %58 : vector<16x16xf32>
    %60 = math.exp %59 : vector<16x16xf32>
    %cst_26 = arith.constant dense<0.000000e+00> : vector<16xf32>
    %61 = vector.multi_reduction <add>, %60, %cst_26 [1] : vector<16x16xf32> to vector<16xf32>
    %62 = vector.shape_cast %61 : vector<16xf32> to vector<16x1xf32>
    %63 = tpu.reciprocal %62 {approx = true} : vector<16x1xf32> -> vector<16x1xf32>
    %64 = vector.broadcast %63 : vector<16x1xf32> to vector<16x16xf32>
    %65 = arith.mulf %60, %64 : vector<16x16xf32>
    %66 = arith.truncf %65 : vector<16x16xf32> to vector<16x16xbf16>
    %cst_27 = arith.constant dense<0.000000e+00> : vector<16x32xf32>
    %67 = tpu.matmul %66, %48, %cst_27 {dimension_numbers = #tpu.dot_dimension_numbers<[1], [0], [0], [1], [0, 0, 1, 1], [], []>} : vector<16x16xbf16>, vector<16x32xbf16>, vector<16x32xf32> -> vector<16x32xf32>
    %68 = arith.truncf %67 : vector<16x32xf32> to vector<16x32xbf16>
    %69 = vector.extract_strided_slice %34 {offsets = [0, 0], sizes = [32, 128], strides = [1, 1]} : vector<128x128xbf16> to vector<32x128xbf16>
    %cst_28 = arith.constant dense<0.000000e+00> : vector<16x128xf32>
    %70 = tpu.matmul %68, %69, %cst_28 {dimension_numbers = #tpu.dot_dimension_numbers<[1], [0], [0], [1], [0, 0, 1, 1], [], []>} : vector<16x32xbf16>, vector<32x128xbf16>, vector<16x128xf32> -> vector<16x128xf32>
    %71 = arith.addf %42, %70 : vector<16x128xf32>
    %72 = vector.extract_strided_slice %35 {offsets = [0, 32], sizes = [16, 32], strides = [1, 1]} : vector<16x128xf32> to vector<16x32xf32>
    %73 = arith.truncf %72 : vector<16x32xf32> to vector<16x32xbf16>
    %74 = vector.extract_strided_slice %36 {offsets = [0, 32], sizes = [16, 32], strides = [1, 1]} : vector<16x128xf32> to vector<16x32xf32>
    %75 = arith.truncf %74 : vector<16x32xf32> to vector<16x32xbf16>
    %76 = vector.extract_strided_slice %37 {offsets = [0, 32], sizes = [16, 32], strides = [1, 1]} : vector<16x128xf32> to vector<16x32xf32>
    %77 = arith.truncf %76 : vector<16x32xf32> to vector<16x32xbf16>
    %cst_29 = arith.constant dense<0.000000e+00> : vector<16x16xf32>
    %78 = tpu.matmul %73, %75, %cst_29 {dimension_numbers = #tpu.dot_dimension_numbers<[1], [1], [0], [0], [0, 0, 1, 0], [], []>} : vector<16x32xbf16>, vector<16x32xbf16>, vector<16x16xf32> -> vector<16x16xf32>
    %cst_30 = arith.constant 0.176776692 : f32
    %79 = vector.broadcast %cst_30 : f32 to vector<16x16xf32>
    %80 = arith.mulf %78, %79 : vector<16x16xf32>
    %cst_31 = arith.constant -1.000000e+09 : f32
    %81 = vector.shape_cast %41 : vector<1x16xi1> to vector<1x16xi1>
    %82 = vector.broadcast %81 : vector<1x16xi1> to vector<16x16xi1>
    %83 = vector.broadcast %cst_31 : f32 to vector<16x16xf32>
    %84 = arith.select %82, %83, %80 : vector<16x16xi1>, vector<16x16xf32>
    %cst_32 = arith.constant dense<0xFF800000> : vector<16xf32>
    %85 = vector.multi_reduction <maximumf>, %84, %cst_32 [1] : vector<16x16xf32> to vector<16xf32>
    %86 = vector.shape_cast %85 : vector<16xf32> to vector<16x1xf32>
    %87 = vector.broadcast %86 : vector<16x1xf32> to vector<16x16xf32>
    %88 = arith.subf %84, %87 : vector<16x16xf32>
    %89 = math.exp %88 : vector<16x16xf32>
    %cst_33 = arith.constant dense<0.000000e+00> : vector<16xf32>
    %90 = vector.multi_reduction <add>, %89, %cst_33 [1] : vector<16x16xf32> to vector<16xf32>
    %91 = vector.shape_cast %90 : vector<16xf32> to vector<16x1xf32>
    %92 = tpu.reciprocal %91 {approx = true} : vector<16x1xf32> -> vector<16x1xf32>
    %93 = vector.broadcast %92 : vector<16x1xf32> to vector<16x16xf32>
    %94 = arith.mulf %89, %93 : vector<16x16xf32>
    %95 = arith.truncf %94 : vector<16x16xf32> to vector<16x16xbf16>
    %cst_34 = arith.constant dense<0.000000e+00> : vector<16x32xf32>
    %96 = tpu.matmul %95, %77, %cst_34 {dimension_numbers = #tpu.dot_dimension_numbers<[1], [0], [0], [1], [0, 0, 1, 1], [], []>} : vector<16x16xbf16>, vector<16x32xbf16>, vector<16x32xf32> -> vector<16x32xf32>
    %97 = arith.truncf %96 : vector<16x32xf32> to vector<16x32xbf16>
    %98 = vector.extract_strided_slice %34 {offsets = [32, 0], sizes = [32, 128], strides = [1, 1]} : vector<128x128xbf16> to vector<32x128xbf16>
    %cst_35 = arith.constant dense<0.000000e+00> : vector<16x128xf32>
    %99 = tpu.matmul %97, %98, %cst_35 {dimension_numbers = #tpu.dot_dimension_numbers<[1], [0], [0], [1], [0, 0, 1, 1], [], []>} : vector<16x32xbf16>, vector<32x128xbf16>, vector<16x128xf32> -> vector<16x128xf32>
    %100 = arith.addf %71, %99 : vector<16x128xf32>
    %101 = vector.extract_strided_slice %35 {offsets = [0, 64], sizes = [16, 32], strides = [1, 1]} : vector<16x128xf32> to vector<16x32xf32>
    %102 = arith.truncf %101 : vector<16x32xf32> to vector<16x32xbf16>
    %103 = vector.extract_strided_slice %36 {offsets = [0, 64], sizes = [16, 32], strides = [1, 1]} : vector<16x128xf32> to vector<16x32xf32>
    %104 = arith.truncf %103 : vector<16x32xf32> to vector<16x32xbf16>
    %105 = vector.extract_strided_slice %37 {offsets = [0, 64], sizes = [16, 32], strides = [1, 1]} : vector<16x128xf32> to vector<16x32xf32>
    %106 = arith.truncf %105 : vector<16x32xf32> to vector<16x32xbf16>
    %cst_36 = arith.constant dense<0.000000e+00> : vector<16x16xf32>
    %107 = tpu.matmul %102, %104, %cst_36 {dimension_numbers = #tpu.dot_dimension_numbers<[1], [1], [0], [0], [0, 0, 1, 0], [], []>} : vector<16x32xbf16>, vector<16x32xbf16>, vector<16x16xf32> -> vector<16x16xf32>
    %cst_37 = arith.constant 0.176776692 : f32
    %108 = vector.broadcast %cst_37 : f32 to vector<16x16xf32>
    %109 = arith.mulf %107, %108 : vector<16x16xf32>
    %cst_38 = arith.constant -1.000000e+09 : f32
    %110 = vector.shape_cast %41 : vector<1x16xi1> to vector<1x16xi1>
    %111 = vector.broadcast %110 : vector<1x16xi1> to vector<16x16xi1>
    %112 = vector.broadcast %cst_38 : f32 to vector<16x16xf32>
    %113 = arith.select %111, %112, %109 : vector<16x16xi1>, vector<16x16xf32>
    %cst_39 = arith.constant dense<0xFF800000> : vector<16xf32>
    %114 = vector.multi_reduction <maximumf>, %113, %cst_39 [1] : vector<16x16xf32> to vector<16xf32>
    %115 = vector.shape_cast %114 : vector<16xf32> to vector<16x1xf32>
    %116 = vector.broadcast %115 : vector<16x1xf32> to vector<16x16xf32>
    %117 = arith.subf %113, %116 : vector<16x16xf32>
    %118 = math.exp %117 : vector<16x16xf32>
    %cst_40 = arith.constant dense<0.000000e+00> : vector<16xf32>
    %119 = vector.multi_reduction <add>, %118, %cst_40 [1] : vector<16x16xf32> to vector<16xf32>
    %120 = vector.shape_cast %119 : vector<16xf32> to vector<16x1xf32>
    %121 = tpu.reciprocal %120 {approx = true} : vector<16x1xf32> -> vector<16x1xf32>
    %122 = vector.broadcast %121 : vector<16x1xf32> to vector<16x16xf32>
    %123 = arith.mulf %118, %122 : vector<16x16xf32>
    %124 = arith.truncf %123 : vector<16x16xf32> to vector<16x16xbf16>
    %cst_41 = arith.constant dense<0.000000e+00> : vector<16x32xf32>
    %125 = tpu.matmul %124, %106, %cst_41 {dimension_numbers = #tpu.dot_dimension_numbers<[1], [0], [0], [1], [0, 0, 1, 1], [], []>} : vector<16x16xbf16>, vector<16x32xbf16>, vector<16x32xf32> -> vector<16x32xf32>
    %126 = arith.truncf %125 : vector<16x32xf32> to vector<16x32xbf16>
    %127 = vector.extract_strided_slice %34 {offsets = [64, 0], sizes = [32, 128], strides = [1, 1]} : vector<128x128xbf16> to vector<32x128xbf16>
    %cst_42 = arith.constant dense<0.000000e+00> : vector<16x128xf32>
    %128 = tpu.matmul %126, %127, %cst_42 {dimension_numbers = #tpu.dot_dimension_numbers<[1], [0], [0], [1], [0, 0, 1, 1], [], []>} : vector<16x32xbf16>, vector<32x128xbf16>, vector<16x128xf32> -> vector<16x128xf32>
    %129 = arith.addf %100, %128 : vector<16x128xf32>
    %130 = vector.extract_strided_slice %35 {offsets = [0, 96], sizes = [16, 32], strides = [1, 1]} : vector<16x128xf32> to vector<16x32xf32>
    %131 = arith.truncf %130 : vector<16x32xf32> to vector<16x32xbf16>
    %132 = vector.extract_strided_slice %36 {offsets = [0, 96], sizes = [16, 32], strides = [1, 1]} : vector<16x128xf32> to vector<16x32xf32>
    %133 = arith.truncf %132 : vector<16x32xf32> to vector<16x32xbf16>
    %134 = vector.extract_strided_slice %37 {offsets = [0, 96], sizes = [16, 32], strides = [1, 1]} : vector<16x128xf32> to vector<16x32xf32>
    %135 = arith.truncf %134 : vector<16x32xf32> to vector<16x32xbf16>
    %cst_43 = arith.constant dense<0.000000e+00> : vector<16x16xf32>
    %136 = tpu.matmul %131, %133, %cst_43 {dimension_numbers = #tpu.dot_dimension_numbers<[1], [1], [0], [0], [0, 0, 1, 0], [], []>} : vector<16x32xbf16>, vector<16x32xbf16>, vector<16x16xf32> -> vector<16x16xf32>
    %cst_44 = arith.constant 0.176776692 : f32
    %137 = vector.broadcast %cst_44 : f32 to vector<16x16xf32>
    %138 = arith.mulf %136, %137 : vector<16x16xf32>
    %cst_45 = arith.constant -1.000000e+09 : f32
    %139 = vector.shape_cast %41 : vector<1x16xi1> to vector<1x16xi1>
    %140 = vector.broadcast %139 : vector<1x16xi1> to vector<16x16xi1>
    %141 = vector.broadcast %cst_45 : f32 to vector<16x16xf32>
    %142 = arith.select %140, %141, %138 : vector<16x16xi1>, vector<16x16xf32>
    %cst_46 = arith.constant dense<0xFF800000> : vector<16xf32>
    %143 = vector.multi_reduction <maximumf>, %142, %cst_46 [1] : vector<16x16xf32> to vector<16xf32>
    %144 = vector.shape_cast %143 : vector<16xf32> to vector<16x1xf32>
    %145 = vector.broadcast %144 : vector<16x1xf32> to vector<16x16xf32>
    %146 = arith.subf %142, %145 : vector<16x16xf32>
    %147 = math.exp %146 : vector<16x16xf32>
    %cst_47 = arith.constant dense<0.000000e+00> : vector<16xf32>
    %148 = vector.multi_reduction <add>, %147, %cst_47 [1] : vector<16x16xf32> to vector<16xf32>
    %149 = vector.shape_cast %148 : vector<16xf32> to vector<16x1xf32>
    %150 = tpu.reciprocal %149 {approx = true} : vector<16x1xf32> -> vector<16x1xf32>
    %151 = vector.broadcast %150 : vector<16x1xf32> to vector<16x16xf32>
    %152 = arith.mulf %147, %151 : vector<16x16xf32>
    %153 = arith.truncf %152 : vector<16x16xf32> to vector<16x16xbf16>
    %cst_48 = arith.constant dense<0.000000e+00> : vector<16x32xf32>
    %154 = tpu.matmul %153, %135, %cst_48 {dimension_numbers = #tpu.dot_dimension_numbers<[1], [0], [0], [1], [0, 0, 1, 1], [], []>} : vector<16x16xbf16>, vector<16x32xbf16>, vector<16x32xf32> -> vector<16x32xf32>
    %155 = arith.truncf %154 : vector<16x32xf32> to vector<16x32xbf16>
    %156 = vector.extract_strided_slice %34 {offsets = [96, 0], sizes = [32, 128], strides = [1, 1]} : vector<128x128xbf16> to vector<32x128xbf16>
    %cst_49 = arith.constant dense<0.000000e+00> : vector<16x128xf32>
    %157 = tpu.matmul %155, %156, %cst_49 {dimension_numbers = #tpu.dot_dimension_numbers<[1], [0], [0], [1], [0, 0, 1, 1], [], []>} : vector<16x32xbf16>, vector<32x128xbf16>, vector<16x128xf32> -> vector<16x128xf32>
    %158 = arith.addf %129, %157 : vector<16x128xf32>
    %159 = vector.extract_strided_slice %31 {offsets = [16, 0], sizes = [16, 128], strides = [1, 1]} : vector<64x128xf32> to vector<16x128xf32>
    %160 = vector.extract_strided_slice %32 {offsets = [16, 0], sizes = [16, 128], strides = [1, 1]} : vector<64x128xf32> to vector<16x128xf32>
    %161 = vector.extract_strided_slice %33 {offsets = [16, 0], sizes = [16, 128], strides = [1, 1]} : vector<64x128xf32> to vector<16x128xf32>
    %c1 = arith.constant 1 : index
    %c0_50 = arith.constant 0 : index
    %c0_51 = arith.constant 0 : index
    %162 = vector.load %arg2[%c1, %c0_50, %c0_51] : memref<4x1x16xf32, #tpu.memory_space<vmem>>, vector<1x1x16xf32>
    %163 = vector.shape_cast %162 : vector<1x1x16xf32> to vector<1x16xf32>
    %cst_52 = arith.constant 0.000000e+00 : f32
    %164 = vector.broadcast %cst_52 : f32 to vector<1x16xf32>
    %165 = arith.cmpf oeq, %163, %164 : vector<1x16xf32>
    %cst_53 = arith.constant 0.000000e+00 : f32
    %166 = vector.broadcast %cst_53 : f32 to vector<16x128xf32>
    %167 = vector.extract_strided_slice %159 {offsets = [0, 0], sizes = [16, 32], strides = [1, 1]} : vector<16x128xf32> to vector<16x32xf32>
    %168 = arith.truncf %167 : vector<16x32xf32> to vector<16x32xbf16>
    %169 = vector.extract_strided_slice %160 {offsets = [0, 0], sizes = [16, 32], strides = [1, 1]} : vector<16x128xf32> to vector<16x32xf32>
    %170 = arith.truncf %169 : vector<16x32xf32> to vector<16x32xbf16>
    %171 = vector.extract_strided_slice %161 {offsets = [0, 0], sizes = [16, 32], strides = [1, 1]} : vector<16x128xf32> to vector<16x32xf32>
    %172 = arith.truncf %171 : vector<16x32xf32> to vector<16x32xbf16>
    %cst_54 = arith.constant dense<0.000000e+00> : vector<16x16xf32>
    %173 = tpu.matmul %168, %170, %cst_54 {dimension_numbers = #tpu.dot_dimension_numbers<[1], [1], [0], [0], [0, 0, 1, 0], [], []>} : vector<16x32xbf16>, vector<16x32xbf16>, vector<16x16xf32> -> vector<16x16xf32>
    %cst_55 = arith.constant 0.176776692 : f32
    %174 = vector.broadcast %cst_55 : f32 to vector<16x16xf32>
    %175 = arith.mulf %173, %174 : vector<16x16xf32>
    %cst_56 = arith.constant -1.000000e+09 : f32
    %176 = vector.shape_cast %165 : vector<1x16xi1> to vector<1x16xi1>
    %177 = vector.broadcast %176 : vector<1x16xi1> to vector<16x16xi1>
    %178 = vector.broadcast %cst_56 : f32 to vector<16x16xf32>
    %179 = arith.select %177, %178, %175 : vector<16x16xi1>, vector<16x16xf32>
    %cst_57 = arith.constant dense<0xFF800000> : vector<16xf32>
    %180 = vector.multi_reduction <maximumf>, %179, %cst_57 [1] : vector<16x16xf32> to vector<16xf32>
    %181 = vector.shape_cast %180 : vector<16xf32> to vector<16x1xf32>
    %182 = vector.broadcast %181 : vector<16x1xf32> to vector<16x16xf32>
    %183 = arith.subf %179, %182 : vector<16x16xf32>
    %184 = math.exp %183 : vector<16x16xf32>
    %cst_58 = arith.constant dense<0.000000e+00> : vector<16xf32>
    %185 = vector.multi_reduction <add>, %184, %cst_58 [1] : vector<16x16xf32> to vector<16xf32>
    %186 = vector.shape_cast %185 : vector<16xf32> to vector<16x1xf32>
    %187 = tpu.reciprocal %186 {approx = true} : vector<16x1xf32> -> vector<16x1xf32>
    %188 = vector.broadcast %187 : vector<16x1xf32> to vector<16x16xf32>
    %189 = arith.mulf %184, %188 : vector<16x16xf32>
    %190 = arith.truncf %189 : vector<16x16xf32> to vector<16x16xbf16>
    %cst_59 = arith.constant dense<0.000000e+00> : vector<16x32xf32>
    %191 = tpu.matmul %190, %172, %cst_59 {dimension_numbers = #tpu.dot_dimension_numbers<[1], [0], [0], [1], [0, 0, 1, 1], [], []>} : vector<16x16xbf16>, vector<16x32xbf16>, vector<16x32xf32> -> vector<16x32xf32>
    %192 = arith.truncf %191 : vector<16x32xf32> to vector<16x32xbf16>
    %193 = vector.extract_strided_slice %34 {offsets = [0, 0], sizes = [32, 128], strides = [1, 1]} : vector<128x128xbf16> to vector<32x128xbf16>
    %cst_60 = arith.constant dense<0.000000e+00> : vector<16x128xf32>
    %194 = tpu.matmul %192, %193, %cst_60 {dimension_numbers = #tpu.dot_dimension_numbers<[1], [0], [0], [1], [0, 0, 1, 1], [], []>} : vector<16x32xbf16>, vector<32x128xbf16>, vector<16x128xf32> -> vector<16x128xf32>
    %195 = arith.addf %166, %194 : vector<16x128xf32>
    %196 = vector.extract_strided_slice %159 {offsets = [0, 32], sizes = [16, 32], strides = [1, 1]} : vector<16x128xf32> to vector<16x32xf32>
    %197 = arith.truncf %196 : vector<16x32xf32> to vector<16x32xbf16>
    %198 = vector.extract_strided_slice %160 {offsets = [0, 32], sizes = [16, 32], strides = [1, 1]} : vector<16x128xf32> to vector<16x32xf32>
    %199 = arith.truncf %198 : vector<16x32xf32> to vector<16x32xbf16>
    %200 = vector.extract_strided_slice %161 {offsets = [0, 32], sizes = [16, 32], strides = [1, 1]} : vector<16x128xf32> to vector<16x32xf32>
    %201 = arith.truncf %200 : vector<16x32xf32> to vector<16x32xbf16>
    %cst_61 = arith.constant dense<0.000000e+00> : vector<16x16xf32>
    %202 = tpu.matmul %197, %199, %cst_61 {dimension_numbers = #tpu.dot_dimension_numbers<[1], [1], [0], [0], [0, 0, 1, 0], [], []>} : vector<16x32xbf16>, vector<16x32xbf16>, vector<16x16xf32> -> vector<16x16xf32>
    %cst_62 = arith.constant 0.176776692 : f32
    %203 = vector.broadcast %cst_62 : f32 to vector<16x16xf32>
    %204 = arith.mulf %202, %203 : vector<16x16xf32>
    %cst_63 = arith.constant -1.000000e+09 : f32
    %205 = vector.shape_cast %165 : vector<1x16xi1> to vector<1x16xi1>
    %206 = vector.broadcast %205 : vector<1x16xi1> to vector<16x16xi1>
    %207 = vector.broadcast %cst_63 : f32 to vector<16x16xf32>
    %208 = arith.select %206, %207, %204 : vector<16x16xi1>, vector<16x16xf32>
    %cst_64 = arith.constant dense<0xFF800000> : vector<16xf32>
    %209 = vector.multi_reduction <maximumf>, %208, %cst_64 [1] : vector<16x16xf32> to vector<16xf32>
    %210 = vector.shape_cast %209 : vector<16xf32> to vector<16x1xf32>
    %211 = vector.broadcast %210 : vector<16x1xf32> to vector<16x16xf32>
    %212 = arith.subf %208, %211 : vector<16x16xf32>
    %213 = math.exp %212 : vector<16x16xf32>
    %cst_65 = arith.constant dense<0.000000e+00> : vector<16xf32>
    %214 = vector.multi_reduction <add>, %213, %cst_65 [1] : vector<16x16xf32> to vector<16xf32>
    %215 = vector.shape_cast %214 : vector<16xf32> to vector<16x1xf32>
    %216 = tpu.reciprocal %215 {approx = true} : vector<16x1xf32> -> vector<16x1xf32>
    %217 = vector.broadcast %216 : vector<16x1xf32> to vector<16x16xf32>
    %218 = arith.mulf %213, %217 : vector<16x16xf32>
    %219 = arith.truncf %218 : vector<16x16xf32> to vector<16x16xbf16>
    %cst_66 = arith.constant dense<0.000000e+00> : vector<16x32xf32>
    %220 = tpu.matmul %219, %201, %cst_66 {dimension_numbers = #tpu.dot_dimension_numbers<[1], [0], [0], [1], [0, 0, 1, 1], [], []>} : vector<16x16xbf16>, vector<16x32xbf16>, vector<16x32xf32> -> vector<16x32xf32>
    %221 = arith.truncf %220 : vector<16x32xf32> to vector<16x32xbf16>
    %222 = vector.extract_strided_slice %34 {offsets = [32, 0], sizes = [32, 128], strides = [1, 1]} : vector<128x128xbf16> to vector<32x128xbf16>
    %cst_67 = arith.constant dense<0.000000e+00> : vector<16x128xf32>
    %223 = tpu.matmul %221, %222, %cst_67 {dimension_numbers = #tpu.dot_dimension_numbers<[1], [0], [0], [1], [0, 0, 1, 1], [], []>} : vector<16x32xbf16>, vector<32x128xbf16>, vector<16x128xf32> -> vector<16x128xf32>
    %224 = arith.addf %195, %223 : vector<16x128xf32>
    %225 = vector.extract_strided_slice %159 {offsets = [0, 64], sizes = [16, 32], strides = [1, 1]} : vector<16x128xf32> to vector<16x32xf32>
    %226 = arith.truncf %225 : vector<16x32xf32> to vector<16x32xbf16>
    %227 = vector.extract_strided_slice %160 {offsets = [0, 64], sizes = [16, 32], strides = [1, 1]} : vector<16x128xf32> to vector<16x32xf32>
    %228 = arith.truncf %227 : vector<16x32xf32> to vector<16x32xbf16>
    %229 = vector.extract_strided_slice %161 {offsets = [0, 64], sizes = [16, 32], strides = [1, 1]} : vector<16x128xf32> to vector<16x32xf32>
    %230 = arith.truncf %229 : vector<16x32xf32> to vector<16x32xbf16>
    %cst_68 = arith.constant dense<0.000000e+00> : vector<16x16xf32>
    %231 = tpu.matmul %226, %228, %cst_68 {dimension_numbers = #tpu.dot_dimension_numbers<[1], [1], [0], [0], [0, 0, 1, 0], [], []>} : vector<16x32xbf16>, vector<16x32xbf16>, vector<16x16xf32> -> vector<16x16xf32>
    %cst_69 = arith.constant 0.176776692 : f32
    %232 = vector.broadcast %cst_69 : f32 to vector<16x16xf32>
    %233 = arith.mulf %231, %232 : vector<16x16xf32>
    %cst_70 = arith.constant -1.000000e+09 : f32
    %234 = vector.shape_cast %165 : vector<1x16xi1> to vector<1x16xi1>
    %235 = vector.broadcast %234 : vector<1x16xi1> to vector<16x16xi1>
    %236 = vector.broadcast %cst_70 : f32 to vector<16x16xf32>
    %237 = arith.select %235, %236, %233 : vector<16x16xi1>, vector<16x16xf32>
    %cst_71 = arith.constant dense<0xFF800000> : vector<16xf32>
    %238 = vector.multi_reduction <maximumf>, %237, %cst_71 [1] : vector<16x16xf32> to vector<16xf32>
    %239 = vector.shape_cast %238 : vector<16xf32> to vector<16x1xf32>
    %240 = vector.broadcast %239 : vector<16x1xf32> to vector<16x16xf32>
    %241 = arith.subf %237, %240 : vector<16x16xf32>
    %242 = math.exp %241 : vector<16x16xf32>
    %cst_72 = arith.constant dense<0.000000e+00> : vector<16xf32>
    %243 = vector.multi_reduction <add>, %242, %cst_72 [1] : vector<16x16xf32> to vector<16xf32>
    %244 = vector.shape_cast %243 : vector<16xf32> to vector<16x1xf32>
    %245 = tpu.reciprocal %244 {approx = true} : vector<16x1xf32> -> vector<16x1xf32>
    %246 = vector.broadcast %245 : vector<16x1xf32> to vector<16x16xf32>
    %247 = arith.mulf %242, %246 : vector<16x16xf32>
    %248 = arith.truncf %247 : vector<16x16xf32> to vector<16x16xbf16>
    %cst_73 = arith.constant dense<0.000000e+00> : vector<16x32xf32>
    %249 = tpu.matmul %248, %230, %cst_73 {dimension_numbers = #tpu.dot_dimension_numbers<[1], [0], [0], [1], [0, 0, 1, 1], [], []>} : vector<16x16xbf16>, vector<16x32xbf16>, vector<16x32xf32> -> vector<16x32xf32>
    %250 = arith.truncf %249 : vector<16x32xf32> to vector<16x32xbf16>
    %251 = vector.extract_strided_slice %34 {offsets = [64, 0], sizes = [32, 128], strides = [1, 1]} : vector<128x128xbf16> to vector<32x128xbf16>
    %cst_74 = arith.constant dense<0.000000e+00> : vector<16x128xf32>
    %252 = tpu.matmul %250, %251, %cst_74 {dimension_numbers = #tpu.dot_dimension_numbers<[1], [0], [0], [1], [0, 0, 1, 1], [], []>} : vector<16x32xbf16>, vector<32x128xbf16>, vector<16x128xf32> -> vector<16x128xf32>
    %253 = arith.addf %224, %252 : vector<16x128xf32>
    %254 = vector.extract_strided_slice %159 {offsets = [0, 96], sizes = [16, 32], strides = [1, 1]} : vector<16x128xf32> to vector<16x32xf32>
    %255 = arith.truncf %254 : vector<16x32xf32> to vector<16x32xbf16>
    %256 = vector.extract_strided_slice %160 {offsets = [0, 96], sizes = [16, 32], strides = [1, 1]} : vector<16x128xf32> to vector<16x32xf32>
    %257 = arith.truncf %256 : vector<16x32xf32> to vector<16x32xbf16>
    %258 = vector.extract_strided_slice %161 {offsets = [0, 96], sizes = [16, 32], strides = [1, 1]} : vector<16x128xf32> to vector<16x32xf32>
    %259 = arith.truncf %258 : vector<16x32xf32> to vector<16x32xbf16>
    %cst_75 = arith.constant dense<0.000000e+00> : vector<16x16xf32>
    %260 = tpu.matmul %255, %257, %cst_75 {dimension_numbers = #tpu.dot_dimension_numbers<[1], [1], [0], [0], [0, 0, 1, 0], [], []>} : vector<16x32xbf16>, vector<16x32xbf16>, vector<16x16xf32> -> vector<16x16xf32>
    %cst_76 = arith.constant 0.176776692 : f32
    %261 = vector.broadcast %cst_76 : f32 to vector<16x16xf32>
    %262 = arith.mulf %260, %261 : vector<16x16xf32>
    %cst_77 = arith.constant -1.000000e+09 : f32
    %263 = vector.shape_cast %165 : vector<1x16xi1> to vector<1x16xi1>
    %264 = vector.broadcast %263 : vector<1x16xi1> to vector<16x16xi1>
    %265 = vector.broadcast %cst_77 : f32 to vector<16x16xf32>
    %266 = arith.select %264, %265, %262 : vector<16x16xi1>, vector<16x16xf32>
    %cst_78 = arith.constant dense<0xFF800000> : vector<16xf32>
    %267 = vector.multi_reduction <maximumf>, %266, %cst_78 [1] : vector<16x16xf32> to vector<16xf32>
    %268 = vector.shape_cast %267 : vector<16xf32> to vector<16x1xf32>
    %269 = vector.broadcast %268 : vector<16x1xf32> to vector<16x16xf32>
    %270 = arith.subf %266, %269 : vector<16x16xf32>
    %271 = math.exp %270 : vector<16x16xf32>
    %cst_79 = arith.constant dense<0.000000e+00> : vector<16xf32>
    %272 = vector.multi_reduction <add>, %271, %cst_79 [1] : vector<16x16xf32> to vector<16xf32>
    %273 = vector.shape_cast %272 : vector<16xf32> to vector<16x1xf32>
    %274 = tpu.reciprocal %273 {approx = true} : vector<16x1xf32> -> vector<16x1xf32>
    %275 = vector.broadcast %274 : vector<16x1xf32> to vector<16x16xf32>
    %276 = arith.mulf %271, %275 : vector<16x16xf32>
    %277 = arith.truncf %276 : vector<16x16xf32> to vector<16x16xbf16>
    %cst_80 = arith.constant dense<0.000000e+00> : vector<16x32xf32>
    %278 = tpu.matmul %277, %259, %cst_80 {dimension_numbers = #tpu.dot_dimension_numbers<[1], [0], [0], [1], [0, 0, 1, 1], [], []>} : vector<16x16xbf16>, vector<16x32xbf16>, vector<16x32xf32> -> vector<16x32xf32>
    %279 = arith.truncf %278 : vector<16x32xf32> to vector<16x32xbf16>
    %280 = vector.extract_strided_slice %34 {offsets = [96, 0], sizes = [32, 128], strides = [1, 1]} : vector<128x128xbf16> to vector<32x128xbf16>
    %cst_81 = arith.constant dense<0.000000e+00> : vector<16x128xf32>
    %281 = tpu.matmul %279, %280, %cst_81 {dimension_numbers = #tpu.dot_dimension_numbers<[1], [0], [0], [1], [0, 0, 1, 1], [], []>} : vector<16x32xbf16>, vector<32x128xbf16>, vector<16x128xf32> -> vector<16x128xf32>
    %282 = arith.addf %253, %281 : vector<16x128xf32>
    %283 = vector.extract_strided_slice %31 {offsets = [32, 0], sizes = [16, 128], strides = [1, 1]} : vector<64x128xf32> to vector<16x128xf32>
    %284 = vector.extract_strided_slice %32 {offsets = [32, 0], sizes = [16, 128], strides = [1, 1]} : vector<64x128xf32> to vector<16x128xf32>
    %285 = vector.extract_strided_slice %33 {offsets = [32, 0], sizes = [16, 128], strides = [1, 1]} : vector<64x128xf32> to vector<16x128xf32>
    %c2 = arith.constant 2 : index
    %c0_82 = arith.constant 0 : index
    %c0_83 = arith.constant 0 : index
    %286 = vector.load %arg2[%c2, %c0_82, %c0_83] : memref<4x1x16xf32, #tpu.memory_space<vmem>>, vector<1x1x16xf32>
    %287 = vector.shape_cast %286 : vector<1x1x16xf32> to vector<1x16xf32>
    %cst_84 = arith.constant 0.000000e+00 : f32
    %288 = vector.broadcast %cst_84 : f32 to vector<1x16xf32>
    %289 = arith.cmpf oeq, %287, %288 : vector<1x16xf32>
    %cst_85 = arith.constant 0.000000e+00 : f32
    %290 = vector.broadcast %cst_85 : f32 to vector<16x128xf32>
    %291 = vector.extract_strided_slice %283 {offsets = [0, 0], sizes = [16, 32], strides = [1, 1]} : vector<16x128xf32> to vector<16x32xf32>
    %292 = arith.truncf %291 : vector<16x32xf32> to vector<16x32xbf16>
    %293 = vector.extract_strided_slice %284 {offsets = [0, 0], sizes = [16, 32], strides = [1, 1]} : vector<16x128xf32> to vector<16x32xf32>
    %294 = arith.truncf %293 : vector<16x32xf32> to vector<16x32xbf16>
    %295 = vector.extract_strided_slice %285 {offsets = [0, 0], sizes = [16, 32], strides = [1, 1]} : vector<16x128xf32> to vector<16x32xf32>
    %296 = arith.truncf %295 : vector<16x32xf32> to vector<16x32xbf16>
    %cst_86 = arith.constant dense<0.000000e+00> : vector<16x16xf32>
    %297 = tpu.matmul %292, %294, %cst_86 {dimension_numbers = #tpu.dot_dimension_numbers<[1], [1], [0], [0], [0, 0, 1, 0], [], []>} : vector<16x32xbf16>, vector<16x32xbf16>, vector<16x16xf32> -> vector<16x16xf32>
    %cst_87 = arith.constant 0.176776692 : f32
    %298 = vector.broadcast %cst_87 : f32 to vector<16x16xf32>
    %299 = arith.mulf %297, %298 : vector<16x16xf32>
    %cst_88 = arith.constant -1.000000e+09 : f32
    %300 = vector.shape_cast %289 : vector<1x16xi1> to vector<1x16xi1>
    %301 = vector.broadcast %300 : vector<1x16xi1> to vector<16x16xi1>
    %302 = vector.broadcast %cst_88 : f32 to vector<16x16xf32>
    %303 = arith.select %301, %302, %299 : vector<16x16xi1>, vector<16x16xf32>
    %cst_89 = arith.constant dense<0xFF800000> : vector<16xf32>
    %304 = vector.multi_reduction <maximumf>, %303, %cst_89 [1] : vector<16x16xf32> to vector<16xf32>
    %305 = vector.shape_cast %304 : vector<16xf32> to vector<16x1xf32>
    %306 = vector.broadcast %305 : vector<16x1xf32> to vector<16x16xf32>
    %307 = arith.subf %303, %306 : vector<16x16xf32>
    %308 = math.exp %307 : vector<16x16xf32>
    %cst_90 = arith.constant dense<0.000000e+00> : vector<16xf32>
    %309 = vector.multi_reduction <add>, %308, %cst_90 [1] : vector<16x16xf32> to vector<16xf32>
    %310 = vector.shape_cast %309 : vector<16xf32> to vector<16x1xf32>
    %311 = tpu.reciprocal %310 {approx = true} : vector<16x1xf32> -> vector<16x1xf32>
    %312 = vector.broadcast %311 : vector<16x1xf32> to vector<16x16xf32>
    %313 = arith.mulf %308, %312 : vector<16x16xf32>
    %314 = arith.truncf %313 : vector<16x16xf32> to vector<16x16xbf16>
    %cst_91 = arith.constant dense<0.000000e+00> : vector<16x32xf32>
    %315 = tpu.matmul %314, %296, %cst_91 {dimension_numbers = #tpu.dot_dimension_numbers<[1], [0], [0], [1], [0, 0, 1, 1], [], []>} : vector<16x16xbf16>, vector<16x32xbf16>, vector<16x32xf32> -> vector<16x32xf32>
    %316 = arith.truncf %315 : vector<16x32xf32> to vector<16x32xbf16>
    %317 = vector.extract_strided_slice %34 {offsets = [0, 0], sizes = [32, 128], strides = [1, 1]} : vector<128x128xbf16> to vector<32x128xbf16>
    %cst_92 = arith.constant dense<0.000000e+00> : vector<16x128xf32>
    %318 = tpu.matmul %316, %317, %cst_92 {dimension_numbers = #tpu.dot_dimension_numbers<[1], [0], [0], [1], [0, 0, 1, 1], [], []>} : vector<16x32xbf16>, vector<32x128xbf16>, vector<16x128xf32> -> vector<16x128xf32>
    %319 = arith.addf %290, %318 : vector<16x128xf32>
    %320 = vector.extract_strided_slice %283 {offsets = [0, 32], sizes = [16, 32], strides = [1, 1]} : vector<16x128xf32> to vector<16x32xf32>
    %321 = arith.truncf %320 : vector<16x32xf32> to vector<16x32xbf16>
    %322 = vector.extract_strided_slice %284 {offsets = [0, 32], sizes = [16, 32], strides = [1, 1]} : vector<16x128xf32> to vector<16x32xf32>
    %323 = arith.truncf %322 : vector<16x32xf32> to vector<16x32xbf16>
    %324 = vector.extract_strided_slice %285 {offsets = [0, 32], sizes = [16, 32], strides = [1, 1]} : vector<16x128xf32> to vector<16x32xf32>
    %325 = arith.truncf %324 : vector<16x32xf32> to vector<16x32xbf16>
    %cst_93 = arith.constant dense<0.000000e+00> : vector<16x16xf32>
    %326 = tpu.matmul %321, %323, %cst_93 {dimension_numbers = #tpu.dot_dimension_numbers<[1], [1], [0], [0], [0, 0, 1, 0], [], []>} : vector<16x32xbf16>, vector<16x32xbf16>, vector<16x16xf32> -> vector<16x16xf32>
    %cst_94 = arith.constant 0.176776692 : f32
    %327 = vector.broadcast %cst_94 : f32 to vector<16x16xf32>
    %328 = arith.mulf %326, %327 : vector<16x16xf32>
    %cst_95 = arith.constant -1.000000e+09 : f32
    %329 = vector.shape_cast %289 : vector<1x16xi1> to vector<1x16xi1>
    %330 = vector.broadcast %329 : vector<1x16xi1> to vector<16x16xi1>
    %331 = vector.broadcast %cst_95 : f32 to vector<16x16xf32>
    %332 = arith.select %330, %331, %328 : vector<16x16xi1>, vector<16x16xf32>
    %cst_96 = arith.constant dense<0xFF800000> : vector<16xf32>
    %333 = vector.multi_reduction <maximumf>, %332, %cst_96 [1] : vector<16x16xf32> to vector<16xf32>
    %334 = vector.shape_cast %333 : vector<16xf32> to vector<16x1xf32>
    %335 = vector.broadcast %334 : vector<16x1xf32> to vector<16x16xf32>
    %336 = arith.subf %332, %335 : vector<16x16xf32>
    %337 = math.exp %336 : vector<16x16xf32>
    %cst_97 = arith.constant dense<0.000000e+00> : vector<16xf32>
    %338 = vector.multi_reduction <add>, %337, %cst_97 [1] : vector<16x16xf32> to vector<16xf32>
    %339 = vector.shape_cast %338 : vector<16xf32> to vector<16x1xf32>
    %340 = tpu.reciprocal %339 {approx = true} : vector<16x1xf32> -> vector<16x1xf32>
    %341 = vector.broadcast %340 : vector<16x1xf32> to vector<16x16xf32>
    %342 = arith.mulf %337, %341 : vector<16x16xf32>
    %343 = arith.truncf %342 : vector<16x16xf32> to vector<16x16xbf16>
    %cst_98 = arith.constant dense<0.000000e+00> : vector<16x32xf32>
    %344 = tpu.matmul %343, %325, %cst_98 {dimension_numbers = #tpu.dot_dimension_numbers<[1], [0], [0], [1], [0, 0, 1, 1], [], []>} : vector<16x16xbf16>, vector<16x32xbf16>, vector<16x32xf32> -> vector<16x32xf32>
    %345 = arith.truncf %344 : vector<16x32xf32> to vector<16x32xbf16>
    %346 = vector.extract_strided_slice %34 {offsets = [32, 0], sizes = [32, 128], strides = [1, 1]} : vector<128x128xbf16> to vector<32x128xbf16>
    %cst_99 = arith.constant dense<0.000000e+00> : vector<16x128xf32>
    %347 = tpu.matmul %345, %346, %cst_99 {dimension_numbers = #tpu.dot_dimension_numbers<[1], [0], [0], [1], [0, 0, 1, 1], [], []>} : vector<16x32xbf16>, vector<32x128xbf16>, vector<16x128xf32> -> vector<16x128xf32>
    %348 = arith.addf %319, %347 : vector<16x128xf32>
    %349 = vector.extract_strided_slice %283 {offsets = [0, 64], sizes = [16, 32], strides = [1, 1]} : vector<16x128xf32> to vector<16x32xf32>
    %350 = arith.truncf %349 : vector<16x32xf32> to vector<16x32xbf16>
    %351 = vector.extract_strided_slice %284 {offsets = [0, 64], sizes = [16, 32], strides = [1, 1]} : vector<16x128xf32> to vector<16x32xf32>
    %352 = arith.truncf %351 : vector<16x32xf32> to vector<16x32xbf16>
    %353 = vector.extract_strided_slice %285 {offsets = [0, 64], sizes = [16, 32], strides = [1, 1]} : vector<16x128xf32> to vector<16x32xf32>
    %354 = arith.truncf %353 : vector<16x32xf32> to vector<16x32xbf16>
    %cst_100 = arith.constant dense<0.000000e+00> : vector<16x16xf32>
    %355 = tpu.matmul %350, %352, %cst_100 {dimension_numbers = #tpu.dot_dimension_numbers<[1], [1], [0], [0], [0, 0, 1, 0], [], []>} : vector<16x32xbf16>, vector<16x32xbf16>, vector<16x16xf32> -> vector<16x16xf32>
    %cst_101 = arith.constant 0.176776692 : f32
    %356 = vector.broadcast %cst_101 : f32 to vector<16x16xf32>
    %357 = arith.mulf %355, %356 : vector<16x16xf32>
    %cst_102 = arith.constant -1.000000e+09 : f32
    %358 = vector.shape_cast %289 : vector<1x16xi1> to vector<1x16xi1>
    %359 = vector.broadcast %358 : vector<1x16xi1> to vector<16x16xi1>
    %360 = vector.broadcast %cst_102 : f32 to vector<16x16xf32>
    %361 = arith.select %359, %360, %357 : vector<16x16xi1>, vector<16x16xf32>
    %cst_103 = arith.constant dense<0xFF800000> : vector<16xf32>
    %362 = vector.multi_reduction <maximumf>, %361, %cst_103 [1] : vector<16x16xf32> to vector<16xf32>
    %363 = vector.shape_cast %362 : vector<16xf32> to vector<16x1xf32>
    %364 = vector.broadcast %363 : vector<16x1xf32> to vector<16x16xf32>
    %365 = arith.subf %361, %364 : vector<16x16xf32>
    %366 = math.exp %365 : vector<16x16xf32>
    %cst_104 = arith.constant dense<0.000000e+00> : vector<16xf32>
    %367 = vector.multi_reduction <add>, %366, %cst_104 [1] : vector<16x16xf32> to vector<16xf32>
    %368 = vector.shape_cast %367 : vector<16xf32> to vector<16x1xf32>
    %369 = tpu.reciprocal %368 {approx = true} : vector<16x1xf32> -> vector<16x1xf32>
    %370 = vector.broadcast %369 : vector<16x1xf32> to vector<16x16xf32>
    %371 = arith.mulf %366, %370 : vector<16x16xf32>
    %372 = arith.truncf %371 : vector<16x16xf32> to vector<16x16xbf16>
    %cst_105 = arith.constant dense<0.000000e+00> : vector<16x32xf32>
    %373 = tpu.matmul %372, %354, %cst_105 {dimension_numbers = #tpu.dot_dimension_numbers<[1], [0], [0], [1], [0, 0, 1, 1], [], []>} : vector<16x16xbf16>, vector<16x32xbf16>, vector<16x32xf32> -> vector<16x32xf32>
    %374 = arith.truncf %373 : vector<16x32xf32> to vector<16x32xbf16>
    %375 = vector.extract_strided_slice %34 {offsets = [64, 0], sizes = [32, 128], strides = [1, 1]} : vector<128x128xbf16> to vector<32x128xbf16>
    %cst_106 = arith.constant dense<0.000000e+00> : vector<16x128xf32>
    %376 = tpu.matmul %374, %375, %cst_106 {dimension_numbers = #tpu.dot_dimension_numbers<[1], [0], [0], [1], [0, 0, 1, 1], [], []>} : vector<16x32xbf16>, vector<32x128xbf16>, vector<16x128xf32> -> vector<16x128xf32>
    %377 = arith.addf %348, %376 : vector<16x128xf32>
    %378 = vector.extract_strided_slice %283 {offsets = [0, 96], sizes = [16, 32], strides = [1, 1]} : vector<16x128xf32> to vector<16x32xf32>
    %379 = arith.truncf %378 : vector<16x32xf32> to vector<16x32xbf16>
    %380 = vector.extract_strided_slice %284 {offsets = [0, 96], sizes = [16, 32], strides = [1, 1]} : vector<16x128xf32> to vector<16x32xf32>
    %381 = arith.truncf %380 : vector<16x32xf32> to vector<16x32xbf16>
    %382 = vector.extract_strided_slice %285 {offsets = [0, 96], sizes = [16, 32], strides = [1, 1]} : vector<16x128xf32> to vector<16x32xf32>
    %383 = arith.truncf %382 : vector<16x32xf32> to vector<16x32xbf16>
    %cst_107 = arith.constant dense<0.000000e+00> : vector<16x16xf32>
    %384 = tpu.matmul %379, %381, %cst_107 {dimension_numbers = #tpu.dot_dimension_numbers<[1], [1], [0], [0], [0, 0, 1, 0], [], []>} : vector<16x32xbf16>, vector<16x32xbf16>, vector<16x16xf32> -> vector<16x16xf32>
    %cst_108 = arith.constant 0.176776692 : f32
    %385 = vector.broadcast %cst_108 : f32 to vector<16x16xf32>
    %386 = arith.mulf %384, %385 : vector<16x16xf32>
    %cst_109 = arith.constant -1.000000e+09 : f32
    %387 = vector.shape_cast %289 : vector<1x16xi1> to vector<1x16xi1>
    %388 = vector.broadcast %387 : vector<1x16xi1> to vector<16x16xi1>
    %389 = vector.broadcast %cst_109 : f32 to vector<16x16xf32>
    %390 = arith.select %388, %389, %386 : vector<16x16xi1>, vector<16x16xf32>
    %cst_110 = arith.constant dense<0xFF800000> : vector<16xf32>
    %391 = vector.multi_reduction <maximumf>, %390, %cst_110 [1] : vector<16x16xf32> to vector<16xf32>
    %392 = vector.shape_cast %391 : vector<16xf32> to vector<16x1xf32>
    %393 = vector.broadcast %392 : vector<16x1xf32> to vector<16x16xf32>
    %394 = arith.subf %390, %393 : vector<16x16xf32>
    %395 = math.exp %394 : vector<16x16xf32>
    %cst_111 = arith.constant dense<0.000000e+00> : vector<16xf32>
    %396 = vector.multi_reduction <add>, %395, %cst_111 [1] : vector<16x16xf32> to vector<16xf32>
    %397 = vector.shape_cast %396 : vector<16xf32> to vector<16x1xf32>
    %398 = tpu.reciprocal %397 {approx = true} : vector<16x1xf32> -> vector<16x1xf32>
    %399 = vector.broadcast %398 : vector<16x1xf32> to vector<16x16xf32>
    %400 = arith.mulf %395, %399 : vector<16x16xf32>
    %401 = arith.truncf %400 : vector<16x16xf32> to vector<16x16xbf16>
    %cst_112 = arith.constant dense<0.000000e+00> : vector<16x32xf32>
    %402 = tpu.matmul %401, %383, %cst_112 {dimension_numbers = #tpu.dot_dimension_numbers<[1], [0], [0], [1], [0, 0, 1, 1], [], []>} : vector<16x16xbf16>, vector<16x32xbf16>, vector<16x32xf32> -> vector<16x32xf32>
    %403 = arith.truncf %402 : vector<16x32xf32> to vector<16x32xbf16>
    %404 = vector.extract_strided_slice %34 {offsets = [96, 0], sizes = [32, 128], strides = [1, 1]} : vector<128x128xbf16> to vector<32x128xbf16>
    %cst_113 = arith.constant dense<0.000000e+00> : vector<16x128xf32>
    %405 = tpu.matmul %403, %404, %cst_113 {dimension_numbers = #tpu.dot_dimension_numbers<[1], [0], [0], [1], [0, 0, 1, 1], [], []>} : vector<16x32xbf16>, vector<32x128xbf16>, vector<16x128xf32> -> vector<16x128xf32>
    %406 = arith.addf %377, %405 : vector<16x128xf32>
    %407 = vector.extract_strided_slice %31 {offsets = [48, 0], sizes = [16, 128], strides = [1, 1]} : vector<64x128xf32> to vector<16x128xf32>
    %408 = vector.extract_strided_slice %32 {offsets = [48, 0], sizes = [16, 128], strides = [1, 1]} : vector<64x128xf32> to vector<16x128xf32>
    %409 = vector.extract_strided_slice %33 {offsets = [48, 0], sizes = [16, 128], strides = [1, 1]} : vector<64x128xf32> to vector<16x128xf32>
    %c3 = arith.constant 3 : index
    %c0_114 = arith.constant 0 : index
    %c0_115 = arith.constant 0 : index
    %410 = vector.load %arg2[%c3, %c0_114, %c0_115] : memref<4x1x16xf32, #tpu.memory_space<vmem>>, vector<1x1x16xf32>
    %411 = vector.shape_cast %410 : vector<1x1x16xf32> to vector<1x16xf32>
    %cst_116 = arith.constant 0.000000e+00 : f32
    %412 = vector.broadcast %cst_116 : f32 to vector<1x16xf32>
    %413 = arith.cmpf oeq, %411, %412 : vector<1x16xf32>
    %cst_117 = arith.constant 0.000000e+00 : f32
    %414 = vector.broadcast %cst_117 : f32 to vector<16x128xf32>
    %415 = vector.extract_strided_slice %407 {offsets = [0, 0], sizes = [16, 32], strides = [1, 1]} : vector<16x128xf32> to vector<16x32xf32>
    %416 = arith.truncf %415 : vector<16x32xf32> to vector<16x32xbf16>
    %417 = vector.extract_strided_slice %408 {offsets = [0, 0], sizes = [16, 32], strides = [1, 1]} : vector<16x128xf32> to vector<16x32xf32>
    %418 = arith.truncf %417 : vector<16x32xf32> to vector<16x32xbf16>
    %419 = vector.extract_strided_slice %409 {offsets = [0, 0], sizes = [16, 32], strides = [1, 1]} : vector<16x128xf32> to vector<16x32xf32>
    %420 = arith.truncf %419 : vector<16x32xf32> to vector<16x32xbf16>
    %cst_118 = arith.constant dense<0.000000e+00> : vector<16x16xf32>
    %421 = tpu.matmul %416, %418, %cst_118 {dimension_numbers = #tpu.dot_dimension_numbers<[1], [1], [0], [0], [0, 0, 1, 0], [], []>} : vector<16x32xbf16>, vector<16x32xbf16>, vector<16x16xf32> -> vector<16x16xf32>
    %cst_119 = arith.constant 0.176776692 : f32
    %422 = vector.broadcast %cst_119 : f32 to vector<16x16xf32>
    %423 = arith.mulf %421, %422 : vector<16x16xf32>
    %cst_120 = arith.constant -1.000000e+09 : f32
    %424 = vector.shape_cast %413 : vector<1x16xi1> to vector<1x16xi1>
    %425 = vector.broadcast %424 : vector<1x16xi1> to vector<16x16xi1>
    %426 = vector.broadcast %cst_120 : f32 to vector<16x16xf32>
    %427 = arith.select %425, %426, %423 : vector<16x16xi1>, vector<16x16xf32>
    %cst_121 = arith.constant dense<0xFF800000> : vector<16xf32>
    %428 = vector.multi_reduction <maximumf>, %427, %cst_121 [1] : vector<16x16xf32> to vector<16xf32>
    %429 = vector.shape_cast %428 : vector<16xf32> to vector<16x1xf32>
    %430 = vector.broadcast %429 : vector<16x1xf32> to vector<16x16xf32>
    %431 = arith.subf %427, %430 : vector<16x16xf32>
    %432 = math.exp %431 : vector<16x16xf32>
    %cst_122 = arith.constant dense<0.000000e+00> : vector<16xf32>
    %433 = vector.multi_reduction <add>, %432, %cst_122 [1] : vector<16x16xf32> to vector<16xf32>
    %434 = vector.shape_cast %433 : vector<16xf32> to vector<16x1xf32>
    %435 = tpu.reciprocal %434 {approx = true} : vector<16x1xf32> -> vector<16x1xf32>
    %436 = vector.broadcast %435 : vector<16x1xf32> to vector<16x16xf32>
    %437 = arith.mulf %432, %436 : vector<16x16xf32>
    %438 = arith.truncf %437 : vector<16x16xf32> to vector<16x16xbf16>
    %cst_123 = arith.constant dense<0.000000e+00> : vector<16x32xf32>
    %439 = tpu.matmul %438, %420, %cst_123 {dimension_numbers = #tpu.dot_dimension_numbers<[1], [0], [0], [1], [0, 0, 1, 1], [], []>} : vector<16x16xbf16>, vector<16x32xbf16>, vector<16x32xf32> -> vector<16x32xf32>
    %440 = arith.truncf %439 : vector<16x32xf32> to vector<16x32xbf16>
    %441 = vector.extract_strided_slice %34 {offsets = [0, 0], sizes = [32, 128], strides = [1, 1]} : vector<128x128xbf16> to vector<32x128xbf16>
    %cst_124 = arith.constant dense<0.000000e+00> : vector<16x128xf32>
    %442 = tpu.matmul %440, %441, %cst_124 {dimension_numbers = #tpu.dot_dimension_numbers<[1], [0], [0], [1], [0, 0, 1, 1], [], []>} : vector<16x32xbf16>, vector<32x128xbf16>, vector<16x128xf32> -> vector<16x128xf32>
    %443 = arith.addf %414, %442 : vector<16x128xf32>
    %444 = vector.extract_strided_slice %407 {offsets = [0, 32], sizes = [16, 32], strides = [1, 1]} : vector<16x128xf32> to vector<16x32xf32>
    %445 = arith.truncf %444 : vector<16x32xf32> to vector<16x32xbf16>
    %446 = vector.extract_strided_slice %408 {offsets = [0, 32], sizes = [16, 32], strides = [1, 1]} : vector<16x128xf32> to vector<16x32xf32>
    %447 = arith.truncf %446 : vector<16x32xf32> to vector<16x32xbf16>
    %448 = vector.extract_strided_slice %409 {offsets = [0, 32], sizes = [16, 32], strides = [1, 1]} : vector<16x128xf32> to vector<16x32xf32>
    %449 = arith.truncf %448 : vector<16x32xf32> to vector<16x32xbf16>
    %cst_125 = arith.constant dense<0.000000e+00> : vector<16x16xf32>
    %450 = tpu.matmul %445, %447, %cst_125 {dimension_numbers = #tpu.dot_dimension_numbers<[1], [1], [0], [0], [0, 0, 1, 0], [], []>} : vector<16x32xbf16>, vector<16x32xbf16>, vector<16x16xf32> -> vector<16x16xf32>
    %cst_126 = arith.constant 0.176776692 : f32
    %451 = vector.broadcast %cst_126 : f32 to vector<16x16xf32>
    %452 = arith.mulf %450, %451 : vector<16x16xf32>
    %cst_127 = arith.constant -1.000000e+09 : f32
    %453 = vector.shape_cast %413 : vector<1x16xi1> to vector<1x16xi1>
    %454 = vector.broadcast %453 : vector<1x16xi1> to vector<16x16xi1>
    %455 = vector.broadcast %cst_127 : f32 to vector<16x16xf32>
    %456 = arith.select %454, %455, %452 : vector<16x16xi1>, vector<16x16xf32>
    %cst_128 = arith.constant dense<0xFF800000> : vector<16xf32>
    %457 = vector.multi_reduction <maximumf>, %456, %cst_128 [1] : vector<16x16xf32> to vector<16xf32>
    %458 = vector.shape_cast %457 : vector<16xf32> to vector<16x1xf32>
    %459 = vector.broadcast %458 : vector<16x1xf32> to vector<16x16xf32>
    %460 = arith.subf %456, %459 : vector<16x16xf32>
    %461 = math.exp %460 : vector<16x16xf32>
    %cst_129 = arith.constant dense<0.000000e+00> : vector<16xf32>
    %462 = vector.multi_reduction <add>, %461, %cst_129 [1] : vector<16x16xf32> to vector<16xf32>
    %463 = vector.shape_cast %462 : vector<16xf32> to vector<16x1xf32>
    %464 = tpu.reciprocal %463 {approx = true} : vector<16x1xf32> -> vector<16x1xf32>
    %465 = vector.broadcast %464 : vector<16x1xf32> to vector<16x16xf32>
    %466 = arith.mulf %461, %465 : vector<16x16xf32>
    %467 = arith.truncf %466 : vector<16x16xf32> to vector<16x16xbf16>
    %cst_130 = arith.constant dense<0.000000e+00> : vector<16x32xf32>
    %468 = tpu.matmul %467, %449, %cst_130 {dimension_numbers = #tpu.dot_dimension_numbers<[1], [0], [0], [1], [0, 0, 1, 1], [], []>} : vector<16x16xbf16>, vector<16x32xbf16>, vector<16x32xf32> -> vector<16x32xf32>
    %469 = arith.truncf %468 : vector<16x32xf32> to vector<16x32xbf16>
    %470 = vector.extract_strided_slice %34 {offsets = [32, 0], sizes = [32, 128], strides = [1, 1]} : vector<128x128xbf16> to vector<32x128xbf16>
    %cst_131 = arith.constant dense<0.000000e+00> : vector<16x128xf32>
    %471 = tpu.matmul %469, %470, %cst_131 {dimension_numbers = #tpu.dot_dimension_numbers<[1], [0], [0], [1], [0, 0, 1, 1], [], []>} : vector<16x32xbf16>, vector<32x128xbf16>, vector<16x128xf32> -> vector<16x128xf32>
    %472 = arith.addf %443, %471 : vector<16x128xf32>
    %473 = vector.extract_strided_slice %407 {offsets = [0, 64], sizes = [16, 32], strides = [1, 1]} : vector<16x128xf32> to vector<16x32xf32>
    %474 = arith.truncf %473 : vector<16x32xf32> to vector<16x32xbf16>
    %475 = vector.extract_strided_slice %408 {offsets = [0, 64], sizes = [16, 32], strides = [1, 1]} : vector<16x128xf32> to vector<16x32xf32>
    %476 = arith.truncf %475 : vector<16x32xf32> to vector<16x32xbf16>
    %477 = vector.extract_strided_slice %409 {offsets = [0, 64], sizes = [16, 32], strides = [1, 1]} : vector<16x128xf32> to vector<16x32xf32>
    %478 = arith.truncf %477 : vector<16x32xf32> to vector<16x32xbf16>
    %cst_132 = arith.constant dense<0.000000e+00> : vector<16x16xf32>
    %479 = tpu.matmul %474, %476, %cst_132 {dimension_numbers = #tpu.dot_dimension_numbers<[1], [1], [0], [0], [0, 0, 1, 0], [], []>} : vector<16x32xbf16>, vector<16x32xbf16>, vector<16x16xf32> -> vector<16x16xf32>
    %cst_133 = arith.constant 0.176776692 : f32
    %480 = vector.broadcast %cst_133 : f32 to vector<16x16xf32>
    %481 = arith.mulf %479, %480 : vector<16x16xf32>
    %cst_134 = arith.constant -1.000000e+09 : f32
    %482 = vector.shape_cast %413 : vector<1x16xi1> to vector<1x16xi1>
    %483 = vector.broadcast %482 : vector<1x16xi1> to vector<16x16xi1>
    %484 = vector.broadcast %cst_134 : f32 to vector<16x16xf32>
    %485 = arith.select %483, %484, %481 : vector<16x16xi1>, vector<16x16xf32>
    %cst_135 = arith.constant dense<0xFF800000> : vector<16xf32>
    %486 = vector.multi_reduction <maximumf>, %485, %cst_135 [1] : vector<16x16xf32> to vector<16xf32>
    %487 = vector.shape_cast %486 : vector<16xf32> to vector<16x1xf32>
    %488 = vector.broadcast %487 : vector<16x1xf32> to vector<16x16xf32>
    %489 = arith.subf %485, %488 : vector<16x16xf32>
    %490 = math.exp %489 : vector<16x16xf32>
    %cst_136 = arith.constant dense<0.000000e+00> : vector<16xf32>
    %491 = vector.multi_reduction <add>, %490, %cst_136 [1] : vector<16x16xf32> to vector<16xf32>
    %492 = vector.shape_cast %491 : vector<16xf32> to vector<16x1xf32>
    %493 = tpu.reciprocal %492 {approx = true} : vector<16x1xf32> -> vector<16x1xf32>
    %494 = vector.broadcast %493 : vector<16x1xf32> to vector<16x16xf32>
    %495 = arith.mulf %490, %494 : vector<16x16xf32>
    %496 = arith.truncf %495 : vector<16x16xf32> to vector<16x16xbf16>
    %cst_137 = arith.constant dense<0.000000e+00> : vector<16x32xf32>
    %497 = tpu.matmul %496, %478, %cst_137 {dimension_numbers = #tpu.dot_dimension_numbers<[1], [0], [0], [1], [0, 0, 1, 1], [], []>} : vector<16x16xbf16>, vector<16x32xbf16>, vector<16x32xf32> -> vector<16x32xf32>
    %498 = arith.truncf %497 : vector<16x32xf32> to vector<16x32xbf16>
    %499 = vector.extract_strided_slice %34 {offsets = [64, 0], sizes = [32, 128], strides = [1, 1]} : vector<128x128xbf16> to vector<32x128xbf16>
    %cst_138 = arith.constant dense<0.000000e+00> : vector<16x128xf32>
    %500 = tpu.matmul %498, %499, %cst_138 {dimension_numbers = #tpu.dot_dimension_numbers<[1], [0], [0], [1], [0, 0, 1, 1], [], []>} : vector<16x32xbf16>, vector<32x128xbf16>, vector<16x128xf32> -> vector<16x128xf32>
    %501 = arith.addf %472, %500 : vector<16x128xf32>
    %502 = vector.extract_strided_slice %407 {offsets = [0, 96], sizes = [16, 32], strides = [1, 1]} : vector<16x128xf32> to vector<16x32xf32>
    %503 = arith.truncf %502 : vector<16x32xf32> to vector<16x32xbf16>
    %504 = vector.extract_strided_slice %408 {offsets = [0, 96], sizes = [16, 32], strides = [1, 1]} : vector<16x128xf32> to vector<16x32xf32>
    %505 = arith.truncf %504 : vector<16x32xf32> to vector<16x32xbf16>
    %506 = vector.extract_strided_slice %409 {offsets = [0, 96], sizes = [16, 32], strides = [1, 1]} : vector<16x128xf32> to vector<16x32xf32>
    %507 = arith.truncf %506 : vector<16x32xf32> to vector<16x32xbf16>
    %cst_139 = arith.constant dense<0.000000e+00> : vector<16x16xf32>
    %508 = tpu.matmul %503, %505, %cst_139 {dimension_numbers = #tpu.dot_dimension_numbers<[1], [1], [0], [0], [0, 0, 1, 0], [], []>} : vector<16x32xbf16>, vector<16x32xbf16>, vector<16x16xf32> -> vector<16x16xf32>
    %cst_140 = arith.constant 0.176776692 : f32
    %509 = vector.broadcast %cst_140 : f32 to vector<16x16xf32>
    %510 = arith.mulf %508, %509 : vector<16x16xf32>
    %cst_141 = arith.constant -1.000000e+09 : f32
    %511 = vector.shape_cast %413 : vector<1x16xi1> to vector<1x16xi1>
    %512 = vector.broadcast %511 : vector<1x16xi1> to vector<16x16xi1>
    %513 = vector.broadcast %cst_141 : f32 to vector<16x16xf32>
    %514 = arith.select %512, %513, %510 : vector<16x16xi1>, vector<16x16xf32>
    %cst_142 = arith.constant dense<0xFF800000> : vector<16xf32>
    %515 = vector.multi_reduction <maximumf>, %514, %cst_142 [1] : vector<16x16xf32> to vector<16xf32>
    %516 = vector.shape_cast %515 : vector<16xf32> to vector<16x1xf32>
    %517 = vector.broadcast %516 : vector<16x1xf32> to vector<16x16xf32>
    %518 = arith.subf %514, %517 : vector<16x16xf32>
    %519 = math.exp %518 : vector<16x16xf32>
    %cst_143 = arith.constant dense<0.000000e+00> : vector<16xf32>
    %520 = vector.multi_reduction <add>, %519, %cst_143 [1] : vector<16x16xf32> to vector<16xf32>
    %521 = vector.shape_cast %520 : vector<16xf32> to vector<16x1xf32>
    %522 = tpu.reciprocal %521 {approx = true} : vector<16x1xf32> -> vector<16x1xf32>
    %523 = vector.broadcast %522 : vector<16x1xf32> to vector<16x16xf32>
    %524 = arith.mulf %519, %523 : vector<16x16xf32>
    %525 = arith.truncf %524 : vector<16x16xf32> to vector<16x16xbf16>
    %cst_144 = arith.constant dense<0.000000e+00> : vector<16x32xf32>
    %526 = tpu.matmul %525, %507, %cst_144 {dimension_numbers = #tpu.dot_dimension_numbers<[1], [0], [0], [1], [0, 0, 1, 1], [], []>} : vector<16x16xbf16>, vector<16x32xbf16>, vector<16x32xf32> -> vector<16x32xf32>
    %527 = arith.truncf %526 : vector<16x32xf32> to vector<16x32xbf16>
    %528 = vector.extract_strided_slice %34 {offsets = [96, 0], sizes = [32, 128], strides = [1, 1]} : vector<128x128xbf16> to vector<32x128xbf16>
    %cst_145 = arith.constant dense<0.000000e+00> : vector<16x128xf32>
    %529 = tpu.matmul %527, %528, %cst_145 {dimension_numbers = #tpu.dot_dimension_numbers<[1], [0], [0], [1], [0, 0, 1, 1], [], []>} : vector<16x32xbf16>, vector<32x128xbf16>, vector<16x128xf32> -> vector<16x128xf32>
    %530 = arith.addf %501, %529 : vector<16x128xf32>
    %531 = tpu.concatenate %158, %282, %406, %530 in 0 : vector<16x128xf32>, vector<16x128xf32>, vector<16x128xf32>, vector<16x128xf32> -> vector<64x128xf32>
    %c0_146 = arith.constant 0 : index
    %c0_147 = arith.constant 0 : index
    %532 = vector.load %arg8[%c0_146, %c0_147] : memref<1x128xf32, #tpu.memory_space<vmem>>, vector<1x128xf32>
    %533 = vector.broadcast %532 : vector<1x128xf32> to vector<64x128xf32>
    %534 = arith.addf %531, %533 : vector<64x128xf32>
    %535 = arith.addf %1, %534 : vector<64x128xf32>
    %c0_148 = arith.constant 0 : index
    %c0_149 = arith.constant 0 : index
    %536 = vector.load %arg9[%c0_148, %c0_149] : memref<1x128xf32, #tpu.memory_space<vmem>>, vector<1x128xf32>
    %c0_150 = arith.constant 0 : index
    %c0_151 = arith.constant 0 : index
    %537 = vector.load %arg10[%c0_150, %c0_151] : memref<1x128xf32, #tpu.memory_space<vmem>>, vector<1x128xf32>
    %cst_152 = arith.constant dense<0.000000e+00> : vector<64xf32>
    %538 = vector.multi_reduction <add>, %535, %cst_152 [1] : vector<64x128xf32> to vector<64xf32>
    %539 = vector.shape_cast %538 : vector<64xf32> to vector<64x1xf32>
    %cst_153 = arith.constant 1.280000e+02 : f32
    %540 = vector.broadcast %cst_153 : f32 to vector<64x1xf32>
    %541 = arith.divf %539, %540 : vector<64x1xf32>
    %542 = vector.broadcast %541 : vector<64x1xf32> to vector<64x128xf32>
    %543 = arith.subf %535, %542 : vector<64x128xf32>
    %544 = arith.mulf %543, %543 : vector<64x128xf32>
    %cst_154 = arith.constant dense<0.000000e+00> : vector<64xf32>
    %545 = vector.multi_reduction <add>, %544, %cst_154 [1] : vector<64x128xf32> to vector<64xf32>
    %546 = vector.shape_cast %545 : vector<64xf32> to vector<64x1xf32>
    %cst_155 = arith.constant 1.270000e+02 : f32
    %547 = vector.broadcast %cst_155 : f32 to vector<64x1xf32>
    %548 = arith.divf %546, %547 : vector<64x1xf32>
    %549 = math.sqrt %548 : vector<64x1xf32>
    %cst_156 = arith.constant 9.99999997E-7 : f32
    %550 = vector.broadcast %cst_156 : f32 to vector<64x1xf32>
    %551 = arith.addf %549, %550 : vector<64x1xf32>
    %552 = tpu.reciprocal %551 {approx = true} : vector<64x1xf32> -> vector<64x1xf32>
    %553 = vector.broadcast %536 : vector<1x128xf32> to vector<64x128xf32>
    %554 = arith.mulf %553, %543 : vector<64x128xf32>
    %555 = vector.broadcast %552 : vector<64x1xf32> to vector<64x128xf32>
    %556 = arith.mulf %554, %555 : vector<64x128xf32>
    %557 = vector.broadcast %537 : vector<1x128xf32> to vector<64x128xf32>
    %558 = arith.addf %556, %557 : vector<64x128xf32>
    %559 = arith.truncf %558 : vector<64x128xf32> to vector<64x128xbf16>
    %c0_157 = arith.constant 0 : index
    %c0_158 = arith.constant 0 : index
    %560 = vector.load %arg11[%c0_157, %c0_158] : memref<128x256xbf16, #tpu.memory_space<vmem>>, vector<128x256xbf16>
    %cst_159 = arith.constant dense<0.000000e+00> : vector<64x256xf32>
    %561 = tpu.matmul %559, %560, %cst_159 {dimension_numbers = #tpu.dot_dimension_numbers<[1], [0], [0], [1], [0, 0, 1, 1], [], []>} : vector<64x128xbf16>, vector<128x256xbf16>, vector<64x256xf32> -> vector<64x256xf32>
    %c0_160 = arith.constant 0 : index
    %c0_161 = arith.constant 0 : index
    %562 = vector.load %arg12[%c0_160, %c0_161] : memref<1x256xf32, #tpu.memory_space<vmem>>, vector<1x256xf32>
    %563 = vector.broadcast %562 : vector<1x256xf32> to vector<64x256xf32>
    %564 = arith.addf %561, %563 : vector<64x256xf32>
    %cst_162 = arith.constant 0.000000e+00 : f32
    %565 = vector.broadcast %cst_162 : f32 to vector<64x256xf32>
    %566 = arith.maximumf %564, %565 : vector<64x256xf32>
    %567 = arith.truncf %566 : vector<64x256xf32> to vector<64x256xbf16>
    %c0_163 = arith.constant 0 : index
    %c0_164 = arith.constant 0 : index
    %568 = vector.load %arg13[%c0_163, %c0_164] : memref<256x128xbf16, #tpu.memory_space<vmem>>, vector<256x128xbf16>
    %cst_165 = arith.constant dense<0.000000e+00> : vector<64x128xf32>
    %569 = tpu.matmul %567, %568, %cst_165 {dimension_numbers = #tpu.dot_dimension_numbers<[1], [0], [0], [1], [0, 0, 1, 1], [], []>} : vector<64x256xbf16>, vector<256x128xbf16>, vector<64x128xf32> -> vector<64x128xf32>
    %c0_166 = arith.constant 0 : index
    %c0_167 = arith.constant 0 : index
    %570 = vector.load %arg14[%c0_166, %c0_167] : memref<1x128xf32, #tpu.memory_space<vmem>>, vector<1x128xf32>
    %571 = vector.broadcast %570 : vector<1x128xf32> to vector<64x128xf32>
    %572 = arith.addf %569, %571 : vector<64x128xf32>
    %573 = arith.addf %535, %572 : vector<64x128xf32>
    %574 = vector.shape_cast %573 : vector<64x128xf32> to vector<4x16x128xf32>
    %c0_168 = arith.constant 0 : index
    %c0_169 = arith.constant 0 : index
    %c0_170 = arith.constant 0 : index
    %575 = vector.load %arg15[%c0_168, %c0_169, %c0_170] : memref<4x16x128xf32, #tpu.memory_space<vmem>>, vector<4x16x128xf32>
    tpu.vector_store %arg15[%c0_168, %c0_169, %c0_170], %574 {strides = array<i32>} : memref<4x16x128xf32, #tpu.memory_space<vmem>>, vector<4x16x128xf32>,
    return
  }
  func.func @transform_0(%arg0: i32) -> (i32, i32, i32) {
    %c0_i32 = arith.constant 0 : i32
    %c0_i32_0 = arith.constant 0 : i32
    %c0_i32_1 = arith.constant 0 : i32
    return %arg0, %c0_i32, %c0_i32_0 : i32, i32, i32
  }
  func.func @transform_1(%arg0: i32) -> (i32, i32, i32) {
    %c0_i32 = arith.constant 0 : i32
    %c0_i32_0 = arith.constant 0 : i32
    %c0_i32_1 = arith.constant 0 : i32
    return %arg0, %c0_i32, %c0_i32_0 : i32, i32, i32
  }
  func.func @transform_2(%arg0: i32) -> (i32, i32) {
    %c0_i32 = arith.constant 0 : i32
    %c0_i32_0 = arith.constant 0 : i32
    %c0_i32_1 = arith.constant 0 : i32
    return %c0_i32, %c0_i32_0 : i32, i32
  }
  func.func @transform_3(%arg0: i32) -> (i32, i32) {
    %c0_i32 = arith.constant 0 : i32
    %c0_i32_0 = arith.constant 0 : i32
    %c0_i32_1 = arith.constant 0 : i32
    return %c0_i32, %c0_i32_0 : i32, i32
  }
  func.func @transform_4(%arg0: i32) -> (i32, i32) {
    %c0_i32 = arith.constant 0 : i32
    %c0_i32_0 = arith.constant 0 : i32
    %c0_i32_1 = arith.constant 0 : i32
    return %c0_i32, %c0_i32_0 : i32, i32
  }
  func.func @transform_5(%arg0: i32) -> (i32, i32) {
    %c0_i32 = arith.constant 0 : i32
    %c0_i32_0 = arith.constant 0 : i32
    %c0_i32_1 = arith.constant 0 : i32
    return %c0_i32, %c0_i32_0 : i32, i32
  }
  func.func @transform_6(%arg0: i32) -> (i32, i32) {
    %c0_i32 = arith.constant 0 : i32
    %c0_i32_0 = arith.constant 0 : i32
    %c0_i32_1 = arith.constant 0 : i32
    return %c0_i32, %c0_i32_0 : i32, i32
  }
  func.func @transform_7(%arg0: i32) -> (i32, i32) {
    %c0_i32 = arith.constant 0 : i32
    %c0_i32_0 = arith.constant 0 : i32
    %c0_i32_1 = arith.constant 0 : i32
    return %c0_i32, %c0_i32_0 : i32, i32
  }
  func.func @transform_8(%arg0: i32) -> (i32, i32) {
    %c0_i32 = arith.constant 0 : i32
    %c0_i32_0 = arith.constant 0 : i32
    %c0_i32_1 = arith.constant 0 : i32
    return %c0_i32, %c0_i32_0 : i32, i32
  }
  func.func @transform_9(%arg0: i32) -> (i32, i32) {
    %c0_i32 = arith.constant 0 : i32
    %c0_i32_0 = arith.constant 0 : i32
    %c0_i32_1 = arith.constant 0 : i32
    return %c0_i32, %c0_i32_0 : i32, i32
  }
  func.func @transform_10(%arg0: i32) -> (i32, i32) {
    %c0_i32 = arith.constant 0 : i32
    %c0_i32_0 = arith.constant 0 : i32
    %c0_i32_1 = arith.constant 0 : i32
    return %c0_i32, %c0_i32_0 : i32, i32
  }
  func.func @transform_11(%arg0: i32) -> (i32, i32) {
    %c0_i32 = arith.constant 0 : i32
    %c0_i32_0 = arith.constant 0 : i32
    %c0_i32_1 = arith.constant 0 : i32
    return %c0_i32, %c0_i32_0 : i32, i32
  }
  func.func @transform_12(%arg0: i32) -> (i32, i32) {
    %c0_i32 = arith.constant 0 : i32
    %c0_i32_0 = arith.constant 0 : i32
    %c0_i32_1 = arith.constant 0 : i32
    return %c0_i32, %c0_i32_0 : i32, i32
  }
  func.func @transform_13(%arg0: i32) -> (i32, i32) {
    %c0_i32 = arith.constant 0 : i32
    %c0_i32_0 = arith.constant 0 : i32
    %c0_i32_1 = arith.constant 0 : i32
    return %c0_i32, %c0_i32_0 : i32, i32
  }
  func.func @transform_14(%arg0: i32) -> (i32, i32, i32) {
    %c0_i32 = arith.constant 0 : i32
    %c0_i32_0 = arith.constant 0 : i32
    %c0_i32_1 = arith.constant 0 : i32
    return %arg0, %c0_i32, %c0_i32_0 : i32, i32, i32
  }
}

</mosaic_0001>

<llo_original>
// kernel: tpu_custom_call.1
$region0: #{tpu_custom_call.1}
  #allocation0 [shape = 'u32[]', space=smem, size = 0x4, offset = 0x4, fixed_abs, tag = 'smem constant byte address 0x4 - core index']
  #allocation1 [shape = 'u32[144,128]{1,0:T(1,128)}', space=vmem, size = 0x12000, scoped, tag = 'internal scratch']
  %s0 = inlined_call_operand.hbm [shape: f32[8,16,128], index: 0, kind: input, shape index: {}]
  %s1 = inlined_call_operand.hbm [shape: f32[8,1,16], index: 1, kind: input, shape index: {}]
  %s2 = inlined_call_operand.hbm [shape: f32[1,128], index: 2, kind: input, shape index: {}]
  %s3 = inlined_call_operand.hbm [shape: f32[1,128], index: 3, kind: input, shape index: {}]
  %s4 = inlined_call_operand.hbm [shape: bf16[128,384], index: 4, kind: input, shape index: {}]
  %s5 = inlined_call_operand.vmem [shape: f32[1,384], index: 5, kind: input, shape index: {}]
  %s6 = inlined_call_operand.hbm [shape: bf16[128,128], index: 6, kind: input, shape index: {}]
  %s7 = inlined_call_operand.vmem [shape: f32[1,128], index: 7, kind: input, shape index: {}]
  %s8 = inlined_call_operand.vmem [shape: f32[1,128], index: 8, kind: input, shape index: {}]
  %s9 = inlined_call_operand.vmem [shape: f32[1,128], index: 9, kind: input, shape index: {}]
  %s10 = inlined_call_operand.hbm [shape: bf16[128,256], index: 10, kind: input, shape index: {}]
  %s11 = inlined_call_operand.vmem [shape: f32[1,256], index: 11, kind: input, shape index: {}]
  %s12 = inlined_call_operand.hbm [shape: bf16[256,128], index: 12, kind: input, shape index: {}]
  %s13 = inlined_call_operand.vmem [shape: f32[1,128], index: 13, kind: input, shape index: {}]
  %s14 = inlined_call_operand.hbm [shape: f32[8,16,128], index: 14, kind: output, shape index: {}]
  %s15 = sld [smem:[#allocation0]]
  $region121: #{tpu_custom_call.1} parent=0
    _
  %s17 = ssub.s32 1, %s15
  %s18 = scalar_select 0, %s17, %s15
  $region1: #{tpu_custom_call.1} parent=0
    #allocation2 [shape = 'u8[65536]{0}', space=vmem, size = 0x10000, scoped, tag = 'input window, operand 0']
    #allocation3 [shape = 's32[2]{0}', space=sflag, size = 0x8, scoped, tag = 'scoped memory for tpu_custom_call.1']
    #allocation4 [shape = 's32[2]{0}', space=sflag, size = 0x8, scoped, tag = 'scoped memory for tpu_custom_call.1']
    #allocation5 [shape = 'u8[4096]{0}', space=vmem, size = 0x1000, scoped, tag = 'input window, operand 1']
    #allocation6 [shape = 's32[2]{0}', space=sflag, size = 0x8, scoped, tag = 'scoped memory for tpu_custom_call.1']
    #allocation7 [shape = 'u8[512]{0}', space=vmem, size = 0x400, scoped, tag = 'input window, operand 2, single buffered']
    #allocation8 [shape = 'u8[512]{0}', space=vmem, size = 0x400, scoped, tag = 'input window, operand 3, single buffered']
    #allocation9 [shape = 's32[1]{0}', space=sflag, size = 0x4, scoped, tag = 'scoped memory for tpu_custom_call.1']
    #allocation10 [shape = 'u8[98304]{0}', space=vmem, size = 0x18000, scoped, tag = 'input window, operand 4, single buffered']
    #allocation11 [shape = 'u8[32768]{0}', space=vmem, size = 0x8000, scoped, tag = 'input window, operand 6, single buffered']
    #allocation12 [shape = 's32[1]{0}', space=sflag, size = 0x4, scoped, tag = 'scoped memory for tpu_custom_call.1']
    #allocation13 [shape = 'u8[65536]{0}', space=vmem, size = 0x10000, scoped, tag = 'input window, operand 10, single buffered']
    #allocation14 [shape = 'u8[65536]{0}', space=vmem, size = 0x10000, scoped, tag = 'input window, operand 12, single buffered']
    #allocation15 [shape = 's32[1]{0}', space=sflag, size = 0x4, scoped, tag = 'scoped memory for tpu_custom_call.1']
    #allocation16 [shape = 'u8[65536]{0}', space=vmem, size = 0x10000, scoped, tag = 'output window, operand 0']
    %19 = vsyncpa [#allocation3], 0
    %s20 = scalar_lea.sflag [#allocation3], 1
    %21 = vsyncpa %s20, 0
    %22 = vsyncpa [#allocation6], 0
    %s23 = scalar_lea.sflag [#allocation6], 1
    %24 = vsyncpa %s23, 0
    %25 = vsyncpa [#allocation9], 0
    %26 = vsyncpa [#allocation12], 0
    %27 = vsyncpa [#allocation15], 0
    %28 = vsyncpa [#allocation4], 0
    %s29 = scalar_lea.sflag [#allocation4], 1
    %30 = vsyncpa %s29, 0
    loop: start=0, step=1, limit=4
    $region2: #{tpu_custom_call.1} parent=1 // loop_pre_header
      _
    $region3: #{tpu_custom_call.1} parent=1 // loop_header
      %s32 = sphi 0, %s36
      %p33 = scmp.ge.s32.totalorder %s32, 4
      %s42 = sphi 0, %s44
      %s45 = sphi 0, %s42
      %s46 = sphi 0, %s45
      %s62 = sphi 0, %s46
      %s68 = sphi 0, %s70
      %s71 = sphi 0, %s68
      %s72 = sphi 0, %s71
      %s88 = sphi 0, %s72
      %s92 = sphi 0, %s92
      %s94 = sphi 0, %s92
      %s95 = sphi 0, %s94
      %s109 = sphi 0, %s95
      %s113 = sphi 0, %s113
      %s115 = sphi 0, %s113
      %s116 = sphi 0, %s115
      %s130 = sphi 0, %s116
      %s134 = sphi 0, %s134
      %s136 = sphi 0, %s134
      %s137 = sphi 0, %s136
      %s151 = sphi 0, %s137
      %s155 = sphi 0, %s155
      %s157 = sphi 0, %s155
      %s158 = sphi 0, %s157
      %s172 = sphi 0, %s158
      %s176 = sphi 0, %s176
      %s178 = sphi 0, %s176
      %s179 = sphi 0, %s178
      %s193 = sphi 0, %s179
      %s197 = sphi 0, %s197
      %s199 = sphi 0, %s197
      %s200 = sphi 0, %s199
      %s214 = sphi 0, %s200
      %s218 = sphi 0, %s218
      %s220 = sphi 0, %s218
      %s221 = sphi 0, %s220
      %s235 = sphi 0, %s221
      %s239 = sphi 0, %s239
      %s241 = sphi 0, %s239
      %s242 = sphi 0, %s241
      %s256 = sphi 0, %s242
      %s260 = sphi 0, %s260
      %s262 = sphi 0, %s260
      %s263 = sphi 0, %s262
      %s277 = sphi 0, %s263
      %s281 = sphi 0, %s281
      %s283 = sphi 0, %s281
      %s284 = sphi 0, %s283
      %s298 = sphi 0, %s284
      %s302 = sphi 0, %s302
      %s304 = sphi 0, %s302
      %s305 = sphi 0, %s304
      %s319 = sphi 0, %s305
      %s323 = sphi 0, %s323
      %s325 = sphi 0, %s323
      %s326 = sphi 0, %s325
      %s340 = sphi 0, %s326
      %s346 = sphi 0, %s348
      %s349 = sphi 0, %s346
      %s350 = sphi 0, %s349
      %s366 = sphi 0, %s350
    $region4: #{tpu_custom_call.1} parent=1 // loop_header_branch
      %35 = sbr.rel (%p33) target = $region8
    $region5: #{tpu_custom_call.1} parent=1 // loop_body
      %s37 = ssub.s32 %s32, 1
      %s38 = ssub.s32 %s32, 2
      %s39 = sadd.s32 %s32, 1
      %s40 = ssub.s32 %s32, %s39
      %p41 = scmp.eq.s32.totalorder %s40, 0
      %s43 = sadd.s32 %s42, 1
      %s44 = scalar_select %p41, %s42, %s43
      %p47 = pneg %p41
      %p48 = scmp.eq.s32.totalorder %s32, 1
      %p49 = por %p47, %p48
      %p50 = scmp.ne.s32.totalorder %s42, %s45
      %p51 = scmp.eq.s32.totalorder %s32, 0
      %p52 = por %p50, %p51
      %p53 = scmp.ne.s32.totalorder %s42, %s45
      %p54 = scmp.eq.s32.totalorder %s37, 1
      %p55 = por %p53, %p54
      %p56 = scmp.ne.s32.totalorder %s45, %s46
      %p57 = scmp.eq.s32.totalorder %s37, 0
      %p58 = por %p56, %p57
      %p59 = scmp.ne.s32.totalorder %s45, %s46
      %p60 = scmp.eq.s32.totalorder %s38, 1
      %p61 = por %p59, %p60
      %p63 = scmp.ne.s32.totalorder %s46, %s62
      %p64 = scmp.eq.s32.totalorder %s38, 0
      %p65 = por %p63, %p64
      %s66 = ssub.s32 %s32, %s39
      %p67 = scmp.eq.s32.totalorder %s66, 0
      %s69 = sadd.s32 %s68, 1
      %s70 = scalar_select %p67, %s68, %s69
      %p73 = pneg %p67
      %p74 = scmp.eq.s32.totalorder %s32, 1
      %p75 = por %p73, %p74
      %p76 = scmp.ne.s32.totalorder %s68, %s71
      %p77 = scmp.eq.s32.totalorder %s32, 0
      %p78 = por %p76, %p77
      %p79 = scmp.ne.s32.totalorder %s68, %s71
      %p80 = scmp.eq.s32.totalorder %s37, 1
      %p81 = por %p79, %p80
      %p82 = scmp.ne.s32.totalorder %s71, %s72
      %p83 = scmp.eq.s32.totalorder %s37, 0
      %p84 = por %p82, %p83
      %p85 = scmp.ne.s32.totalorder %s71, %s72
      %p86 = scmp.eq.s32.totalorder %s38, 1
      %p87 = por %p85, %p86
      %p89 = scmp.ne.s32.totalorder %s72, %s88
      %p90 = scmp.eq.s32.totalorder %s38, 0
      %p91 = por %p89, %p90
      %s93 = sadd.s32 %s92, 1
      %p96 = scmp.eq.s32.totalorder %s32, 1
      %p97 = scmp.ne.s32.totalorder %s92, %s94
      %p98 = scmp.eq.s32.totalorder %s32, 0
      %p99 = por %p97, %p98
      %p100 = scmp.ne.s32.totalorder %s92, %s94
      %p101 = scmp.eq.s32.totalorder %s37, 1
      %p102 = por %p100, %p101
      %p103 = scmp.ne.s32.totalorder %s94, %s95
      %p104 = scmp.eq.s32.totalorder %s37, 0
      %p105 = por %p103, %p104
      %p106 = scmp.ne.s32.totalorder %s94, %s95
      %p107 = scmp.eq.s32.totalorder %s38, 1
      %p108 = por %p106, %p107
      %p110 = scmp.ne.s32.totalorder %s95, %s109
      %p111 = scmp.eq.s32.totalorder %s38, 0
      %p112 = por %p110, %p111
      %s114 = sadd.s32 %s113, 1
      %p117 = scmp.eq.s32.totalorder %s32, 1
      %p118 = scmp.ne.s32.totalorder %s113, %s115
      %p119 = scmp.eq.s32.totalorder %s32, 0
      %p120 = por %p118, %p119
      %p121 = scmp.ne.s32.totalorder %s113, %s115
      %p122 = scmp.eq.s32.totalorder %s37, 1
      %p123 = por %p121, %p122
      %p124 = scmp.ne.s32.totalorder %s115, %s116
      %p125 = scmp.eq.s32.totalorder %s37, 0
      %p126 = por %p124, %p125
      %p127 = scmp.ne.s32.totalorder %s115, %s116
      %p128 = scmp.eq.s32.totalorder %s38, 1
      %p129 = por %p127, %p128
      %p131 = scmp.ne.s32.totalorder %s116, %s130
      %p132 = scmp.eq.s32.totalorder %s38, 0
      %p133 = por %p131, %p132
      %s135 = sadd.s32 %s134, 1
      %p138 = scmp.eq.s32.totalorder %s32, 1
      %p139 = scmp.ne.s32.totalorder %s134, %s136
      %p140 = scmp.eq.s32.totalorder %s32, 0
      %p141 = por %p139, %p140
      %p142 = scmp.ne.s32.totalorder %s134, %s136
      %p143 = scmp.eq.s32.totalorder %s37, 1
      %p144 = por %p142, %p143
      %p145 = scmp.ne.s32.totalorder %s136, %s137
      %p146 = scmp.eq.s32.totalorder %s37, 0
      %p147 = por %p145, %p146
      %p148 = scmp.ne.s32.totalorder %s136, %s137
      %p149 = scmp.eq.s32.totalorder %s38, 1
      %p150 = por %p148, %p149
      %p152 = scmp.ne.s32.totalorder %s137, %s151
      %p153 = scmp.eq.s32.totalorder %s38, 0
      %p154 = por %p152, %p153
      %s156 = sadd.s32 %s155, 1
      %p159 = scmp.eq.s32.totalorder %s32, 1
      %p160 = scmp.ne.s32.totalorder %s155, %s157
      %p161 = scmp.eq.s32.totalorder %s32, 0
      %p162 = por %p160, %p161
      %p163 = scmp.ne.s32.totalorder %s155, %s157
      %p164 = scmp.eq.s32.totalorder %s37, 1
      %p165 = por %p163, %p164
      %p166 = scmp.ne.s32.totalorder %s157, %s158
      %p167 = scmp.eq.s32.totalorder %s37, 0
      %p168 = por %p166, %p167
      %p169 = scmp.ne.s32.totalorder %s157, %s158
      %p170 = scmp.eq.s32.totalorder %s38, 1
      %p171 = por %p169, %p170
      %p173 = scmp.ne.s32.totalorder %s158, %s172
      %p174 = scmp.eq.s32.totalorder %s38, 0
      %p175 = por %p173, %p174
      %s177 = sadd.s32 %s176, 1
      %p180 = scmp.eq.s32.totalorder %s32, 1
      %p181 = scmp.ne.s32.totalorder %s176, %s178
      %p182 = scmp.eq.s32.totalorder %s32, 0
      %p183 = por %p181, %p182
      %p184 = scmp.ne.s32.totalorder %s176, %s178
      %p185 = scmp.eq.s32.totalorder %s37, 1
      %p186 = por %p184, %p185
      %p187 = scmp.ne.s32.totalorder %s178, %s179
      %p188 = scmp.eq.s32.totalorder %s37, 0
      %p189 = por %p187, %p188
      %p190 = scmp.ne.s32.totalorder %s178, %s179
      %p191 = scmp.eq.s32.totalorder %s38, 1
      %p192 = por %p190, %p191
      %p194 = scmp.ne.s32.totalorder %s179, %s193
      %p195 = scmp.eq.s32.totalorder %s38, 0
      %p196 = por %p194, %p195
      %s198 = sadd.s32 %s197, 1
      %p201 = scmp.eq.s32.totalorder %s32, 1
      %p202 = scmp.ne.s32.totalorder %s197, %s199
      %p203 = scmp.eq.s32.totalorder %s32, 0
      %p204 = por %p202, %p203
      %p205 = scmp.ne.s32.totalorder %s197, %s199
      %p206 = scmp.eq.s32.totalorder %s37, 1
      %p207 = por %p205, %p206
      %p208 = scmp.ne.s32.totalorder %s199, %s200
      %p209 = scmp.eq.s32.totalorder %s37, 0
      %p210 = por %p208, %p209
      %p211 = scmp.ne.s32.totalorder %s199, %s200
      %p212 = scmp.eq.s32.totalorder %s38, 1
      %p213 = por %p211, %p212
      %p215 = scmp.ne.s32.totalorder %s200, %s214
      %p216 = scmp.eq.s32.totalorder %s38, 0
      %p217 = por %p215, %p216
      %s219 = sadd.s32 %s218, 1
      %p222 = scmp.eq.s32.totalorder %s32, 1
      %p223 = scmp.ne.s32.totalorder %s218, %s220
      %p224 = scmp.eq.s32.totalorder %s32, 0
      %p225 = por %p223, %p224
      %p226 = scmp.ne.s32.totalorder %s218, %s220
      %p227 = scmp.eq.s32.totalorder %s37, 1
      %p228 = por %p226, %p227
      %p229 = scmp.ne.s32.totalorder %s220, %s221
      %p230 = scmp.eq.s32.totalorder %s37, 0
      %p231 = por %p229, %p230
      %p232 = scmp.ne.s32.totalorder %s220, %s221
      %p233 = scmp.eq.s32.totalorder %s38, 1
      %p234 = por %p232, %p233
      %p236 = scmp.ne.s32.totalorder %s221, %s235
      %p237 = scmp.eq.s32.totalorder %s38, 0
      %p238 = por %p236, %p237
      %s240 = sadd.s32 %s239, 1
      %p243 = scmp.eq.s32.totalorder %s32, 1
      %p244 = scmp.ne.s32.totalorder %s239, %s241
      %p245 = scmp.eq.s32.totalorder %s32, 0
      %p246 = por %p244, %p245
      %p247 = scmp.ne.s32.totalorder %s239, %s241
      %p248 = scmp.eq.s32.totalorder %s37, 1
      %p249 = por %p247, %p248
      %p250 = scmp.ne.s32.totalorder %s241, %s242
      %p251 = scmp.eq.s32.totalorder %s37, 0
      %p252 = por %p250, %p251
      %p253 = scmp.ne.s32.totalorder %s241, %s242
      %p254 = scmp.eq.s32.totalorder %s38, 1
      %p255 = por %p253, %p254
      %p257 = scmp.ne.s32.totalorder %s242, %s256
      %p258 = scmp.eq.s32.totalorder %s38, 0
      %p259 = por %p257, %p258
      %s261 = sadd.s32 %s260, 1
      %p264 = scmp.eq.s32.totalorder %s32, 1
      %p265 = scmp.ne.s32.totalorder %s260, %s262
      %p266 = scmp.eq.s32.totalorder %s32, 0
      %p267 = por %p265, %p266
      %p268 = scmp.ne.s32.totalorder %s260, %s262
      %p269 = scmp.eq.s32.totalorder %s37, 1
      %p270 = por %p268, %p269
      %p271 = scmp.ne.s32.totalorder %s262, %s263
      %p272 = scmp.eq.s32.totalorder %s37, 0
      %p273 = por %p271, %p272
      %p274 = scmp.ne.s32.totalorder %s262, %s263
      %p275 = scmp.eq.s32.totalorder %s38, 1
      %p276 = por %p274, %p275
      %p278 = scmp.ne.s32.totalorder %s263, %s277
      %p279 = scmp.eq.s32.totalorder %s38, 0
      %p280 = por %p278, %p279
      %s282 = sadd.s32 %s281, 1
      %p285 = scmp.eq.s32.totalorder %s32, 1
      %p286 = scmp.ne.s32.totalorder %s281, %s283
      %p287 = scmp.eq.s32.totalorder %s32, 0
      %p288 = por %p286, %p287
      %p289 = scmp.ne.s32.totalorder %s281, %s283
      %p290 = scmp.eq.s32.totalorder %s37, 1
      %p291 = por %p289, %p290
      %p292 = scmp.ne.s32.totalorder %s283, %s284
      %p293 = scmp.eq.s32.totalorder %s37, 0
      %p294 = por %p292, %p293
      %p295 = scmp.ne.s32.totalorder %s283, %s284
      %p296 = scmp.eq.s32.totalorder %s38, 1
      %p297 = por %p295, %p296
      %p299 = scmp.ne.s32.totalorder %s284, %s298
      %p300 = scmp.eq.s32.totalorder %s38, 0
      %p301 = por %p299, %p300
      %s303 = sadd.s32 %s302, 1
      %p306 = scmp.eq.s32.totalorder %s32, 1
      %p307 = scmp.ne.s32.totalorder %s302, %s304
      %p308 = scmp.eq.s32.totalorder %s32, 0
      %p309 = por %p307, %p308
      %p310 = scmp.ne.s32.totalorder %s302, %s304
      %p311 = scmp.eq.s32.totalorder %s37, 1
      %p312 = por %p310, %p311
      %p313 = scmp.ne.s32.totalorder %s304, %s305
      %p314 = scmp.eq.s32.totalorder %s37, 0
      %p315 = por %p313, %p314
      %p316 = scmp.ne.s32.totalorder %s304, %s305
      %p317 = scmp.eq.s32.totalorder %s38, 1
      %p318 = por %p316, %p317
      %p320 = scmp.ne.s32.totalorder %s305, %s319
      %p321 = scmp.eq.s32.totalorder %s38, 0
      %p322 = por %p320, %p321
      %s324 = sadd.s32 %s323, 1
      %p327 = scmp.eq.s32.totalorder %s32, 1
      %p328 = scmp.ne.s32.totalorder %s323, %s325
      %p329 = scmp.eq.s32.totalorder %s32, 0
      %p330 = por %p328, %p329
      %p331 = scmp.ne.s32.totalorder %s323, %s325
      %p332 = scmp.eq.s32.totalorder %s37, 1
      %p333 = por %p331, %p332
      %p334 = scmp.ne.s32.totalorder %s325, %s326
      %p335 = scmp.eq.s32.totalorder %s37, 0
      %p336 = por %p334, %p335
      %p337 = scmp.ne.s32.totalorder %s325, %s326
      %p338 = scmp.eq.s32.totalorder %s38, 1
      %p339 = por %p337, %p338
      %p341 = scmp.ne.s32.totalorder %s326, %s340
      %p342 = scmp.eq.s32.totalorder %s38, 0
      %p343 = por %p341, %p342
      %s344 = ssub.s32 %s32, %s39
      %p345 = scmp.eq.s32.totalorder %s344, 0
      %s347 = sadd.s32 %s346, 1
      %s348 = scalar_select %p345, %s346, %s347
      %p351 = pneg %p345
      %p352 = scmp.eq.s32.totalorder %s32, 1
      %p353 = por %p351, %p352
      %p354 = scmp.ne.s32.totalorder %s346, %s349
      %p355 = scmp.eq.s32.totalorder %s32, 0
      %p356 = por %p354, %p355
      %p357 = scmp.ne.s32.totalorder %s346, %s349
      %p358 = scmp.eq.s32.totalorder %s37, 1
      %p359 = por %p357, %p358
      %p360 = scmp.ne.s32.totalorder %s349, %s350
      %p361 = scmp.eq.s32.totalorder %s37, 0
      %p362 = por %p360, %p361
      %p363 = scmp.ne.s32.totalorder %s349, %s350
      %p364 = scmp.eq.s32.totalorder %s38, 1
      %p365 = por %p363, %p364
      %p367 = scmp.ne.s32.totalorder %s350, %s366
      %p368 = scmp.eq.s32.totalorder %s38, 0
      %p369 = por %p367, %p368
      %p370 = scmp.le.s32.totalorder 1, %s32
      %p371 = scmp.lt.s32.totalorder %s32, 3
      %p372 = pnand %p370, %p371
      %p373 = pneg %p372
      // Predicated region
      $region9: #{tpu_custom_call.1} parent=5 // pred_check
        _
      $region10: #{tpu_custom_call.1} parent=5 // pred_check_branch
        %375 = sbr.rel (%p372) target = $region12
      $region11: #{tpu_custom_call.1} parent=5 // pred_region
        %s376 = ssub.s32 %s32, 1
        // Predicated region
        $region13: #{tpu_custom_call.1} parent=11 // pred_check
          %p377 = pneg %p105
        $region14: #{tpu_custom_call.1} parent=11 // pred_check_branch
          %379 = sbr.rel (%p377) target = $region16
        $region15: #{tpu_custom_call.1} parent=11 // pred_region
          %s381 = ssub.s32 16, 16
          %382 = vsyncadd [#allocation6], %s381
          %s384 = sshll.u32 [#allocation7], 4
          %s385 = int_to_ptr.vmem [resolvable:$true] %s384
          %387 = dma.hbm_to_vmem [thread:$0]  %s2, 16, %s385, [#allocation6]
        $region16: #{tpu_custom_call.1} parent=11 // pred_fallthru
          _
        // Predicated region
        $region17: #{tpu_custom_call.1} parent=11 // pred_check
          %p388 = pneg %p126
        $region18: #{tpu_custom_call.1} parent=11 // pred_check_branch
          %390 = sbr.rel (%p388) target = $region20
        $region19: #{tpu_custom_call.1} parent=11 // pred_region
          %s392 = ssub.s32 16, 16
          %393 = vsyncadd [#allocation9], %s392
          %s395 = sshll.u32 [#allocation8], 4
          %s396 = int_to_ptr.vmem [resolvable:$true] %s395
          %398 = dma.hbm_to_vmem [thread:$0]  %s3, 16, %s396, [#allocation9]
        $region20: #{tpu_custom_call.1} parent=11 // pred_fallthru
          _
        // Predicated region
        $region21: #{tpu_custom_call.1} parent=11 // pred_check
          %p399 = pneg %p147
        $region22: #{tpu_custom_call.1} parent=11 // pred_check_branch
          %401 = sbr.rel (%p399) target = $region24
        $region23: #{tpu_custom_call.1} parent=11 // pred_region
          %s403 = ssub.s32 3072, 3072
          %404 = vsyncadd [#allocation9], %s403
          %s405 = sshll.u32 [#allocation10], 4
          %s406 = int_to_ptr.vmem [resolvable:$true] %s405
          %411 = dma.hbm_to_vmem [thread:$0]  %s4, 3072, %s406, [#allocation9], 192, 192, 12
        $region24: #{tpu_custom_call.1} parent=11 // pred_fallthru
          _
        // Predicated region
        $region25: #{tpu_custom_call.1} parent=11 // pred_check
          %p412 = pneg %p168
        $region26: #{tpu_custom_call.1} parent=11 // pred_check_branch
          %414 = sbr.rel (%p412) target = $region28
        $region27: #{tpu_custom_call.1} parent=11 // pred_region
          _
        $region28: #{tpu_custom_call.1} parent=11 // pred_fallthru
          _
        // Predicated region
        $region29: #{tpu_custom_call.1} parent=11 // pred_check
          %p415 = pneg %p189
        $region30: #{tpu_custom_call.1} parent=11 // pred_check_branch
          %417 = sbr.rel (%p415) target = $region32
        $region31: #{tpu_custom_call.1} parent=11 // pred_region
          %s419 = ssub.s32 1024, 1024
          %420 = vsyncadd [#allocation12], %s419
          %s421 = sshll.u32 [#allocation11], 4
          %s422 = int_to_ptr.vmem [resolvable:$true] %s421
          %427 = dma.hbm_to_vmem [thread:$0]  %s6, 1024, %s422, [#allocation12], 64, 64, 4
        $region32: #{tpu_custom_call.1} parent=11 // pred_fallthru
          _
        // Predicated region
        $region33: #{tpu_custom_call.1} parent=11 // pred_check
          %p428 = pneg %p210
        $region34: #{tpu_custom_call.1} parent=11 // pred_check_branch
          %430 = sbr.rel (%p428) target = $region36
        $region35: #{tpu_custom_call.1} parent=11 // pred_region
          _
        $region36: #{tpu_custom_call.1} parent=11 // pred_fallthru
          _
        // Predicated region
        $region37: #{tpu_custom_call.1} parent=11 // pred_check
          %p431 = pneg %p231
        $region38: #{tpu_custom_call.1} parent=11 // pred_check_branch
          %433 = sbr.rel (%p431) target = $region40
        $region39: #{tpu_custom_call.1} parent=11 // pred_region
          _
        $region40: #{tpu_custom_call.1} parent=11 // pred_fallthru
          _
        // Predicated region
        $region41: #{tpu_custom_call.1} parent=11 // pred_check
          %p434 = pneg %p252
        $region42: #{tpu_custom_call.1} parent=11 // pred_check_branch
          %436 = sbr.rel (%p434) target = $region44
        $region43: #{tpu_custom_call.1} parent=11 // pred_region
          _
        $region44: #{tpu_custom_call.1} parent=11 // pred_fallthru
          _
        // Predicated region
        $region45: #{tpu_custom_call.1} parent=11 // pred_check
          %p437 = pneg %p273
        $region46: #{tpu_custom_call.1} parent=11 // pred_check_branch
          %439 = sbr.rel (%p437) target = $region48
        $region47: #{tpu_custom_call.1} parent=11 // pred_region
          %s441 = ssub.s32 2048, 2048
          %442 = vsyncadd [#allocation12], %s441
          %s443 = sshll.u32 [#allocation13], 4
          %s444 = int_to_ptr.vmem [resolvable:$true] %s443
          %449 = dma.hbm_to_vmem [thread:$0]  %s10, 2048, %s444, [#allocation12], 128, 128, 8
        $region48: #{tpu_custom_call.1} parent=11 // pred_fallthru
          _
        // Predicated region
        $region49: #{tpu_custom_call.1} parent=11 // pred_check
          %p450 = pneg %p294
        $region50: #{tpu_custom_call.1} parent=11 // pred_check_branch
          %452 = sbr.rel (%p450) target = $region52
        $region51: #{tpu_custom_call.1} parent=11 // pred_region
          _
        $region52: #{tpu_custom_call.1} parent=11 // pred_fallthru
          _
        // Predicated region
        $region53: #{tpu_custom_call.1} parent=11 // pred_check
          %p453 = pneg %p315
        $region54: #{tpu_custom_call.1} parent=11 // pred_check_branch
          %455 = sbr.rel (%p453) target = $region56
        $region55: #{tpu_custom_call.1} parent=11 // pred_region
          %s457 = ssub.s32 2048, 2048
          %458 = vsyncadd [#allocation15], %s457
          %s459 = sshll.u32 [#allocation14], 4
          %s460 = int_to_ptr.vmem [resolvable:$true] %s459
          %465 = dma.hbm_to_vmem [thread:$0]  %s12, 2048, %s460, [#allocation15], 64, 64, 4
        $region56: #{tpu_custom_call.1} parent=11 // pred_fallthru
          _
        // Predicated region
        $region57: #{tpu_custom_call.1} parent=11 // pred_check
          %p466 = pneg %p336
        $region58: #{tpu_custom_call.1} parent=11 // pred_check_branch
          %468 = sbr.rel (%p466) target = $region60
        $region59: #{tpu_custom_call.1} parent=11 // pred_region
          _
        $region60: #{tpu_custom_call.1} parent=11 // pred_fallthru
          _
      $region12: #{tpu_custom_call.1} parent=5 // pred_fallthru
        _
      %p469 = scmp.lt.s32.totalorder %s32, 2
      // Predicated region
      $region61: #{tpu_custom_call.1} parent=5 // pred_check
        %p470 = pneg %p469
      $region62: #{tpu_custom_call.1} parent=5 // pred_check_branch
        %472 = sbr.rel (%p470) target = $region64
      $region63: #{tpu_custom_call.1} parent=5 // pred_region
        // Predicated region
        $region65: #{tpu_custom_call.1} parent=63 // pred_check
          %p473 = pneg %p52
        $region66: #{tpu_custom_call.1} parent=63 // pred_check_branch
          %475 = sbr.rel (%p473) target = $region68
        $region67: #{tpu_custom_call.1} parent=63 // pred_region
          %s476 = sand.u32 %s42, 1
          %s477 = scalar_lea.sflag [#allocation3], %s476
          %s478 = sand.u32 %s42, 1
          %s479 = smul.addr %s478, 64
          %s480 = scalar_lea.vmem [#allocation2], %s479
          %s481 = smul.u32 4, %s32
          %s483 = ssub.s32 1024, 1024
          %484 = vsyncadd %s477, %s483
          %s485 = smul.addr %s481, 2
          %s486 = smul.addr %s485, 128
          %s487 = scalar_lea.hbm %s0, %s486
          %s488 = sshll.u32 %s480, 4
          %s489 = int_to_ptr.vmem [resolvable:$true] %s488
          %494 = dma.hbm_to_vmem [thread:$0]  %s487, 1024, %s489, %s477, 128, 128, 8
        $region68: #{tpu_custom_call.1} parent=63 // pred_fallthru
          _
        // Predicated region
        $region69: #{tpu_custom_call.1} parent=63 // pred_check
          %p495 = pneg %p78
        $region70: #{tpu_custom_call.1} parent=63 // pred_check_branch
          %497 = sbr.rel (%p495) target = $region72
        $region71: #{tpu_custom_call.1} parent=63 // pred_region
          %s498 = sand.u32 %s32, 1
          %s499 = scalar_lea.sflag [#allocation6], %s498
          %s500 = sand.u32 %s68, 1
          %s501 = smul.addr %s500, 4
          %s502 = scalar_lea.vmem [#allocation5], %s501
          %s503 = smul.u32 4, %s32
          %s505 = ssub.s32 64, 64
          %506 = vsyncadd %s499, %s505
          %s507 = smul.addr %s503, 16
          %s508 = scalar_lea.hbm %s1, %s507
          %s509 = sshll.u32 %s502, 4
          %s510 = int_to_ptr.vmem [resolvable:$true] %s509
          %515 = dma.hbm_to_vmem [thread:$0]  %s508, 64, %s510, %s499, 16, 16, 1
        $region72: #{tpu_custom_call.1} parent=63 // pred_fallthru
          _
      $region64: #{tpu_custom_call.1} parent=5 // pred_fallthru
        _
      %p516 = scmp.le.s32.totalorder 1, %s32
      %p517 = scmp.lt.s32.totalorder %s32, 3
      %p518 = pnand %p516, %p517
      %p519 = pneg %p518
      // Predicated region
      $region73: #{tpu_custom_call.1} parent=5 // pred_check
        _
      $region74: #{tpu_custom_call.1} parent=5 // pred_check_branch
        %521 = sbr.rel (%p518) target = $region76
      $region75: #{tpu_custom_call.1} parent=5 // pred_region
        %s522 = ssub.s32 %s32, 1
        %s523 = sand.u32 %s45, 1
        %s524 = scalar_lea.sflag [#allocation3], %s523
        %s525 = sand.u32 %s45, 1
        %s526 = smul.addr %s525, 64
        %s527 = scalar_lea.vmem [#allocation2], %s526
        // Predicated region
        $region77: #{tpu_custom_call.1} parent=75 // pred_check
          %p528 = pneg %p58
        $region78: #{tpu_custom_call.1} parent=75 // pred_check_branch
          %530 = sbr.rel (%p528) target = $region80
        $region79: #{tpu_custom_call.1} parent=75 // pred_region
          %531 = dma.done %s524, 1024
        $region80: #{tpu_custom_call.1} parent=75 // pred_fallthru
          _
        %s532 = sand.u32 %s37, 1
        %s533 = scalar_lea.sflag [#allocation6], %s532
        %s534 = sand.u32 %s71, 1
        %s535 = smul.addr %s534, 4
        %s536 = scalar_lea.vmem [#allocation5], %s535
        // Predicated region
        $region81: #{tpu_custom_call.1} parent=75 // pred_check
          %p537 = pneg %p84
        $region82: #{tpu_custom_call.1} parent=75 // pred_check_branch
          %539 = sbr.rel (%p537) target = $region84
        $region83: #{tpu_custom_call.1} parent=75 // pred_region
          %540 = dma.done %s533, 64
        $region84: #{tpu_custom_call.1} parent=75 // pred_fallthru
          _
        // Predicated region
        $region85: #{tpu_custom_call.1} parent=75 // pred_check
          %p541 = pneg %p105
        $region86: #{tpu_custom_call.1} parent=75 // pred_check_branch
          %543 = sbr.rel (%p541) target = $region88
        $region87: #{tpu_custom_call.1} parent=75 // pred_region
          %544 = dma.done [#allocation6], 16
        $region88: #{tpu_custom_call.1} parent=75 // pred_fallthru
          _
        // Predicated region
        $region89: #{tpu_custom_call.1} parent=75 // pred_check
          %p545 = pneg %p126
        $region90: #{tpu_custom_call.1} parent=75 // pred_check_branch
          %547 = sbr.rel (%p545) target = $region92
        $region91: #{tpu_custom_call.1} parent=75 // pred_region
          %548 = dma.done [#allocation9], 16
        $region92: #{tpu_custom_call.1} parent=75 // pred_fallthru
          _
        // Predicated region
        $region93: #{tpu_custom_call.1} parent=75 // pred_check
          %p549 = pneg %p147
        $region94: #{tpu_custom_call.1} parent=75 // pred_check_branch
          %551 = sbr.rel (%p549) target = $region96
        $region95: #{tpu_custom_call.1} parent=75 // pred_region
          %552 = dma.done [#allocation9], 3072
        $region96: #{tpu_custom_call.1} parent=75 // pred_fallthru
          _
        // Predicated region
        $region97: #{tpu_custom_call.1} parent=75 // pred_check
          %p553 = pneg %p189
        $region98: #{tpu_custom_call.1} parent=75 // pred_check_branch
          %555 = sbr.rel (%p553) target = $region100
        $region99: #{tpu_custom_call.1} parent=75 // pred_region
          %556 = dma.done [#allocation12], 1024
        $region100: #{tpu_custom_call.1} parent=75 // pred_fallthru
          _
        // Predicated region
        $region101: #{tpu_custom_call.1} parent=75 // pred_check
          %p557 = pneg %p273
        $region102: #{tpu_custom_call.1} parent=75 // pred_check_branch
          %559 = sbr.rel (%p557) target = $region104
        $region103: #{tpu_custom_call.1} parent=75 // pred_region
          %560 = dma.done [#allocation12], 2048
        $region104: #{tpu_custom_call.1} parent=75 // pred_fallthru
          _
        // Predicated region
        $region105: #{tpu_custom_call.1} parent=75 // pred_check
          %p561 = pneg %p315
        $region106: #{tpu_custom_call.1} parent=75 // pred_check_branch
          %563 = sbr.rel (%p561) target = $region108
        $region107: #{tpu_custom_call.1} parent=75 // pred_region
          %564 = dma.done [#allocation15], 2048
        $region108: #{tpu_custom_call.1} parent=75 // pred_fallthru
          _
        %s565 = sand.u32 %s45, 1
        %s566 = scalar_lea.sflag [#allocation3], %s565
        %s567 = sand.u32 %s45, 1
        %s568 = smul.addr %s567, 64
        %s569 = scalar_lea.vmem [#allocation2], %s568
        %p570 = pneg %p58
        %p571 = pneg %p55
        %s572 = sand.u32 %s37, 1
        %s573 = scalar_lea.sflag [#allocation6], %s572
        %s574 = sand.u32 %s71, 1
        %s575 = smul.addr %s574, 4
        %s576 = scalar_lea.vmem [#allocation5], %s575
        %p577 = pneg %p84
        %p578 = pneg %p81
        %p579 = pneg %p105
        %p580 = pneg %p102
        %p581 = pneg %p126
        %p582 = pneg %p123
        %p583 = pneg %p147
        %p584 = pneg %p144
        %p585 = pneg %p168
        %p586 = pneg %p165
        %p587 = pneg %p189
        %p588 = pneg %p186
        %p589 = pneg %p210
        %p590 = pneg %p207
        %p591 = pneg %p231
        %p592 = pneg %p228
        %p593 = pneg %p252
        %p594 = pneg %p249
        %p595 = pneg %p273
        %p596 = pneg %p270
        %p597 = pneg %p294
        %p598 = pneg %p291
        %p599 = pneg %p315
        %p600 = pneg %p312
        %p601 = pneg %p336
        %p602 = pneg %p333
        %p603 = pneg %p362
        %p604 = pneg %p359
        %s605 = sand.u32 %s349, 1
        %s606 = scalar_lea.sflag [#allocation4], %s605
        %s607 = sand.u32 %s349, 1
        %s608 = smul.addr %s607, 64
        %s609 = scalar_lea.vmem [#allocation16], %s608
        %s610 = smul.u32 4, %s37
        %s611 = smul.u32 4, %s37
        %s612 = smul.u32 4, %s37
        %v614 = vld [vmem:[%s527] sm:$0xff]
        %v615 = vld [vmem:[%s527 + $0x8] sm:$0xff]
        %v616 = vld [vmem:[%s527 + $0x10] sm:$0xff]
        %v617 = vld [vmem:[%s527 + $0x18] sm:$0xff]
        %v618 = vld [vmem:[%s527 + $0x20] sm:$0xff]
        %v619 = vld [vmem:[%s527 + $0x28] sm:$0xff]
        %v620 = vld [vmem:[%s527 + $0x30] sm:$0xff]
        %v621 = vld [vmem:[%s527 + $0x38] sm:$0xff]
        %v622 = vld [vmem:[#allocation7] sm:$0x1]
        %v623 = vld [vmem:[#allocation8] sm:$0x1]
        %624 = vadd.xlane.f32.xlu0 %v614
        %v625 = vpop.xlane.xlu0 %624
        %626 = vadd.xlane.f32.xlu0 %v615
        %v627 = vpop.xlane.xlu0 %626
        %628 = vadd.xlane.f32.xlu0 %v616
        %v629 = vpop.xlane.xlu0 %628
        %630 = vadd.xlane.f32.xlu0 %v617
        %v631 = vpop.xlane.xlu0 %630
        %632 = vadd.xlane.f32.xlu0 %v618
        %v633 = vpop.xlane.xlu0 %632
        %634 = vadd.xlane.f32.xlu0 %v619
        %v635 = vpop.xlane.xlu0 %634
        %636 = vadd.xlane.f32.xlu0 %v620
        %v637 = vpop.xlane.xlu0 %636
        %638 = vadd.xlane.f32.xlu0 %v621
        %v639 = vpop.xlane.xlu0 %638
        %v640 = vrcp.pop 128.0
        %v641 = vmul.f32 %v625, %v640
        %v642 = vmul.f32 %v627, %v640
        %v643 = vmul.f32 %v629, %v640
        %v644 = vmul.f32 %v631, %v640
        %v645 = vmul.f32 %v633, %v640
        %v646 = vmul.f32 %v635, %v640
        %v647 = vmul.f32 %v637, %v640
        %v648 = vmul.f32 %v639, %v640
        %v649 = vsub.f32 %v614, %v641
        %v650 = vsub.f32 %v615, %v642
        %v651 = vsub.f32 %v616, %v643
        %v652 = vsub.f32 %v617, %v644
        %v653 = vsub.f32 %v618, %v645
        %v654 = vsub.f32 %v619, %v646
        %v655 = vsub.f32 %v620, %v647
        %v656 = vsub.f32 %v621, %v648
        %v657 = vmul.f32 %v649, %v649
        %v658 = vmul.f32 %v650, %v650
        %v659 = vmul.f32 %v651, %v651
        %v660 = vmul.f32 %v652, %v652
        %v661 = vmul.f32 %v653, %v653
        %v662 = vmul.f32 %v654, %v654
        %v663 = vmul.f32 %v655, %v655
        %v664 = vmul.f32 %v656, %v656
        %665 = vadd.xlane.f32.xlu0 %v657
        %v666 = vpop.xlane.xlu0 %665
        %667 = vadd.xlane.f32.xlu0 %v658
        %v668 = vpop.xlane.xlu0 %667
        %669 = vadd.xlane.f32.xlu0 %v659
        %v670 = vpop.xlane.xlu0 %669
        %671 = vadd.xlane.f32.xlu0 %v660
        %v672 = vpop.xlane.xlu0 %671
        %673 = vadd.xlane.f32.xlu0 %v661
        %v674 = vpop.xlane.xlu0 %673
        %675 = vadd.xlane.f32.xlu0 %v662
        %v676 = vpop.xlane.xlu0 %675
        %677 = vadd.xlane.f32.xlu0 %v663
        %v678 = vpop.xlane.xlu0 %677
        %679 = vadd.xlane.f32.xlu0 %v664
        %v680 = vpop.xlane.xlu0 %679
        %v681 = vrcp.pop 127.0
        %v682 = vmul.f32 %v666, %v681
        %v683 = vmul.f32 %v668, %v681
        %v684 = vmul.f32 %v670, %v681
        %v685 = vmul.f32 %v672, %v681
        %v686 = vmul.f32 %v674, %v681
        %v687 = vmul.f32 %v676, %v681
        %v688 = vmul.f32 %v678, %v681
        %v689 = vmul.f32 %v680, %v681
        %v690 = vrsqrt.pop %v682
        %v691 = vmul.f32 %v682, %v690
        %vm692 = vcmp.eq.f32.partialorder %v682, inf
        %v693 = vsel %vm692, %v682, %v691
        %vm694 = vcmp.eq.f32.partialorder %v682, 0.0
        %v695 = vand.u32 %v682, 2147483648
        %v696 = vsel %vm694, %v695, %v693
        %v697 = vrsqrt.pop %v683
        %v698 = vmul.f32 %v683, %v697
        %vm699 = vcmp.eq.f32.partialorder %v683, inf
        %v700 = vsel %vm699, %v683, %v698
        %vm701 = vcmp.eq.f32.partialorder %v683, 0.0
        %v702 = vand.u32 %v683, 2147483648
        %v703 = vsel %vm701, %v702, %v700
        %v704 = vrsqrt.pop %v684
        %v705 = vmul.f32 %v684, %v704
        %vm706 = vcmp.eq.f32.partialorder %v684, inf
        %v707 = vsel %vm706, %v684, %v705
        %vm708 = vcmp.eq.f32.partialorder %v684, 0.0
        %v709 = vand.u32 %v684, 2147483648
        %v710 = vsel %vm708, %v709, %v707
        %v711 = vrsqrt.pop %v685
        %v712 = vmul.f32 %v685, %v711
        %vm713 = vcmp.eq.f32.partialorder %v685, inf
        %v714 = vsel %vm713, %v685, %v712
        %vm715 = vcmp.eq.f32.partialorder %v685, 0.0
        %v716 = vand.u32 %v685, 2147483648
        %v717 = vsel %vm715, %v716, %v714
        %v718 = vrsqrt.pop %v686
        %v719 = vmul.f32 %v686, %v718
        %vm720 = vcmp.eq.f32.partialorder %v686, inf
        %v721 = vsel %vm720, %v686, %v719
        %vm722 = vcmp.eq.f32.partialorder %v686, 0.0
        %v723 = vand.u32 %v686, 2147483648
        %v724 = vsel %vm722, %v723, %v721
        %v725 = vrsqrt.pop %v687
        %v726 = vmul.f32 %v687, %v725
        %vm727 = vcmp.eq.f32.partialorder %v687, inf
        %v728 = vsel %vm727, %v687, %v726
        %vm729 = vcmp.eq.f32.partialorder %v687, 0.0
        %v730 = vand.u32 %v687, 2147483648
        %v731 = vsel %vm729, %v730, %v728
        %v732 = vrsqrt.pop %v688
        %v733 = vmul.f32 %v688, %v732
        %vm734 = vcmp.eq.f32.partialorder %v688, inf
        %v735 = vsel %vm734, %v688, %v733
        %vm736 = vcmp.eq.f32.partialorder %v688, 0.0
        %v737 = vand.u32 %v688, 2147483648
        %v738 = vsel %vm736, %v737, %v735
        %v739 = vrsqrt.pop %v689
        %v740 = vmul.f32 %v689, %v739
        %vm741 = vcmp.eq.f32.partialorder %v689, inf
        %v742 = vsel %vm741, %v689, %v740
        %vm743 = vcmp.eq.f32.partialorder %v689, 0.0
        %v744 = vand.u32 %v689, 2147483648
        %v745 = vsel %vm743, %v744, %v742
        %v746 = vadd.f32 %v696, 1e-06
        %v747 = vadd.f32 %v703, 1e-06
        %v748 = vadd.f32 %v710, 1e-06
        %v749 = vadd.f32 %v717, 1e-06
        %v750 = vadd.f32 %v724, 1e-06
        %v751 = vadd.f32 %v731, 1e-06
        %v752 = vadd.f32 %v738, 1e-06
        %v753 = vadd.f32 %v745, 1e-06
        %v754 = vrcp.pop %v746
        %v755 = vrcp.pop %v747
        %v756 = vrcp.pop %v748
        %v757 = vrcp.pop %v749
        %v758 = vrcp.pop %v750
        %v759 = vrcp.pop %v751
        %v760 = vrcp.pop %v752
        %v761 = vrcp.pop %v753
        %v763 = vlaneseq
        %v764 = vshrl.u32 %v763, 7
        %v765 = vsub.s32 0, %v764
        %v766 = vrot.slane %v622, %v765
        %v768 = vmul.f32 %v766, %v649
        %v769 = vmul.f32 %v766, %v650
        %v770 = vmul.f32 %v766, %v651
        %v771 = vmul.f32 %v766, %v652
        %v772 = vmul.f32 %v766, %v653
        %v773 = vmul.f32 %v766, %v654
        %v774 = vmul.f32 %v766, %v655
        %v775 = vmul.f32 %v766, %v656
        %v776 = vmul.f32 %v768, %v754
        %v777 = vmul.f32 %v769, %v755
        %v778 = vmul.f32 %v770, %v756
        %v779 = vmul.f32 %v771, %v757
        %v780 = vmul.f32 %v772, %v758
        %v781 = vmul.f32 %v773, %v759
        %v782 = vmul.f32 %v774, %v760
        %v783 = vmul.f32 %v775, %v761
        %v785 = vlaneseq
        %v786 = vshrl.u32 %v785, 7
        %v787 = vsub.s32 0, %v786
        %v788 = vrot.slane %v623, %v787
        %v790 = vadd.f32 %v776, %v788
        %v791 = vadd.f32 %v777, %v788
        %v792 = vadd.f32 %v778, %v788
        %v793 = vadd.f32 %v779, %v788
        %v794 = vadd.f32 %v780, %v788
        %v795 = vadd.f32 %v781, %v788
        %v796 = vadd.f32 %v782, %v788
        %v797 = vadd.f32 %v783, %v788
        %v798 = vpack.c.bf16 %v791, %v790
        %v799 = vpack.c.bf16 %v793, %v792
        %v800 = vpack.c.bf16 %v795, %v794
        %v801 = vpack.c.bf16 %v797, %v796
        %v802 = vld [vmem:[#allocation10] sm:$0xff]
        %v803 = vld [vmem:[#allocation10 + $0x8] sm:$0xf]
        %v804 = vld [vmem:[#allocation10 + $0xc] sm:$0xff]
        %v805 = vld [vmem:[#allocation10 + $0x14] sm:$0xf]
        %v806 = vld [vmem:[#allocation10 + $0x18] sm:$0xff]
        %v807 = vld [vmem:[#allocation10 + $0x20] sm:$0xf]
        %v808 = vld [vmem:[#allocation10 + $0x24] sm:$0xff]
        %v809 = vld [vmem:[#allocation10 + $0x2c] sm:$0xf]
        %v810 = vld [vmem:[#allocation10 + $0x30] sm:$0xff]
        %v811 = vld [vmem:[#allocation10 + $0x38] sm:$0xf]
        %v812 = vld [vmem:[#allocation10 + $0x3c] sm:$0xff]
        %v813 = vld [vmem:[#allocation10 + $0x44] sm:$0xf]
        %v814 = vld [vmem:[#allocation10 + $0x48] sm:$0xff]
        %v815 = vld [vmem:[#allocation10 + $0x50] sm:$0xf]
        %v816 = vld [vmem:[#allocation10 + $0x54] sm:$0xff]
        %v817 = vld [vmem:[#allocation10 + $0x5c] sm:$0xf]
        %v818 = vld [vmem:[#allocation10 + $0x60] sm:$0xff]
        %v819 = vld [vmem:[#allocation10 + $0x68] sm:$0xf]
        %v820 = vld [vmem:[#allocation10 + $0x6c] sm:$0xff]
        %v821 = vld [vmem:[#allocation10 + $0x74] sm:$0xf]
        %v822 = vld [vmem:[#allocation10 + $0x78] sm:$0xff]
        %v823 = vld [vmem:[#allocation10 + $0x80] sm:$0xf]
        %v824 = vld [vmem:[#allocation10 + $0x84] sm:$0xff]
        %v825 = vld [vmem:[#allocation10 + $0x8c] sm:$0xf]
        %v826 = vld [vmem:[#allocation10 + $0x90] sm:$0xff]
        %v827 = vld [vmem:[#allocation10 + $0x98] sm:$0xf]
        %v828 = vld [vmem:[#allocation10 + $0x9c] sm:$0xff]
        %v829 = vld [vmem:[#allocation10 + $0xa4] sm:$0xf]
        %v830 = vld [vmem:[#allocation10 + $0xa8] sm:$0xff]
        %v831 = vld [vmem:[#allocation10 + $0xb0] sm:$0xf]
        %v832 = vld [vmem:[#allocation10 + $0xb4] sm:$0xff]
        %v833 = vld [vmem:[#allocation10 + $0xbc] sm:$0xf]
        %v834 = vld [vmem:[%s5] sm:$0x7]
        %v836 = vlaneseq
        %v837 = vshrl.u32 %v836, 7
        %v838 = vsub.s32 0, %v837
        %v839 = vrot.slane %v834, %v838
        %v840 = vlaneseq
        %v841 = vshrl.u32 %v840, 7
        %v842 = vsub.s32 1, %v841
        %v843 = vrot.slane %v834, %v842
        %v844 = vlaneseq
        %v845 = vshrl.u32 %v844, 7
        %v846 = vsub.s32 2, %v845
        %v847 = vrot.slane %v834, %v846
        %v883 = vunpack.c.l.b16 %v802
        %v884 = vunpack.c.h.b16 %v802
        %v885 = vunpack.c.l.b16 %v803
        %v886 = vunpack.c.l.b16 %v804
        %v887 = vunpack.c.h.b16 %v804
        %v888 = vunpack.c.l.b16 %v805
        %v889 = vunpack.c.l.b16 %v806
        %v890 = vunpack.c.h.b16 %v806
        %v891 = vunpack.c.l.b16 %v807
        %v892 = vunpack.c.l.b16 %v808
        %v893 = vunpack.c.h.b16 %v808
        %v894 = vunpack.c.l.b16 %v809
        %v895 = vunpack.c.l.b16 %v810
        %v896 = vunpack.c.h.b16 %v810
        %v897 = vunpack.c.l.b16 %v811
        %v898 = vunpack.c.l.b16 %v812
        %v899 = vunpack.c.h.b16 %v812
        %v900 = vunpack.c.l.b16 %v813
        %v901 = vunpack.c.l.b16 %v814
        %v902 = vunpack.c.h.b16 %v814
        %v903 = vunpack.c.l.b16 %v815
        %v904 = vunpack.c.l.b16 %v816
        %v905 = vunpack.c.h.b16 %v816
        %v906 = vunpack.c.l.b16 %v817
        %v907 = vunpack.c.l.b16 %v818
        %v908 = vunpack.c.h.b16 %v818
        %v909 = vunpack.c.l.b16 %v819
        %v910 = vunpack.c.l.b16 %v820
        %v911 = vunpack.c.h.b16 %v820
        %v912 = vunpack.c.l.b16 %v821
        %v913 = vunpack.c.l.b16 %v822
        %v914 = vunpack.c.h.b16 %v822
        %v915 = vunpack.c.l.b16 %v823
        %v916 = vunpack.c.l.b16 %v824
        %v917 = vunpack.c.h.b16 %v824
        %v918 = vunpack.c.l.b16 %v825
        %v919 = vunpack.c.l.b16 %v826
        %v920 = vunpack.c.h.b16 %v826
        %v921 = vunpack.c.l.b16 %v827
        %v922 = vunpack.c.l.b16 %v828
        %v923 = vunpack.c.h.b16 %v828
        %v924 = vunpack.c.l.b16 %v829
        %v925 = vunpack.c.l.b16 %v830
        %v926 = vunpack.c.h.b16 %v830
        %v927 = vunpack.c.l.b16 %v831
        %v928 = vunpack.c.l.b16 %v832
        %v929 = vunpack.c.h.b16 %v832
        %v930 = vunpack.c.l.b16 %v833
        %v931 = vpack.c.b16 %v886, %v883
        %v932 = vpack.c.b16 %v887, %v884
        %v933 = vpack.c.b16 %v888, %v885
        %v934 = vpack.c.b16 %v892, %v889
        %v935 = vpack.c.b16 %v893, %v890
        %v936 = vpack.c.b16 %v894, %v891
        %v937 = vpack.c.b16 %v898, %v895
        %v938 = vpack.c.b16 %v899, %v896
        %v939 = vpack.c.b16 %v900, %v897
        %v940 = vpack.c.b16 %v904, %v901
        %v941 = vpack.c.b16 %v905, %v902
        %v942 = vpack.c.b16 %v906, %v903
        %v943 = vpack.c.b16 %v910, %v907
        %v944 = vpack.c.b16 %v911, %v908
        %v945 = vpack.c.b16 %v912, %v909
        %v946 = vpack.c.b16 %v916, %v913
        %v947 = vpack.c.b16 %v917, %v914
        %v948 = vpack.c.b16 %v918, %v915
        %v949 = vpack.c.b16 %v922, %v919
        %v950 = vpack.c.b16 %v923, %v920
        %v951 = vpack.c.b16 %v924, %v921
        %v952 = vpack.c.b16 %v928, %v925
        %v953 = vpack.c.b16 %v929, %v926
        %v954 = vpack.c.b16 %v930, %v927
        %979 = vmatprep.subr.bf16.mxu0 %v953
        %980 = vmatpush1.bf16.msra.mxu0 %v952
        %981 = vmatprep.subr.bf16.mxu0 %v950
        %982 = vmatpush1.bf16.msra.mxu0 %v949
        %983 = vmatprep.subr.bf16.mxu0 %v947
        %984 = vmatpush1.bf16.msra.mxu0 %v946
        %985 = vmatprep.subr.bf16.mxu0 %v944
        %986 = vmatpush1.bf16.msra.mxu0 %v943
        %987 = vmatprep.subr.bf16.mxu0 %v941
        %988 = vmatpush1.bf16.msra.mxu0 %v940
        %989 = vmatprep.subr.bf16.mxu0 %v938
        %990 = vmatpush1.bf16.msra.mxu0 %v937
        %991 = vmatprep.subr.bf16.mxu0 %v935
        %992 = vmatpush1.bf16.msra.mxu0 %v934
        %993 = vmatprep.subr.bf16.mxu0 %v932
        %994 = vmatpush1.bf16.msra.mxu0 %v931
        %995 = vmatprep.subr.bf16.mxu0 0
        %996 = vmatpush2.bf16.msra.mxu0 0
        %997 = vmatprep.subr.bf16.mxu0 0
        %998 = vmatpush2.bf16.msra.mxu0 0
        %999 = vmatprep.subr.bf16.mxu0 0
        %1000 = vmatpush2.bf16.msra.mxu0 0
        %1001 = vmatprep.subr.bf16.mxu0 0
        %1002 = vmatpush2.bf16.msra.mxu0 0
        %1003 = vmatprep.subr.bf16.mxu0 0
        %1004 = vmatpush2.bf16.msra.mxu0 0
        %1005 = vmatprep.subr.bf16.mxu0 0
        %1006 = vmatpush2.bf16.msra.mxu0 0
        %1007 = vmatprep.subr.bf16.mxu0 0
        %1008 = vmatpush2.bf16.msra.mxu0 0
        %1009 = vmatprep.subr.bf16.mxu0 0
        %1010 = vmatpush2.bf16.msra.mxu0 0
        %1011 = vmatprep.mubr.bf16.mxu0 0
        %1012 = vmatmul.mubr.bf16.gmra.mxu0 %v798
        %v1013 = vpop.f32.mrf.mxu0
        %v1014 = vadd.f32 %v839, %v1013
        %v1015 = vpop.f32.mrf.mxu0
        %v1016 = vadd.f32 %v843, %v1015
        %v1017 = vpop.f32.mrf.mxu0
        %v1018 = vadd.f32 %v839, %v1017
        %v1019 = vpop.f32.mrf.mxu0
        %v1020 = vadd.f32 %v843, %v1019
        %1021 = vmatprep.mubr.bf16.mxu0 0
        %1022 = vmatmul.mubr.bf16.gmra.mxu0 %v799
        %v1023 = vpop.f32.mrf.mxu0
        %v1024 = vadd.f32 %v839, %v1023
        %v1025 = vpop.f32.mrf.mxu0
        %v1026 = vadd.f32 %v843, %v1025
        %v1027 = vpop.f32.mrf.mxu0
        %v1028 = vadd.f32 %v839, %v1027
        %v1029 = vpop.f32.mrf.mxu0
        %v1030 = vadd.f32 %v843, %v1029
        %1031 = vmatprep.mubr.bf16.mxu0 0
        %1032 = vmatmul.mubr.bf16.gmra.mxu0 %v800
        %v1033 = vpop.f32.mrf.mxu0
        %v1034 = vadd.f32 %v839, %v1033
        %v1035 = vpop.f32.mrf.mxu0
        %v1036 = vadd.f32 %v843, %v1035
        %v1037 = vpop.f32.mrf.mxu0
        %v1038 = vadd.f32 %v839, %v1037
        %v1039 = vpop.f32.mrf.mxu0
        %v1040 = vadd.f32 %v843, %v1039
        %1041 = vmatprep.mubr.bf16.mxu0 0
        %1042 = vmatmul.mubr.bf16.gmra.mxu0 %v801
        %v1043 = vpop.f32.mrf.mxu0
        %v1044 = vadd.f32 %v839, %v1043
        %v1045 = vpop.f32.mrf.mxu0
        %v1046 = vadd.f32 %v843, %v1045
        %v1047 = vpop.f32.mrf.mxu0
        %v1048 = vadd.f32 %v839, %v1047
        %v1049 = vpop.f32.mrf.mxu0
        %v1050 = vadd.f32 %v843, %v1049
        %1051 = vdwg.mxu0
        %1052 = vmatprep.subr.bf16.mxu0 0
        %1053 = vmatpush1.bf16.msra.mxu0 %v954
        %1054 = vmatprep.subr.bf16.mxu0 0
        %1055 = vmatpush1.bf16.msra.mxu0 %v951
        %1056 = vmatprep.subr.bf16.mxu0 0
        %1057 = vmatpush1.bf16.msra.mxu0 %v948
        %1058 = vmatprep.subr.bf16.mxu0 0
        %1059 = vmatpush1.bf16.msra.mxu0 %v945
        %1060 = vmatprep.subr.bf16.mxu0 0
        %1061 = vmatpush1.bf16.msra.mxu0 %v942
        %1062 = vmatprep.subr.bf16.mxu0 0
        %1063 = vmatpush1.bf16.msra.mxu0 %v939
        %1064 = vmatprep.subr.bf16.mxu0 0
        %1065 = vmatpush1.bf16.msra.mxu0 %v936
        %1066 = vmatprep.subr.bf16.mxu0 0
        %1067 = vmatpush1.bf16.msra.mxu0 %v933
        %1068 = vmatprep.subr.bf16.mxu0 0
        %1069 = vmatpush2.bf16.msra.mxu0 0
        %1070 = vmatprep.subr.bf16.mxu0 0
        %1071 = vmatpush2.bf16.msra.mxu0 0
        %1072 = vmatprep.subr.bf16.mxu0 0
        %1073 = vmatpush2.bf16.msra.mxu0 0
        %1074 = vmatprep.subr.bf16.mxu0 0
        %1075 = vmatpush2.bf16.msra.mxu0 0
        %1076 = vmatprep.subr.bf16.mxu0 0
        %1077 = vmatpush2.bf16.msra.mxu0 0
        %1078 = vmatprep.subr.bf16.mxu0 0
        %1079 = vmatpush2.bf16.msra.mxu0 0
        %1080 = vmatprep.subr.bf16.mxu0 0
        %1081 = vmatpush2.bf16.msra.mxu0 0
        %1082 = vmatprep.subr.bf16.mxu0 0
        %1083 = vmatpush2.bf16.msra.mxu0 0
        %1084 = vmatprep.mubr.bf16.mxu0 0
        %1085 = vmatmul.mubr.bf16.gmra.mxu0 %v798
        %v1086 = vpop.f32.mrf.mxu0
        %v1087 = vadd.f32 %v847, %v1086
        %v1088 = vpop.f32.mrf.mxu0
        %v1089 = vpop.f32.mrf.mxu0
        %v1090 = vadd.f32 %v847, %v1089
        %v1091 = vpop.f32.mrf.mxu0
        %1092 = vmatprep.mubr.bf16.mxu0 0
        %1093 = vmatmul.mubr.bf16.gmra.mxu0 %v799
        %v1094 = vpop.f32.mrf.mxu0
        %v1095 = vadd.f32 %v847, %v1094
        %v1096 = vpop.f32.mrf.mxu0
        %v1097 = vpop.f32.mrf.mxu0
        %v1098 = vadd.f32 %v847, %v1097
        %v1099 = vpop.f32.mrf.mxu0
        %1100 = vmatprep.mubr.bf16.mxu0 0
        %1101 = vmatmul.mubr.bf16.gmra.mxu0 %v800
        %v1102 = vpop.f32.mrf.mxu0
        %v1103 = vadd.f32 %v847, %v1102
        %v1104 = vpop.f32.mrf.mxu0
        %v1105 = vpop.f32.mrf.mxu0
        %v1106 = vadd.f32 %v847, %v1105
        %v1107 = vpop.f32.mrf.mxu0
        %1108 = vmatprep.mubr.bf16.mxu0 0
        %1109 = vmatmul.mubr.bf16.gmra.mxu0 %v801
        %v1110 = vpop.f32.mrf.mxu0
        %v1111 = vadd.f32 %v847, %v1110
        %v1112 = vpop.f32.mrf.mxu0
        %v1113 = vpop.f32.mrf.mxu0
        %v1114 = vadd.f32 %v847, %v1113
        %v1115 = vpop.f32.mrf.mxu0
        %1116 = vdwg.mxu0
        %v1117 = vld [vmem:[#allocation11] sm:$0xf]
        %v1118 = vld [vmem:[#allocation11 + $0x4] sm:$0xf]
        %v1119 = vld [vmem:[#allocation11 + $0x8] sm:$0xf]
        %v1120 = vld [vmem:[#allocation11 + $0xc] sm:$0xf]
        %v1121 = vld [vmem:[#allocation11 + $0x10] sm:$0xf]
        %v1122 = vld [vmem:[#allocation11 + $0x14] sm:$0xf]
        %v1123 = vld [vmem:[#allocation11 + $0x18] sm:$0xf]
        %v1124 = vld [vmem:[#allocation11 + $0x1c] sm:$0xf]
        %v1125 = vld [vmem:[#allocation11 + $0x20] sm:$0xf]
        %v1126 = vld [vmem:[#allocation11 + $0x24] sm:$0xf]
        %v1127 = vld [vmem:[#allocation11 + $0x28] sm:$0xf]
        %v1128 = vld [vmem:[#allocation11 + $0x2c] sm:$0xf]
        %v1129 = vld [vmem:[#allocation11 + $0x30] sm:$0xf]
        %v1130 = vld [vmem:[#allocation11 + $0x34] sm:$0xf]
        %v1131 = vld [vmem:[#allocation11 + $0x38] sm:$0xf]
        %v1132 = vld [vmem:[#allocation11 + $0x3c] sm:$0xf]
        %v1133 = vld [vmem:[%s536] sm:$0x1]
        %vm1134 = vcmp.eq.f32.partialorder %v1133, 0.0
        %v1135 = vpack.c.bf16 %v1018, %v1014
        %v1136 = vpack.c.bf16 %v1020, %v1016
        %v1137 = vpack.c.bf16 %v1090, %v1087
        %vm1138 = vcmask 261120
        %v1140 = vsel %vm1138, %v1135, 0
        %v1143 = vsel %vm1138, %v1136, 0
        %1145 = vmatprep.subr.bf16.mxu0 0
        %1146 = vmatpush1.bf16.xpose.msra.mxu0 0
        %1147 = vmatprep.subr.bf16.mxu0 0
        %1148 = vmatpush1.bf16.xpose.msra.mxu0 0
        %1149 = vmatprep.subr.bf16.mxu0 0
        %1150 = vmatpush1.bf16.xpose.msra.mxu0 0
        %1151 = vmatprep.subr.bf16.mxu0 0
        %1152 = vmatpush1.bf16.xpose.msra.mxu0 0
        %1153 = vmatprep.subr.bf16.mxu0 0
        %1154 = vmatpush1.bf16.xpose.msra.mxu0 0
        %1155 = vmatprep.subr.bf16.mxu0 0
        %1156 = vmatpush1.bf16.xpose.msra.mxu0 0
        %1157 = vmatprep.subr.bf16.mxu0 0
        %1158 = vmatpush1.bf16.xpose.msra.mxu0 0
        %1159 = vmatprep.subr.bf16.mxu0 0
        %1160 = vmatpush1.bf16.xpose.msra.mxu0 %v1143
        %1161 = vmatprep.subr.bf16.mxu0 0
        %1162 = vmatpush2.bf16.xpose.msra.mxu0 0
        %1163 = vmatprep.subr.bf16.mxu0 0
        %1164 = vmatpush2.bf16.xpose.msra.mxu0 0
        %1165 = vmatprep.subr.bf16.mxu0 0
        %1166 = vmatpush2.bf16.xpose.msra.mxu0 0
        %1167 = vmatprep.subr.bf16.mxu0 0
        %1168 = vmatpush2.bf16.xpose.msra.mxu0 0
        %1169 = vmatprep.subr.bf16.mxu0 0
        %1170 = vmatpush2.bf16.xpose.msra.mxu0 0
        %1171 = vmatprep.subr.bf16.mxu0 0
        %1172 = vmatpush2.bf16.xpose.msra.mxu0 0
        %1173 = vmatprep.subr.bf16.mxu0 0
        %1174 = vmatpush2.bf16.xpose.msra.mxu0 0
        %1175 = vmatprep.subr.bf16.mxu0 0
        %1176 = vmatpush2.bf16.xpose.msra.mxu0 0
        %1177 = vmatprep.mubr.bf16.mxu0 0
        %1178 = vmatmul.mubr.bf16.gmra.mxu0 %v1140
        %v1179 = vpop.f32.mrf.mxu0
        %v1180 = vadd.f32 0.0, %v1179
        %v1181 = vpop.f32.mrf.mxu0
        %v1182 = vpop.f32.mrf.mxu0
        %v1183 = vadd.f32 0.0, %v1182
        %v1184 = vpop.f32.mrf.mxu0
        %1185 = vdwg.mxu0
        %v1186 = vmul.f32 %v1180, 0.17677669
        %v1187 = vmul.f32 %v1183, 0.17677669
        %v1188 = vsel %vm1134, 1, 0
        %v1189 = vlaneseq
        %v1190 = vshrl.u32 %v1189, 7
        %v1191 = vsub.s32 0, %v1190
        %v1192 = vrot.slane %v1188, %v1191
        %vm1193 = vcmp.eq.s32.totalorder %v1192, 1
        %v1194 = vsel %vm1193, -1e+09, %v1186
        %v1195 = vsel %vm1193, -1e+09, %v1187
        %vm1196 = vcmask 130048
        %v1197 = vsel %vm1196, %v1194, -inf
        %1198 = vmax.xlane.f32.xlu0 %v1197
        %v1199 = vpop.xlane.xlu0 %1198
        %v1200 = vsel %vm1196, %v1195, -inf
        %1201 = vmax.xlane.f32.xlu0 %v1200
        %v1202 = vpop.xlane.xlu0 %1201
        %v1203 = vsub.f32 %v1194, %v1199
        %v1204 = vsub.f32 %v1195, %v1202
        %v1205 = vmul.f32 %v1203, 1.442695
        %v1206 = vpow.pop %v1205
        %v1207 = vmul.f32 %v1204, 1.442695
        %v1208 = vpow.pop %v1207
        %v1209 = vsel %vm1196, %v1206, 0.0
        %1210 = vadd.xlane.f32.xlu0 %v1209
        %v1211 = vpop.xlane.xlu0 %1210
        %v1212 = vsel %vm1196, %v1208, 0.0
        %1213 = vadd.xlane.f32.xlu0 %v1212
        %v1214 = vpop.xlane.xlu0 %1213
        %v1215 = vrcp.pop %v1211
        %v1216 = vrcp.pop %v1214
        %v1217 = vmul.f32 %v1206, %v1215
        %v1218 = vmul.f32 %v1208, %v1216
        %v1219 = vpack.c.bf16 %v1218, %v1217
        %v1221 = vsel %vm1196, %v1219, 0
        %1223 = vmatprep.subr.bf16.mxu0 0
        %1224 = vmatpush1.bf16.msra.mxu0 0
        %1225 = vmatprep.subr.bf16.mxu0 0
        %1226 = vmatpush1.bf16.msra.mxu0 0
        %1227 = vmatprep.subr.bf16.mxu0 0
        %1228 = vmatpush1.bf16.msra.mxu0 0
        %1229 = vmatprep.subr.bf16.mxu0 0
        %1230 = vmatpush1.bf16.msra.mxu0 0
        %1231 = vmatprep.subr.bf16.mxu0 0
        %1232 = vmatpush1.bf16.msra.mxu0 0
        %1233 = vmatprep.subr.bf16.mxu0 0
        %1234 = vmatpush1.bf16.msra.mxu0 0
        %1235 = vmatprep.subr.bf16.mxu0 0
        %1236 = vmatpush1.bf16.msra.mxu0 0
        %1237 = vmatprep.subr.bf16.mxu0 0
        %1238 = vmatpush1.bf16.msra.mxu0 %v1137
        %1239 = vmatprep.subr.bf16.mxu0 0
        %1240 = vmatpush2.bf16.msra.mxu0 0
        %1241 = vmatprep.subr.bf16.mxu0 0
        %1242 = vmatpush2.bf16.msra.mxu0 0
        %1243 = vmatprep.subr.bf16.mxu0 0
        %1244 = vmatpush2.bf16.msra.mxu0 0
        %1245 = vmatprep.subr.bf16.mxu0 0
        %1246 = vmatpush2.bf16.msra.mxu0 0
        %1247 = vmatprep.subr.bf16.mxu0 0
        %1248 = vmatpush2.bf16.msra.mxu0 0
        %1249 = vmatprep.subr.bf16.mxu0 0
        %1250 = vmatpush2.bf16.msra.mxu0 0
        %1251 = vmatprep.subr.bf16.mxu0 0
        %1252 = vmatpush2.bf16.msra.mxu0 0
        %1253 = vmatprep.subr.bf16.mxu0 0
        %1254 = vmatpush2.bf16.msra.mxu0 0
        %1255 = vmatprep.mubr.bf16.mxu0 0
        %1256 = vmatmul.mubr.bf16.gmra.mxu0 %v1221
        %v1257 = vpop.f32.mrf.mxu0
        %v1258 = vadd.f32 0.0, %v1257
        %v1259 = vpop.f32.mrf.mxu0
        %v1260 = vpop.f32.mrf.mxu0
        %v1261 = vadd.f32 0.0, %v1260
        %v1262 = vpop.f32.mrf.mxu0
        %1263 = vdwg.mxu0
        %v1264 = vpack.c.bf16 %v1261, %v1258
        %1266 = vrot.lane.b32.xlu0 %v1135, 96
        %v1267 = vpop.permute.xlu0 %1266
        %1269 = vrot.lane.b32.xlu0 %v1136, 96
        %v1270 = vpop.permute.xlu0 %1269
        %v1272 = vsel %vm1138, %v1267, 0
        %v1275 = vsel %vm1138, %v1270, 0
        %1277 = vmatprep.subr.bf16.mxu0 0
        %1278 = vmatpush1.bf16.xpose.msra.mxu0 0
        %1279 = vmatprep.subr.bf16.mxu0 0
        %1280 = vmatpush1.bf16.xpose.msra.mxu0 0
        %1281 = vmatprep.subr.bf16.mxu0 0
        %1282 = vmatpush1.bf16.xpose.msra.mxu0 0
        %1283 = vmatprep.subr.bf16.mxu0 0
        %1284 = vmatpush1.bf16.xpose.msra.mxu0 0
        %1285 = vmatprep.subr.bf16.mxu0 0
        %1286 = vmatpush1.bf16.xpose.msra.mxu0 0
        %1287 = vmatprep.subr.bf16.mxu0 0
        %1288 = vmatpush1.bf16.xpose.msra.mxu0 0
        %1289 = vmatprep.subr.bf16.mxu0 0
        %1290 = vmatpush1.bf16.xpose.msra.mxu0 0
        %1291 = vmatprep.subr.bf16.mxu0 0
        %1292 = vmatpush1.bf16.xpose.msra.mxu0 %v1275
        %1293 = vmatprep.subr.bf16.mxu0 0
        %1294 = vmatpush2.bf16.xpose.msra.mxu0 0
        %1295 = vmatprep.subr.bf16.mxu0 0
        %1296 = vmatpush2.bf16.xpose.msra.mxu0 0
        %1297 = vmatprep.subr.bf16.mxu0 0
        %1298 = vmatpush2.bf16.xpose.msra.mxu0 0
        %1299 = vmatprep.subr.bf16.mxu0 0
        %1300 = vmatpush2.bf16.xpose.msra.mxu0 0
        %1301 = vmatprep.subr.bf16.mxu0 0
        %1302 = vmatpush2.bf16.xpose.msra.mxu0 0
        %1303 = vmatprep.subr.bf16.mxu0 0
        %1304 = vmatpush2.bf16.xpose.msra.mxu0 0
        %1305 = vmatprep.subr.bf16.mxu0 0
        %1306 = vmatpush2.bf16.xpose.msra.mxu0 0
        %1307 = vmatprep.subr.bf16.mxu0 0
        %1308 = vmatpush2.bf16.xpose.msra.mxu0 0
        %1309 = vmatprep.mubr.bf16.mxu0 0
        %1310 = vmatmul.mubr.bf16.gmra.mxu0 %v1272
        %v1311 = vpop.f32.mrf.mxu0
        %v1312 = vadd.f32 0.0, %v1311
        %v1313 = vpop.f32.mrf.mxu0
        %v1314 = vpop.f32.mrf.mxu0
        %v1315 = vadd.f32 0.0, %v1314
        %v1316 = vpop.f32.mrf.mxu0
        %1317 = vdwg.mxu0
        %v1318 = vmul.f32 %v1312, 0.17677669
        %v1319 = vmul.f32 %v1315, 0.17677669
        %v1320 = vsel %vm1193, -1e+09, %v1318
        %v1321 = vsel %vm1193, -1e+09, %v1319
        %v1322 = vsel %vm1196, %v1320, -inf
        %1323 = vmax.xlane.f32.xlu0 %v1322
        %v1324 = vpop.xlane.xlu0 %1323
        %v1325 = vsel %vm1196, %v1321, -inf
        %1326 = vmax.xlane.f32.xlu0 %v1325
        %v1327 = vpop.xlane.xlu0 %1326
        %v1328 = vsub.f32 %v1320, %v1324
        %v1329 = vsub.f32 %v1321, %v1327
        %v1330 = vmul.f32 %v1328, 1.442695
        %v1331 = vpow.pop %v1330
        %v1332 = vmul.f32 %v1329, 1.442695
        %v1333 = vpow.pop %v1332
        %v1334 = vsel %vm1196, %v1331, 0.0
        %1335 = vadd.xlane.f32.xlu0 %v1334
        %v1336 = vpop.xlane.xlu0 %1335
        %v1337 = vsel %vm1196, %v1333, 0.0
        %1338 = vadd.xlane.f32.xlu0 %v1337
        %v1339 = vpop.xlane.xlu0 %1338
        %v1340 = vrcp.pop %v1336
        %v1341 = vrcp.pop %v1339
        %v1342 = vmul.f32 %v1331, %v1340
        %v1343 = vmul.f32 %v1333, %v1341
        %v1344 = vpack.c.bf16 %v1343, %v1342
        %1346 = vrot.lane.b32.xlu0 %v1137, 96
        %v1347 = vpop.permute.xlu0 %1346
        %v1350 = vsel %vm1196, %v1344, 0
        %1352 = vmatprep.subr.bf16.mxu0 0
        %1353 = vmatpush1.bf16.msra.mxu0 0
        %1354 = vmatprep.subr.bf16.mxu0 0
        %1355 = vmatpush1.bf16.msra.mxu0 0
        %1356 = vmatprep.subr.bf16.mxu0 0
        %1357 = vmatpush1.bf16.msra.mxu0 0
        %1358 = vmatprep.subr.bf16.mxu0 0
        %1359 = vmatpush1.bf16.msra.mxu0 0
        %1360 = vmatprep.subr.bf16.mxu0 0
        %1361 = vmatpush1.bf16.msra.mxu0 0
        %1362 = vmatprep.subr.bf16.mxu0 0
        %1363 = vmatpush1.bf16.msra.mxu0 0
        %1364 = vmatprep.subr.bf16.mxu0 0
        %1365 = vmatpush1.bf16.msra.mxu0 0
        %1366 = vmatprep.subr.bf16.mxu0 0
        %1367 = vmatpush1.bf16.msra.mxu0 %v1347
        %1368 = vmatprep.subr.bf16.mxu0 0
        %1369 = vmatpush2.bf16.msra.mxu0 0
        %1370 = vmatprep.subr.bf16.mxu0 0
        %1371 = vmatpush2.bf16.msra.mxu0 0
        %1372 = vmatprep.subr.bf16.mxu0 0
        %1373 = vmatpush2.bf16.msra.mxu0 0
        %1374 = vmatprep.subr.bf16.mxu0 0
        %1375 = vmatpush2.bf16.msra.mxu0 0
        %1376 = vmatprep.subr.bf16.mxu0 0
        %1377 = vmatpush2.bf16.msra.mxu0 0
        %1378 = vmatprep.subr.bf16.mxu0 0
        %1379 = vmatpush2.bf16.msra.mxu0 0
        %1380 = vmatprep.subr.bf16.mxu0 0
        %1381 = vmatpush2.bf16.msra.mxu0 0
        %1382 = vmatprep.subr.bf16.mxu0 0
        %1383 = vmatpush2.bf16.msra.mxu0 0
        %1384 = vmatprep.mubr.bf16.mxu0 0
        %1385 = vmatmul.mubr.bf16.gmra.mxu0 %v1350
        %v1386 = vpop.f32.mrf.mxu0
        %v1387 = vadd.f32 0.0, %v1386
        %v1388 = vpop.f32.mrf.mxu0
        %v1389 = vpop.f32.mrf.mxu0
        %v1390 = vadd.f32 0.0, %v1389
        %v1391 = vpop.f32.mrf.mxu0
        %1392 = vdwg.mxu0
        %v1393 = vpack.c.bf16 %v1390, %v1387
        %v1398 = vunpack.c.l.b16 %v1121
        %v1399 = vunpack.c.l.b16 %v1122
        %v1400 = vunpack.c.l.b16 %v1123
        %v1401 = vunpack.c.l.b16 %v1124
        %v1402 = vpack.c.b16 %v1399, %v1398
        %v1403 = vpack.c.b16 %v1401, %v1400
        %v1407 = vsel %vm1138, %v1393, 0
        %1409 = vmatprep.subr.bf16.mxu0 0
        %1410 = vmatpush1.bf16.msra.mxu0 0
        %1411 = vmatprep.subr.bf16.mxu0 0
        %1412 = vmatpush1.bf16.msra.mxu0 0
        %1413 = vmatprep.subr.bf16.mxu0 0
        %1414 = vmatpush1.bf16.msra.mxu0 0
        %1415 = vmatprep.subr.bf16.mxu0 0
        %1416 = vmatpush1.bf16.msra.mxu0 0
        %1417 = vmatprep.subr.bf16.mxu0 0
        %1418 = vmatpush1.bf16.msra.mxu0 0
        %1419 = vmatprep.subr.bf16.mxu0 0
        %1420 = vmatpush1.bf16.msra.mxu0 0
        %1421 = vmatprep.subr.bf16.mxu0 0
        %1422 = vmatpush1.bf16.msra.mxu0 %v1403
        %1423 = vmatprep.subr.bf16.mxu0 0
        %1424 = vmatpush1.bf16.msra.mxu0 %v1402
        %1425 = vmatprep.subr.bf16.mxu0 0
        %1426 = vmatpush2.bf16.msra.mxu0 0
        %1427 = vmatprep.subr.bf16.mxu0 0
        %1428 = vmatpush2.bf16.msra.mxu0 0
        %1429 = vmatprep.subr.bf16.mxu0 0
        %1430 = vmatpush2.bf16.msra.mxu0 0
        %1431 = vmatprep.subr.bf16.mxu0 0
        %1432 = vmatpush2.bf16.msra.mxu0 0
        %1433 = vmatprep.subr.bf16.mxu0 0
        %1434 = vmatpush2.bf16.msra.mxu0 0
        %1435 = vmatprep.subr.bf16.mxu0 0
        %1436 = vmatpush2.bf16.msra.mxu0 0
        %1437 = vmatprep.subr.bf16.mxu0 0
        %1438 = vmatpush2.bf16.msra.mxu0 0
        %1439 = vmatprep.subr.bf16.mxu0 0
        %1440 = vmatpush2.bf16.msra.mxu0 0
        %1441 = vmatprep.mubr.bf16.mxu0 0
        %1442 = vmatmul.mubr.bf16.gmra.mxu0 %v1407
        %v1443 = vpop.f32.mrf.mxu0
        %v1444 = vadd.f32 0.0, %v1443
        %v1445 = vpop.f32.mrf.mxu0
        %v1446 = vpop.f32.mrf.mxu0
        %v1447 = vadd.f32 0.0, %v1446
        %v1448 = vpop.f32.mrf.mxu0
        %1449 = vdwg.mxu0
        %v1454 = vunpack.c.l.b16 %v1117
        %v1455 = vunpack.c.l.b16 %v1118
        %v1456 = vunpack.c.l.b16 %v1119
        %v1457 = vunpack.c.l.b16 %v1120
        %v1458 = vpack.c.b16 %v1455, %v1454
        %v1459 = vpack.c.b16 %v1457, %v1456
        %v1463 = vsel %vm1138, %v1264, 0
        %1465 = vmatprep.subr.bf16.mxu0 0
        %1466 = vmatpush1.bf16.msra.mxu0 0
        %1467 = vmatprep.subr.bf16.mxu0 0
        %1468 = vmatpush1.bf16.msra.mxu0 0
        %1469 = vmatprep.subr.bf16.mxu0 0
        %1470 = vmatpush1.bf16.msra.mxu0 0
        %1471 = vmatprep.subr.bf16.mxu0 0
        %1472 = vmatpush1.bf16.msra.mxu0 0
        %1473 = vmatprep.subr.bf16.mxu0 0
        %1474 = vmatpush1.bf16.msra.mxu0 0
        %1475 = vmatprep.subr.bf16.mxu0 0
        %1476 = vmatpush1.bf16.msra.mxu0 0
        %1477 = vmatprep.subr.bf16.mxu0 0
        %1478 = vmatpush1.bf16.msra.mxu0 %v1459
        %1479 = vmatprep.subr.bf16.mxu0 0
        %1480 = vmatpush1.bf16.msra.mxu0 %v1458
        %1481 = vmatprep.subr.bf16.mxu0 0
        %1482 = vmatpush2.bf16.msra.mxu0 0
        %1483 = vmatprep.subr.bf16.mxu0 0
        %1484 = vmatpush2.bf16.msra.mxu0 0
        %1485 = vmatprep.subr.bf16.mxu0 0
        %1486 = vmatpush2.bf16.msra.mxu0 0
        %1487 = vmatprep.subr.bf16.mxu0 0
        %1488 = vmatpush2.bf16.msra.mxu0 0
        %1489 = vmatprep.subr.bf16.mxu0 0
        %1490 = vmatpush2.bf16.msra.mxu0 0
        %1491 = vmatprep.subr.bf16.mxu0 0
        %1492 = vmatpush2.bf16.msra.mxu0 0
        %1493 = vmatprep.subr.bf16.mxu0 0
        %1494 = vmatpush2.bf16.msra.mxu0 0
        %1495 = vmatprep.subr.bf16.mxu0 0
        %1496 = vmatpush2.bf16.msra.mxu0 0
        %1497 = vmatprep.mubr.bf16.mxu0 0
        %1498 = vmatmul.mubr.bf16.gmra.mxu0 %v1463
        %v1499 = vpop.f32.mrf.mxu0
        %v1500 = vadd.f32 %v1444, %v1499
        %v1501 = vpop.f32.mrf.mxu0
        %v1502 = vpop.f32.mrf.mxu0
        %v1503 = vadd.f32 %v1447, %v1502
        %v1504 = vpop.f32.mrf.mxu0
        %1505 = vdwg.mxu0
        %1506 = vrot.lane.b32.xlu0 %v1135, 64
        %v1507 = vpop.permute.xlu0 %1506
        %1508 = vrot.lane.b32.xlu0 %v1136, 64
        %v1509 = vpop.permute.xlu0 %1508
        %v1511 = vsel %vm1138, %v1507, 0
        %v1514 = vsel %vm1138, %v1509, 0
        %1516 = vmatprep.subr.bf16.mxu0 0
        %1517 = vmatpush1.bf16.xpose.msra.mxu0 0
        %1518 = vmatprep.subr.bf16.mxu0 0
        %1519 = vmatpush1.bf16.xpose.msra.mxu0 0
        %1520 = vmatprep.subr.bf16.mxu0 0
        %1521 = vmatpush1.bf16.xpose.msra.mxu0 0
        %1522 = vmatprep.subr.bf16.mxu0 0
        %1523 = vmatpush1.bf16.xpose.msra.mxu0 0
        %1524 = vmatprep.subr.bf16.mxu0 0
        %1525 = vmatpush1.bf16.xpose.msra.mxu0 0
        %1526 = vmatprep.subr.bf16.mxu0 0
        %1527 = vmatpush1.bf16.xpose.msra.mxu0 0
        %1528 = vmatprep.subr.bf16.mxu0 0
        %1529 = vmatpush1.bf16.xpose.msra.mxu0 0
        %1530 = vmatprep.subr.bf16.mxu0 0
        %1531 = vmatpush1.bf16.xpose.msra.mxu0 %v1514
        %1532 = vmatprep.subr.bf16.mxu0 0
        %1533 = vmatpush2.bf16.xpose.msra.mxu0 0
        %1534 = vmatprep.subr.bf16.mxu0 0
        %1535 = vmatpush2.bf16.xpose.msra.mxu0 0
        %1536 = vmatprep.subr.bf16.mxu0 0
        %1537 = vmatpush2.bf16.xpose.msra.mxu0 0
        %1538 = vmatprep.subr.bf16.mxu0 0
        %1539 = vmatpush2.bf16.xpose.msra.mxu0 0
        %1540 = vmatprep.subr.bf16.mxu0 0
        %1541 = vmatpush2.bf16.xpose.msra.mxu0 0
        %1542 = vmatprep.subr.bf16.mxu0 0
        %1543 = vmatpush2.bf16.xpose.msra.mxu0 0
        %1544 = vmatprep.subr.bf16.mxu0 0
        %1545 = vmatpush2.bf16.xpose.msra.mxu0 0
        %1546 = vmatprep.subr.bf16.mxu0 0
        %1547 = vmatpush2.bf16.xpose.msra.mxu0 0
        %1548 = vmatprep.mubr.bf16.mxu0 0
        %1549 = vmatmul.mubr.bf16.gmra.mxu0 %v1511
        %v1550 = vpop.f32.mrf.mxu0
        %v1551 = vadd.f32 0.0, %v1550
        %v1552 = vpop.f32.mrf.mxu0
        %v1553 = vpop.f32.mrf.mxu0
        %v1554 = vadd.f32 0.0, %v1553
        %v1555 = vpop.f32.mrf.mxu0
        %1556 = vdwg.mxu0
        %v1557 = vmul.f32 %v1551, 0.17677669
        %v1558 = vmul.f32 %v1554, 0.17677669
        %v1559 = vsel %vm1193, -1e+09, %v1557
        %v1560 = vsel %vm1193, -1e+09, %v1558
        %v1561 = vsel %vm1196, %v1559, -inf
        %1562 = vmax.xlane.f32.xlu0 %v1561
        %v1563 = vpop.xlane.xlu0 %1562
        %v1564 = vsel %vm1196, %v1560, -inf
        %1565 = vmax.xlane.f32.xlu0 %v1564
        %v1566 = vpop.xlane.xlu0 %1565
        %v1567 = vsub.f32 %v1559, %v1563
        %v1568 = vsub.f32 %v1560, %v1566
        %v1569 = vmul.f32 %v1567, 1.442695
        %v1570 = vpow.pop %v1569
        %v1571 = vmul.f32 %v1568, 1.442695
        %v1572 = vpow.pop %v1571
        %v1573 = vsel %vm1196, %v1570, 0.0
        %1574 = vadd.xlane.f32.xlu0 %v1573
        %v1575 = vpop.xlane.xlu0 %1574
        %v1576 = vsel %vm1196, %v1572, 0.0
        %1577 = vadd.xlane.f32.xlu0 %v1576
        %v1578 = vpop.xlane.xlu0 %1577
        %v1579 = vrcp.pop %v1575
        %v1580 = vrcp.pop %v1578
        %v1581 = vmul.f32 %v1570, %v1579
        %v1582 = vmul.f32 %v1572, %v1580
        %v1583 = vpack.c.bf16 %v1582, %v1581
        %1584 = vrot.lane.b32.xlu0 %v1137, 64
        %v1585 = vpop.permute.xlu0 %1584
        %v1588 = vsel %vm1196, %v1583, 0
        %1590 = vmatprep.subr.bf16.mxu0 0
        %1591 = vmatpush1.bf16.msra.mxu0 0
        %1592 = vmatprep.subr.bf16.mxu0 0
        %1593 = vmatpush1.bf16.msra.mxu0 0
        %1594 = vmatprep.subr.bf16.mxu0 0
        %1595 = vmatpush1.bf16.msra.mxu0 0
        %1596 = vmatprep.subr.bf16.mxu0 0
        %1597 = vmatpush1.bf16.msra.mxu0 0
        %1598 = vmatprep.subr.bf16.mxu0 0
        %1599 = vmatpush1.bf16.msra.mxu0 0
        %1600 = vmatprep.subr.bf16.mxu0 0
        %1601 = vmatpush1.bf16.msra.mxu0 0
        %1602 = vmatprep.subr.bf16.mxu0 0
        %1603 = vmatpush1.bf16.msra.mxu0 0
        %1604 = vmatprep.subr.bf16.mxu0 0
        %1605 = vmatpush1.bf16.msra.mxu0 %v1585
        %1606 = vmatprep.subr.bf16.mxu0 0
        %1607 = vmatpush2.bf16.msra.mxu0 0
        %1608 = vmatprep.subr.bf16.mxu0 0
        %1609 = vmatpush2.bf16.msra.mxu0 0
        %1610 = vmatprep.subr.bf16.mxu0 0
        %1611 = vmatpush2.bf16.msra.mxu0 0
        %1612 = vmatprep.subr.bf16.mxu0 0
        %1613 = vmatpush2.bf16.msra.mxu0 0
        %1614 = vmatprep.subr.bf16.mxu0 0
        %1615 = vmatpush2.bf16.msra.mxu0 0
        %1616 = vmatprep.subr.bf16.mxu0 0
        %1617 = vmatpush2.bf16.msra.mxu0 0
        %1618 = vmatprep.subr.bf16.mxu0 0
        %1619 = vmatpush2.bf16.msra.mxu0 0
        %1620 = vmatprep.subr.bf16.mxu0 0
        %1621 = vmatpush2.bf16.msra.mxu0 0
        %1622 = vmatprep.mubr.bf16.mxu0 0
        %1623 = vmatmul.mubr.bf16.gmra.mxu0 %v1588
        %v1624 = vpop.f32.mrf.mxu0
        %v1625 = vadd.f32 0.0, %v1624
        %v1626 = vpop.f32.mrf.mxu0
        %v1627 = vpop.f32.mrf.mxu0
        %v1628 = vadd.f32 0.0, %v1627
        %v1629 = vpop.f32.mrf.mxu0
        %1630 = vdwg.mxu0
        %v1631 = vpack.c.bf16 %v1628, %v1625
        %v1636 = vunpack.c.l.b16 %v1125
        %v1637 = vunpack.c.l.b16 %v1126
        %v1638 = vunpack.c.l.b16 %v1127
        %v1639 = vunpack.c.l.b16 %v1128
        %v1640 = vpack.c.b16 %v1637, %v1636
        %v1641 = vpack.c.b16 %v1639, %v1638
        %v1645 = vsel %vm1138, %v1631, 0
        %1647 = vmatprep.subr.bf16.mxu0 0
        %1648 = vmatpush1.bf16.msra.mxu0 0
        %1649 = vmatprep.subr.bf16.mxu0 0
        %1650 = vmatpush1.bf16.msra.mxu0 0
        %1651 = vmatprep.subr.bf16.mxu0 0
        %1652 = vmatpush1.bf16.msra.mxu0 0
        %1653 = vmatprep.subr.bf16.mxu0 0
        %1654 = vmatpush1.bf16.msra.mxu0 0
        %1655 = vmatprep.subr.bf16.mxu0 0
        %1656 = vmatpush1.bf16.msra.mxu0 0
        %1657 = vmatprep.subr.bf16.mxu0 0
        %1658 = vmatpush1.bf16.msra.mxu0 0
        %1659 = vmatprep.subr.bf16.mxu0 0
        %1660 = vmatpush1.bf16.msra.mxu0 %v1641
        %1661 = vmatprep.subr.bf16.mxu0 0
        %1662 = vmatpush1.bf16.msra.mxu0 %v1640
        %1663 = vmatprep.subr.bf16.mxu0 0
        %1664 = vmatpush2.bf16.msra.mxu0 0
        %1665 = vmatprep.subr.bf16.mxu0 0
        %1666 = vmatpush2.bf16.msra.mxu0 0
        %1667 = vmatprep.subr.bf16.mxu0 0
        %1668 = vmatpush2.bf16.msra.mxu0 0
        %1669 = vmatprep.subr.bf16.mxu0 0
        %1670 = vmatpush2.bf16.msra.mxu0 0
        %1671 = vmatprep.subr.bf16.mxu0 0
        %1672 = vmatpush2.bf16.msra.mxu0 0
        %1673 = vmatprep.subr.bf16.mxu0 0
        %1674 = vmatpush2.bf16.msra.mxu0 0
        %1675 = vmatprep.subr.bf16.mxu0 0
        %1676 = vmatpush2.bf16.msra.mxu0 0
        %1677 = vmatprep.subr.bf16.mxu0 0
        %1678 = vmatpush2.bf16.msra.mxu0 0
        %1679 = vmatprep.mubr.bf16.mxu0 0
        %1680 = vmatmul.mubr.bf16.gmra.mxu0 %v1645
        %v1681 = vpop.f32.mrf.mxu0
        %v1682 = vadd.f32 0.0, %v1681
        %v1683 = vpop.f32.mrf.mxu0
        %v1684 = vpop.f32.mrf.mxu0
        %v1685 = vadd.f32 0.0, %v1684
        %v1686 = vpop.f32.mrf.mxu0
        %1687 = vdwg.mxu0
        %v1688 = vadd.f32 %v1500, %v1682
        %v1689 = vadd.f32 %v1503, %v1685
        %1690 = vrot.lane.b32.xlu0 %v1135, 32
        %v1691 = vpop.permute.xlu0 %1690
        %1692 = vrot.lane.b32.xlu0 %v1136, 32
        %v1693 = vpop.permute.xlu0 %1692
        %v1695 = vsel %vm1138, %v1691, 0
        %v1698 = vsel %vm1138, %v1693, 0
        %1700 = vmatprep.subr.bf16.mxu0 0
        %1701 = vmatpush1.bf16.xpose.msra.mxu0 0
        %1702 = vmatprep.subr.bf16.mxu0 0
        %1703 = vmatpush1.bf16.xpose.msra.mxu0 0
        %1704 = vmatprep.subr.bf16.mxu0 0
        %1705 = vmatpush1.bf16.xpose.msra.mxu0 0
        %1706 = vmatprep.subr.bf16.mxu0 0
        %1707 = vmatpush1.bf16.xpose.msra.mxu0 0
        %1708 = vmatprep.subr.bf16.mxu0 0
        %1709 = vmatpush1.bf16.xpose.msra.mxu0 0
        %1710 = vmatprep.subr.bf16.mxu0 0
        %1711 = vmatpush1.bf16.xpose.msra.mxu0 0
        %1712 = vmatprep.subr.bf16.mxu0 0
        %1713 = vmatpush1.bf16.xpose.msra.mxu0 0
        %1714 = vmatprep.subr.bf16.mxu0 0
        %1715 = vmatpush1.bf16.xpose.msra.mxu0 %v1698
        %1716 = vmatprep.subr.bf16.mxu0 0
        %1717 = vmatpush2.bf16.xpose.msra.mxu0 0
        %1718 = vmatprep.subr.bf16.mxu0 0
        %1719 = vmatpush2.bf16.xpose.msra.mxu0 0
        %1720 = vmatprep.subr.bf16.mxu0 0
        %1721 = vmatpush2.bf16.xpose.msra.mxu0 0
        %1722 = vmatprep.subr.bf16.mxu0 0
        %1723 = vmatpush2.bf16.xpose.msra.mxu0 0
        %1724 = vmatprep.subr.bf16.mxu0 0
        %1725 = vmatpush2.bf16.xpose.msra.mxu0 0
        %1726 = vmatprep.subr.bf16.mxu0 0
        %1727 = vmatpush2.bf16.xpose.msra.mxu0 0
        %1728 = vmatprep.subr.bf16.mxu0 0
        %1729 = vmatpush2.bf16.xpose.msra.mxu0 0
        %1730 = vmatprep.subr.bf16.mxu0 0
        %1731 = vmatpush2.bf16.xpose.msra.mxu0 0
        %1732 = vmatprep.mubr.bf16.mxu0 0
        %1733 = vmatmul.mubr.bf16.gmra.mxu0 %v1695
        %v1734 = vpop.f32.mrf.mxu0
        %v1735 = vadd.f32 0.0, %v1734
        %v1736 = vpop.f32.mrf.mxu0
        %v1737 = vpop.f32.mrf.mxu0
        %v1738 = vadd.f32 0.0, %v1737
        %v1739 = vpop.f32.mrf.mxu0
        %1740 = vdwg.mxu0
        %v1741 = vmul.f32 %v1735, 0.17677669
        %v1742 = vmul.f32 %v1738, 0.17677669
        %v1743 = vsel %vm1193, -1e+09, %v1741
        %v1744 = vsel %vm1193, -1e+09, %v1742
        %v1745 = vsel %vm1196, %v1743, -inf
        %1746 = vmax.xlane.f32.xlu0 %v1745
        %v1747 = vpop.xlane.xlu0 %1746
        %v1748 = vsel %vm1196, %v1744, -inf
        %1749 = vmax.xlane.f32.xlu0 %v1748
        %v1750 = vpop.xlane.xlu0 %1749
        %v1751 = vsub.f32 %v1743, %v1747
        %v1752 = vsub.f32 %v1744, %v1750
        %v1753 = vmul.f32 %v1751, 1.442695
        %v1754 = vpow.pop %v1753
        %v1755 = vmul.f32 %v1752, 1.442695
        %v1756 = vpow.pop %v1755
        %v1757 = vsel %vm1196, %v1754, 0.0
        %1758 = vadd.xlane.f32.xlu0 %v1757
        %v1759 = vpop.xlane.xlu0 %1758
        %v1760 = vsel %vm1196, %v1756, 0.0
        %1761 = vadd.xlane.f32.xlu0 %v1760
        %v1762 = vpop.xlane.xlu0 %1761
        %v1763 = vrcp.pop %v1759
        %v1764 = vrcp.pop %v1762
        %v1765 = vmul.f32 %v1754, %v1763
        %v1766 = vmul.f32 %v1756, %v1764
        %v1767 = vpack.c.bf16 %v1766, %v1765
        %1768 = vrot.lane.b32.xlu0 %v1137, 32
        %v1769 = vpop.permute.xlu0 %1768
        %v1772 = vsel %vm1196, %v1767, 0
        %1774 = vmatprep.subr.bf16.mxu0 0
        %1775 = vmatpush1.bf16.msra.mxu0 0
        %1776 = vmatprep.subr.bf16.mxu0 0
        %1777 = vmatpush1.bf16.msra.mxu0 0
        %1778 = vmatprep.subr.bf16.mxu0 0
        %1779 = vmatpush1.bf16.msra.mxu0 0
        %1780 = vmatprep.subr.bf16.mxu0 0
        %1781 = vmatpush1.bf16.msra.mxu0 0
        %1782 = vmatprep.subr.bf16.mxu0 0
        %1783 = vmatpush1.bf16.msra.mxu0 0
        %1784 = vmatprep.subr.bf16.mxu0 0
        %1785 = vmatpush1.bf16.msra.mxu0 0
        %1786 = vmatprep.subr.bf16.mxu0 0
        %1787 = vmatpush1.bf16.msra.mxu0 0
        %1788 = vmatprep.subr.bf16.mxu0 0
        %1789 = vmatpush1.bf16.msra.mxu0 %v1769
        %1790 = vmatprep.subr.bf16.mxu0 0
        %1791 = vmatpush2.bf16.msra.mxu0 0
        %1792 = vmatprep.subr.bf16.mxu0 0
        %1793 = vmatpush2.bf16.msra.mxu0 0
        %1794 = vmatprep.subr.bf16.mxu0 0
        %1795 = vmatpush2.bf16.msra.mxu0 0
        %1796 = vmatprep.subr.bf16.mxu0 0
        %1797 = vmatpush2.bf16.msra.mxu0 0
        %1798 = vmatprep.subr.bf16.mxu0 0
        %1799 = vmatpush2.bf16.msra.mxu0 0
        %1800 = vmatprep.subr.bf16.mxu0 0
        %1801 = vmatpush2.bf16.msra.mxu0 0
        %1802 = vmatprep.subr.bf16.mxu0 0
        %1803 = vmatpush2.bf16.msra.mxu0 0
        %1804 = vmatprep.subr.bf16.mxu0 0
        %1805 = vmatpush2.bf16.msra.mxu0 0
        %1806 = vmatprep.mubr.bf16.mxu0 0
        %1807 = vmatmul.mubr.bf16.gmra.mxu0 %v1772
        %v1808 = vpop.f32.mrf.mxu0
        %v1809 = vadd.f32 0.0, %v1808
        %v1810 = vpop.f32.mrf.mxu0
        %v1811 = vpop.f32.mrf.mxu0
        %v1812 = vadd.f32 0.0, %v1811
        %v1813 = vpop.f32.mrf.mxu0
        %1814 = vdwg.mxu0
        %v1815 = vpack.c.bf16 %v1812, %v1809
        %v1820 = vunpack.c.l.b16 %v1129
        %v1821 = vunpack.c.l.b16 %v1130
        %v1822 = vunpack.c.l.b16 %v1131
        %v1823 = vunpack.c.l.b16 %v1132
        %v1824 = vpack.c.b16 %v1821, %v1820
        %v1825 = vpack.c.b16 %v1823, %v1822
        %v1829 = vsel %vm1138, %v1815, 0
        %1831 = vmatprep.subr.bf16.mxu0 0
        %1832 = vmatpush1.bf16.msra.mxu0 0
        %1833 = vmatprep.subr.bf16.mxu0 0
        %1834 = vmatpush1.bf16.msra.mxu0 0
        %1835 = vmatprep.subr.bf16.mxu0 0
        %1836 = vmatpush1.bf16.msra.mxu0 0
        %1837 = vmatprep.subr.bf16.mxu0 0
        %1838 = vmatpush1.bf16.msra.mxu0 0
        %1839 = vmatprep.subr.bf16.mxu0 0
        %1840 = vmatpush1.bf16.msra.mxu0 0
        %1841 = vmatprep.subr.bf16.mxu0 0
        %1842 = vmatpush1.bf16.msra.mxu0 0
        %1843 = vmatprep.subr.bf16.mxu0 0
        %1844 = vmatpush1.bf16.msra.mxu0 %v1825
        %1845 = vmatprep.subr.bf16.mxu0 0
        %1846 = vmatpush1.bf16.msra.mxu0 %v1824
        %1847 = vmatprep.subr.bf16.mxu0 0
        %1848 = vmatpush2.bf16.msra.mxu0 0
        %1849 = vmatprep.subr.bf16.mxu0 0
        %1850 = vmatpush2.bf16.msra.mxu0 0
        %1851 = vmatprep.subr.bf16.mxu0 0
        %1852 = vmatpush2.bf16.msra.mxu0 0
        %1853 = vmatprep.subr.bf16.mxu0 0
        %1854 = vmatpush2.bf16.msra.mxu0 0
        %1855 = vmatprep.subr.bf16.mxu0 0
        %1856 = vmatpush2.bf16.msra.mxu0 0
        %1857 = vmatprep.subr.bf16.mxu0 0
        %1858 = vmatpush2.bf16.msra.mxu0 0
        %1859 = vmatprep.subr.bf16.mxu0 0
        %1860 = vmatpush2.bf16.msra.mxu0 0
        %1861 = vmatprep.subr.bf16.mxu0 0
        %1862 = vmatpush2.bf16.msra.mxu0 0
        %1863 = vmatprep.mubr.bf16.mxu0 0
        %1864 = vmatmul.mubr.bf16.gmra.mxu0 %v1829
        %v1865 = vpop.f32.mrf.mxu0
        %v1866 = vadd.f32 0.0, %v1865
        %v1867 = vpop.f32.mrf.mxu0
        %v1868 = vpop.f32.mrf.mxu0
        %v1869 = vadd.f32 0.0, %v1868
        %v1870 = vpop.f32.mrf.mxu0
        %1871 = vdwg.mxu0
        %v1872 = vadd.f32 %v1688, %v1866
        %v1873 = vadd.f32 %v1689, %v1869
        %s1874 = scalar_lea.vmem %s536, 1 [#allocation5]
        %v1875 = vld [vmem:[%s1874] sm:$0x1]
        %vm1876 = vcmp.eq.f32.partialorder %v1875, 0.0
        %v1877 = vpack.c.bf16 %v1028, %v1024
        %v1878 = vpack.c.bf16 %v1030, %v1026
        %v1879 = vpack.c.bf16 %v1098, %v1095
        %v1881 = vsel %vm1138, %v1877, 0
        %v1884 = vsel %vm1138, %v1878, 0
        %1886 = vmatprep.subr.bf16.mxu0 0
        %1887 = vmatpush1.bf16.xpose.msra.mxu0 0
        %1888 = vmatprep.subr.bf16.mxu0 0
        %1889 = vmatpush1.bf16.xpose.msra.mxu0 0
        %1890 = vmatprep.subr.bf16.mxu0 0
        %1891 = vmatpush1.bf16.xpose.msra.mxu0 0
        %1892 = vmatprep.subr.bf16.mxu0 0
        %1893 = vmatpush1.bf16.xpose.msra.mxu0 0
        %1894 = vmatprep.subr.bf16.mxu0 0
        %1895 = vmatpush1.bf16.xpose.msra.mxu0 0
        %1896 = vmatprep.subr.bf16.mxu0 0
        %1897 = vmatpush1.bf16.xpose.msra.mxu0 0
        %1898 = vmatprep.subr.bf16.mxu0 0
        %1899 = vmatpush1.bf16.xpose.msra.mxu0 0
        %1900 = vmatprep.subr.bf16.mxu0 0
        %1901 = vmatpush1.bf16.xpose.msra.mxu0 %v1884
        %1902 = vmatprep.subr.bf16.mxu0 0
        %1903 = vmatpush2.bf16.xpose.msra.mxu0 0
        %1904 = vmatprep.subr.bf16.mxu0 0
        %1905 = vmatpush2.bf16.xpose.msra.mxu0 0
        %1906 = vmatprep.subr.bf16.mxu0 0
        %1907 = vmatpush2.bf16.xpose.msra.mxu0 0
        %1908 = vmatprep.subr.bf16.mxu0 0
        %1909 = vmatpush2.bf16.xpose.msra.mxu0 0
        %1910 = vmatprep.subr.bf16.mxu0 0
        %1911 = vmatpush2.bf16.xpose.msra.mxu0 0
        %1912 = vmatprep.subr.bf16.mxu0 0
        %1913 = vmatpush2.bf16.xpose.msra.mxu0 0
        %1914 = vmatprep.subr.bf16.mxu0 0
        %1915 = vmatpush2.bf16.xpose.msra.mxu0 0
        %1916 = vmatprep.subr.bf16.mxu0 0
        %1917 = vmatpush2.bf16.xpose.msra.mxu0 0
        %1918 = vmatprep.mubr.bf16.mxu0 0
        %1919 = vmatmul.mubr.bf16.gmra.mxu0 %v1881
        %v1920 = vpop.f32.mrf.mxu0
        %v1921 = vadd.f32 0.0, %v1920
        %v1922 = vpop.f32.mrf.mxu0
        %v1923 = vpop.f32.mrf.mxu0
        %v1924 = vadd.f32 0.0, %v1923
        %v1925 = vpop.f32.mrf.mxu0
        %1926 = vdwg.mxu0
        %v1927 = vmul.f32 %v1921, 0.17677669
        %v1928 = vmul.f32 %v1924, 0.17677669
        %v1929 = vsel %vm1876, 1, 0
        %v1930 = vlaneseq
        %v1931 = vshrl.u32 %v1930, 7
        %v1932 = vsub.s32 0, %v1931
        %v1933 = vrot.slane %v1929, %v1932
        %vm1934 = vcmp.eq.s32.totalorder %v1933, 1
        %v1935 = vsel %vm1934, -1e+09, %v1927
        %v1936 = vsel %vm1934, -1e+09, %v1928
        %v1937 = vsel %vm1196, %v1935, -inf
        %1938 = vmax.xlane.f32.xlu0 %v1937
        %v1939 = vpop.xlane.xlu0 %1938
        %v1940 = vsel %vm1196, %v1936, -inf
        %1941 = vmax.xlane.f32.xlu0 %v1940
        %v1942 = vpop.xlane.xlu0 %1941
        %v1943 = vsub.f32 %v1935, %v1939
        %v1944 = vsub.f32 %v1936, %v1942
        %v1945 = vmul.f32 %v1943, 1.442695
        %v1946 = vpow.pop %v1945
        %v1947 = vmul.f32 %v1944, 1.442695
        %v1948 = vpow.pop %v1947
        %v1949 = vsel %vm1196, %v1946, 0.0
        %1950 = vadd.xlane.f32.xlu0 %v1949
        %v1951 = vpop.xlane.xlu0 %1950
        %v1952 = vsel %vm1196, %v1948, 0.0
        %1953 = vadd.xlane.f32.xlu0 %v1952
        %v1954 = vpop.xlane.xlu0 %1953
        %v1955 = vrcp.pop %v1951
        %v1956 = vrcp.pop %v1954
        %v1957 = vmul.f32 %v1946, %v1955
        %v1958 = vmul.f32 %v1948, %v1956
        %v1959 = vpack.c.bf16 %v1958, %v1957
        %v1961 = vsel %vm1196, %v1959, 0
        %1963 = vmatprep.subr.bf16.mxu0 0
        %1964 = vmatpush1.bf16.msra.mxu0 0
        %1965 = vmatprep.subr.bf16.mxu0 0
        %1966 = vmatpush1.bf16.msra.mxu0 0
        %1967 = vmatprep.subr.bf16.mxu0 0
        %1968 = vmatpush1.bf16.msra.mxu0 0
        %1969 = vmatprep.subr.bf16.mxu0 0
        %1970 = vmatpush1.bf16.msra.mxu0 0
        %1971 = vmatprep.subr.bf16.mxu0 0
        %1972 = vmatpush1.bf16.msra.mxu0 0
        %1973 = vmatprep.subr.bf16.mxu0 0
        %1974 = vmatpush1.bf16.msra.mxu0 0
        %1975 = vmatprep.subr.bf16.mxu0 0
        %1976 = vmatpush1.bf16.msra.mxu0 0
        %1977 = vmatprep.subr.bf16.mxu0 0
        %1978 = vmatpush1.bf16.msra.mxu0 %v1879
        %1979 = vmatprep.subr.bf16.mxu0 0
        %1980 = vmatpush2.bf16.msra.mxu0 0
        %1981 = vmatprep.subr.bf16.mxu0 0
        %1982 = vmatpush2.bf16.msra.mxu0 0
        %1983 = vmatprep.subr.bf16.mxu0 0
        %1984 = vmatpush2.bf16.msra.mxu0 0
        %1985 = vmatprep.subr.bf16.mxu0 0
        %1986 = vmatpush2.bf16.msra.mxu0 0
        %1987 = vmatprep.subr.bf16.mxu0 0
        %1988 = vmatpush2.bf16.msra.mxu0 0
        %1989 = vmatprep.subr.bf16.mxu0 0
        %1990 = vmatpush2.bf16.msra.mxu0 0
        %1991 = vmatprep.subr.bf16.mxu0 0
        %1992 = vmatpush2.bf16.msra.mxu0 0
        %1993 = vmatprep.subr.bf16.mxu0 0
        %1994 = vmatpush2.bf16.msra.mxu0 0
        %1995 = vmatprep.mubr.bf16.mxu0 0
        %1996 = vmatmul.mubr.bf16.gmra.mxu0 %v1961
        %v1997 = vpop.f32.mrf.mxu0
        %v1998 = vadd.f32 0.0, %v1997
        %v1999 = vpop.f32.mrf.mxu0
        %v2000 = vpop.f32.mrf.mxu0
        %v2001 = vadd.f32 0.0, %v2000
        %v2002 = vpop.f32.mrf.mxu0
        %2003 = vdwg.mxu0
        %v2004 = vpack.c.bf16 %v2001, %v1998
        %2006 = vrot.lane.b32.xlu0 %v1877, 96
        %v2007 = vpop.permute.xlu0 %2006
        %2009 = vrot.lane.b32.xlu0 %v1878, 96
        %v2010 = vpop.permute.xlu0 %2009
        %v2012 = vsel %vm1138, %v2007, 0
        %v2015 = vsel %vm1138, %v2010, 0
        %2017 = vmatprep.subr.bf16.mxu0 0
        %2018 = vmatpush1.bf16.xpose.msra.mxu0 0
        %2019 = vmatprep.subr.bf16.mxu0 0
        %2020 = vmatpush1.bf16.xpose.msra.mxu0 0
        %2021 = vmatprep.subr.bf16.mxu0 0
        %2022 = vmatpush1.bf16.xpose.msra.mxu0 0
        %2023 = vmatprep.subr.bf16.mxu0 0
        %2024 = vmatpush1.bf16.xpose.msra.mxu0 0
        %2025 = vmatprep.subr.bf16.mxu0 0
        %2026 = vmatpush1.bf16.xpose.msra.mxu0 0
        %2027 = vmatprep.subr.bf16.mxu0 0
        %2028 = vmatpush1.bf16.xpose.msra.mxu0 0
        %2029 = vmatprep.subr.bf16.mxu0 0
        %2030 = vmatpush1.bf16.xpose.msra.mxu0 0
        %2031 = vmatprep.subr.bf16.mxu0 0
        %2032 = vmatpush1.bf16.xpose.msra.mxu0 %v2015
        %2033 = vmatprep.subr.bf16.mxu0 0
        %2034 = vmatpush2.bf16.xpose.msra.mxu0 0
        %2035 = vmatprep.subr.bf16.mxu0 0
        %2036 = vmatpush2.bf16.xpose.msra.mxu0 0
        %2037 = vmatprep.subr.bf16.mxu0 0
        %2038 = vmatpush2.bf16.xpose.msra.mxu0 0
        %2039 = vmatprep.subr.bf16.mxu0 0
        %2040 = vmatpush2.bf16.xpose.msra.mxu0 0
        %2041 = vmatprep.subr.bf16.mxu0 0
        %2042 = vmatpush2.bf16.xpose.msra.mxu0 0
        %2043 = vmatprep.subr.bf16.mxu0 0
        %2044 = vmatpush2.bf16.xpose.msra.mxu0 0
        %2045 = vmatprep.subr.bf16.mxu0 0
        %2046 = vmatpush2.bf16.xpose.msra.mxu0 0
        %2047 = vmatprep.subr.bf16.mxu0 0
        %2048 = vmatpush2.bf16.xpose.msra.mxu0 0
        %2049 = vmatprep.mubr.bf16.mxu0 0
        %2050 = vmatmul.mubr.bf16.gmra.mxu0 %v2012
        %v2051 = vpop.f32.mrf.mxu0
        %v2052 = vadd.f32 0.0, %v2051
        %v2053 = vpop.f32.mrf.mxu0
        %v2054 = vpop.f32.mrf.mxu0
        %v2055 = vadd.f32 0.0, %v2054
        %v2056 = vpop.f32.mrf.mxu0
        %2057 = vdwg.mxu0
        %v2058 = vmul.f32 %v2052, 0.17677669
        %v2059 = vmul.f32 %v2055, 0.17677669
        %v2060 = vsel %vm1934, -1e+09, %v2058
        %v2061 = vsel %vm1934, -1e+09, %v2059
        %v2062 = vsel %vm1196, %v2060, -inf
        %2063 = vmax.xlane.f32.xlu0 %v2062
        %v2064 = vpop.xlane.xlu0 %2063
        %v2065 = vsel %vm1196, %v2061, -inf
        %2066 = vmax.xlane.f32.xlu0 %v2065
        %v2067 = vpop.xlane.xlu0 %2066
        %v2068 = vsub.f32 %v2060, %v2064
        %v2069 = vsub.f32 %v2061, %v2067
        %v2070 = vmul.f32 %v2068, 1.442695
        %v2071 = vpow.pop %v2070
        %v2072 = vmul.f32 %v2069, 1.442695
        %v2073 = vpow.pop %v2072
        %v2074 = vsel %vm1196, %v2071, 0.0
        %2075 = vadd.xlane.f32.xlu0 %v2074
        %v2076 = vpop.xlane.xlu0 %2075
        %v2077 = vsel %vm1196, %v2073, 0.0
        %2078 = vadd.xlane.f32.xlu0 %v2077
        %v2079 = vpop.xlane.xlu0 %2078
        %v2080 = vrcp.pop %v2076
        %v2081 = vrcp.pop %v2079
        %v2082 = vmul.f32 %v2071, %v2080
        %v2083 = vmul.f32 %v2073, %v2081
        %v2084 = vpack.c.bf16 %v2083, %v2082
        %2086 = vrot.lane.b32.xlu0 %v1879, 96
        %v2087 = vpop.permute.xlu0 %2086
        %v2090 = vsel %vm1196, %v2084, 0
        %2092 = vmatprep.subr.bf16.mxu0 0
        %2093 = vmatpush1.bf16.msra.mxu0 0
        %2094 = vmatprep.subr.bf16.mxu0 0
        %2095 = vmatpush1.bf16.msra.mxu0 0
        %2096 = vmatprep.subr.bf16.mxu0 0
        %2097 = vmatpush1.bf16.msra.mxu0 0
        %2098 = vmatprep.subr.bf16.mxu0 0
        %2099 = vmatpush1.bf16.msra.mxu0 0
        %2100 = vmatprep.subr.bf16.mxu0 0
        %2101 = vmatpush1.bf16.msra.mxu0 0
        %2102 = vmatprep.subr.bf16.mxu0 0
        %2103 = vmatpush1.bf16.msra.mxu0 0
        %2104 = vmatprep.subr.bf16.mxu0 0
        %2105 = vmatpush1.bf16.msra.mxu0 0
        %2106 = vmatprep.subr.bf16.mxu0 0
        %2107 = vmatpush1.bf16.msra.mxu0 %v2087
        %2108 = vmatprep.subr.bf16.mxu0 0
        %2109 = vmatpush2.bf16.msra.mxu0 0
        %2110 = vmatprep.subr.bf16.mxu0 0
        %2111 = vmatpush2.bf16.msra.mxu0 0
        %2112 = vmatprep.subr.bf16.mxu0 0
        %2113 = vmatpush2.bf16.msra.mxu0 0
        %2114 = vmatprep.subr.bf16.mxu0 0
        %2115 = vmatpush2.bf16.msra.mxu0 0
        %2116 = vmatprep.subr.bf16.mxu0 0
        %2117 = vmatpush2.bf16.msra.mxu0 0
        %2118 = vmatprep.subr.bf16.mxu0 0
        %2119 = vmatpush2.bf16.msra.mxu0 0
        %2120 = vmatprep.subr.bf16.mxu0 0
        %2121 = vmatpush2.bf16.msra.mxu0 0
        %2122 = vmatprep.subr.bf16.mxu0 0
        %2123 = vmatpush2.bf16.msra.mxu0 0
        %2124 = vmatprep.mubr.bf16.mxu0 0
        %2125 = vmatmul.mubr.bf16.gmra.mxu0 %v2090
        %v2126 = vpop.f32.mrf.mxu0
        %v2127 = vadd.f32 0.0, %v2126
        %v2128 = vpop.f32.mrf.mxu0
        %v2129 = vpop.f32.mrf.mxu0
        %v2130 = vadd.f32 0.0, %v2129
        %v2131 = vpop.f32.mrf.mxu0
        %2132 = vdwg.mxu0
        %v2133 = vpack.c.bf16 %v2130, %v2127
        %v2135 = vsel %vm1138, %v2133, 0
        %2137 = vmatprep.subr.bf16.mxu0 0
        %2138 = vmatpush1.bf16.msra.mxu0 0
        %2139 = vmatprep.subr.bf16.mxu0 0
        %2140 = vmatpush1.bf16.msra.mxu0 0
        %2141 = vmatprep.subr.bf16.mxu0 0
        %2142 = vmatpush1.bf16.msra.mxu0 0
        %2143 = vmatprep.subr.bf16.mxu0 0
        %2144 = vmatpush1.bf16.msra.mxu0 0
        %2145 = vmatprep.subr.bf16.mxu0 0
        %2146 = vmatpush1.bf16.msra.mxu0 0
        %2147 = vmatprep.subr.bf16.mxu0 0
        %2148 = vmatpush1.bf16.msra.mxu0 0
        %2149 = vmatprep.subr.bf16.mxu0 0
        %2150 = vmatpush1.bf16.msra.mxu0 %v1403
        %2151 = vmatprep.subr.bf16.mxu0 0
        %2152 = vmatpush1.bf16.msra.mxu0 %v1402
        %2153 = vmatprep.subr.bf16.mxu0 0
        %2154 = vmatpush2.bf16.msra.mxu0 0
        %2155 = vmatprep.subr.bf16.mxu0 0
        %2156 = vmatpush2.bf16.msra.mxu0 0
        %2157 = vmatprep.subr.bf16.mxu0 0
        %2158 = vmatpush2.bf16.msra.mxu0 0
        %2159 = vmatprep.subr.bf16.mxu0 0
        %2160 = vmatpush2.bf16.msra.mxu0 0
        %2161 = vmatprep.subr.bf16.mxu0 0
        %2162 = vmatpush2.bf16.msra.mxu0 0
        %2163 = vmatprep.subr.bf16.mxu0 0
        %2164 = vmatpush2.bf16.msra.mxu0 0
        %2165 = vmatprep.subr.bf16.mxu0 0
        %2166 = vmatpush2.bf16.msra.mxu0 0
        %2167 = vmatprep.subr.bf16.mxu0 0
        %2168 = vmatpush2.bf16.msra.mxu0 0
        %2169 = vmatprep.mubr.bf16.mxu0 0
        %2170 = vmatmul.mubr.bf16.gmra.mxu0 %v2135
        %v2171 = vpop.f32.mrf.mxu0
        %v2172 = vadd.f32 0.0, %v2171
        %v2173 = vpop.f32.mrf.mxu0
        %v2174 = vpop.f32.mrf.mxu0
        %v2175 = vadd.f32 0.0, %v2174
        %v2176 = vpop.f32.mrf.mxu0
        %2177 = vdwg.mxu0
        %v2179 = vsel %vm1138, %v2004, 0
        %2181 = vmatprep.subr.bf16.mxu0 0
        %2182 = vmatpush1.bf16.msra.mxu0 0
        %2183 = vmatprep.subr.bf16.mxu0 0
        %2184 = vmatpush1.bf16.msra.mxu0 0
        %2185 = vmatprep.subr.bf16.mxu0 0
        %2186 = vmatpush1.bf16.msra.mxu0 0
        %2187 = vmatprep.subr.bf16.mxu0 0
        %2188 = vmatpush1.bf16.msra.mxu0 0
        %2189 = vmatprep.subr.bf16.mxu0 0
        %2190 = vmatpush1.bf16.msra.mxu0 0
        %2191 = vmatprep.subr.bf16.mxu0 0
        %2192 = vmatpush1.bf16.msra.mxu0 0
        %2193 = vmatprep.subr.bf16.mxu0 0
        %2194 = vmatpush1.bf16.msra.mxu0 %v1459
        %2195 = vmatprep.subr.bf16.mxu0 0
        %2196 = vmatpush1.bf16.msra.mxu0 %v1458
        %2197 = vmatprep.subr.bf16.mxu0 0
        %2198 = vmatpush2.bf16.msra.mxu0 0
        %2199 = vmatprep.subr.bf16.mxu0 0
        %2200 = vmatpush2.bf16.msra.mxu0 0
        %2201 = vmatprep.subr.bf16.mxu0 0
        %2202 = vmatpush2.bf16.msra.mxu0 0
        %2203 = vmatprep.subr.bf16.mxu0 0
        %2204 = vmatpush2.bf16.msra.mxu0 0
        %2205 = vmatprep.subr.bf16.mxu0 0
        %2206 = vmatpush2.bf16.msra.mxu0 0
        %2207 = vmatprep.subr.bf16.mxu0 0
        %2208 = vmatpush2.bf16.msra.mxu0 0
        %2209 = vmatprep.subr.bf16.mxu0 0
        %2210 = vmatpush2.bf16.msra.mxu0 0
        %2211 = vmatprep.subr.bf16.mxu0 0
        %2212 = vmatpush2.bf16.msra.mxu0 0
        %2213 = vmatprep.mubr.bf16.mxu0 0
        %2214 = vmatmul.mubr.bf16.gmra.mxu0 %v2179
        %v2215 = vpop.f32.mrf.mxu0
        %v2216 = vadd.f32 %v2172, %v2215
        %v2217 = vpop.f32.mrf.mxu0
        %v2218 = vpop.f32.mrf.mxu0
        %v2219 = vadd.f32 %v2175, %v2218
        %v2220 = vpop.f32.mrf.mxu0
        %2221 = vdwg.mxu0
        %2222 = vrot.lane.b32.xlu0 %v1877, 64
        %v2223 = vpop.permute.xlu0 %2222
        %2224 = vrot.lane.b32.xlu0 %v1878, 64
        %v2225 = vpop.permute.xlu0 %2224
        %v2227 = vsel %vm1138, %v2223, 0
        %v2230 = vsel %vm1138, %v2225, 0
        %2232 = vmatprep.subr.bf16.mxu0 0
        %2233 = vmatpush1.bf16.xpose.msra.mxu0 0
        %2234 = vmatprep.subr.bf16.mxu0 0
        %2235 = vmatpush1.bf16.xpose.msra.mxu0 0
        %2236 = vmatprep.subr.bf16.mxu0 0
        %2237 = vmatpush1.bf16.xpose.msra.mxu0 0
        %2238 = vmatprep.subr.bf16.mxu0 0
        %2239 = vmatpush1.bf16.xpose.msra.mxu0 0
        %2240 = vmatprep.subr.bf16.mxu0 0
        %2241 = vmatpush1.bf16.xpose.msra.mxu0 0
        %2242 = vmatprep.subr.bf16.mxu0 0
        %2243 = vmatpush1.bf16.xpose.msra.mxu0 0
        %2244 = vmatprep.subr.bf16.mxu0 0
        %2245 = vmatpush1.bf16.xpose.msra.mxu0 0
        %2246 = vmatprep.subr.bf16.mxu0 0
        %2247 = vmatpush1.bf16.xpose.msra.mxu0 %v2230
        %2248 = vmatprep.subr.bf16.mxu0 0
        %2249 = vmatpush2.bf16.xpose.msra.mxu0 0
        %2250 = vmatprep.subr.bf16.mxu0 0
        %2251 = vmatpush2.bf16.xpose.msra.mxu0 0
        %2252 = vmatprep.subr.bf16.mxu0 0
        %2253 = vmatpush2.bf16.xpose.msra.mxu0 0
        %2254 = vmatprep.subr.bf16.mxu0 0
        %2255 = vmatpush2.bf16.xpose.msra.mxu0 0
        %2256 = vmatprep.subr.bf16.mxu0 0
        %2257 = vmatpush2.bf16.xpose.msra.mxu0 0
        %2258 = vmatprep.subr.bf16.mxu0 0
        %2259 = vmatpush2.bf16.xpose.msra.mxu0 0
        %2260 = vmatprep.subr.bf16.mxu0 0
        %2261 = vmatpush2.bf16.xpose.msra.mxu0 0
        %2262 = vmatprep.subr.bf16.mxu0 0
        %2263 = vmatpush2.bf16.xpose.msra.mxu0 0
        %2264 = vmatprep.mubr.bf16.mxu0 0
        %2265 = vmatmul.mubr.bf16.gmra.mxu0 %v2227
        %v2266 = vpop.f32.mrf.mxu0
        %v2267 = vadd.f32 0.0, %v2266
        %v2268 = vpop.f32.mrf.mxu0
        %v2269 = vpop.f32.mrf.mxu0
        %v2270 = vadd.f32 0.0, %v2269
        %v2271 = vpop.f32.mrf.mxu0
        %2272 = vdwg.mxu0
        %v2273 = vmul.f32 %v2267, 0.17677669
        %v2274 = vmul.f32 %v2270, 0.17677669
        %v2275 = vsel %vm1934, -1e+09, %v2273
        %v2276 = vsel %vm1934, -1e+09, %v2274
        %v2277 = vsel %vm1196, %v2275, -inf
        %2278 = vmax.xlane.f32.xlu0 %v2277
        %v2279 = vpop.xlane.xlu0 %2278
        %v2280 = vsel %vm1196, %v2276, -inf
        %2281 = vmax.xlane.f32.xlu0 %v2280
        %v2282 = vpop.xlane.xlu0 %2281
        %v2283 = vsub.f32 %v2275, %v2279
        %v2284 = vsub.f32 %v2276, %v2282
        %v2285 = vmul.f32 %v2283, 1.442695
        %v2286 = vpow.pop %v2285
        %v2287 = vmul.f32 %v2284, 1.442695
        %v2288 = vpow.pop %v2287
        %v2289 = vsel %vm1196, %v2286, 0.0
        %2290 = vadd.xlane.f32.xlu0 %v2289
        %v2291 = vpop.xlane.xlu0 %2290
        %v2292 = vsel %vm1196, %v2288, 0.0
        %2293 = vadd.xlane.f32.xlu0 %v2292
        %v2294 = vpop.xlane.xlu0 %2293
        %v2295 = vrcp.pop %v2291
        %v2296 = vrcp.pop %v2294
        %v2297 = vmul.f32 %v2286, %v2295
        %v2298 = vmul.f32 %v2288, %v2296
        %v2299 = vpack.c.bf16 %v2298, %v2297
        %2300 = vrot.lane.b32.xlu0 %v1879, 64
        %v2301 = vpop.permute.xlu0 %2300
        %v2304 = vsel %vm1196, %v2299, 0
        %2306 = vmatprep.subr.bf16.mxu0 0
        %2307 = vmatpush1.bf16.msra.mxu0 0
        %2308 = vmatprep.subr.bf16.mxu0 0
        %2309 = vmatpush1.bf16.msra.mxu0 0
        %2310 = vmatprep.subr.bf16.mxu0 0
        %2311 = vmatpush1.bf16.msra.mxu0 0
        %2312 = vmatprep.subr.bf16.mxu0 0
        %2313 = vmatpush1.bf16.msra.mxu0 0
        %2314 = vmatprep.subr.bf16.mxu0 0
        %2315 = vmatpush1.bf16.msra.mxu0 0
        %2316 = vmatprep.subr.bf16.mxu0 0
        %2317 = vmatpush1.bf16.msra.mxu0 0
        %2318 = vmatprep.subr.bf16.mxu0 0
        %2319 = vmatpush1.bf16.msra.mxu0 0
        %2320 = vmatprep.subr.bf16.mxu0 0
        %2321 = vmatpush1.bf16.msra.mxu0 %v2301
        %2322 = vmatprep.subr.bf16.mxu0 0
        %2323 = vmatpush2.bf16.msra.mxu0 0
        %2324 = vmatprep.subr.bf16.mxu0 0
        %2325 = vmatpush2.bf16.msra.mxu0 0
        %2326 = vmatprep.subr.bf16.mxu0 0
        %2327 = vmatpush2.bf16.msra.mxu0 0
        %2328 = vmatprep.subr.bf16.mxu0 0
        %2329 = vmatpush2.bf16.msra.mxu0 0
        %2330 = vmatprep.subr.bf16.mxu0 0
        %2331 = vmatpush2.bf16.msra.mxu0 0
        %2332 = vmatprep.subr.bf16.mxu0 0
        %2333 = vmatpush2.bf16.msra.mxu0 0
        %2334 = vmatprep.subr.bf16.mxu0 0
        %2335 = vmatpush2.bf16.msra.mxu0 0
        %2336 = vmatprep.subr.bf16.mxu0 0
        %2337 = vmatpush2.bf16.msra.mxu0 0
        %2338 = vmatprep.mubr.bf16.mxu0 0
        %2339 = vmatmul.mubr.bf16.gmra.mxu0 %v2304
        %v2340 = vpop.f32.mrf.mxu0
        %v2341 = vadd.f32 0.0, %v2340
        %v2342 = vpop.f32.mrf.mxu0
        %v2343 = vpop.f32.mrf.mxu0
        %v2344 = vadd.f32 0.0, %v2343
        %v2345 = vpop.f32.mrf.mxu0
        %2346 = vdwg.mxu0
        %v2347 = vpack.c.bf16 %v2344, %v2341
        %v2349 = vsel %vm1138, %v2347, 0
        %2351 = vmatprep.subr.bf16.mxu0 0
        %2352 = vmatpush1.bf16.msra.mxu0 0
        %2353 = vmatprep.subr.bf16.mxu0 0
        %2354 = vmatpush1.bf16.msra.mxu0 0
        %2355 = vmatprep.subr.bf16.mxu0 0
        %2356 = vmatpush1.bf16.msra.mxu0 0
        %2357 = vmatprep.subr.bf16.mxu0 0
        %2358 = vmatpush1.bf16.msra.mxu0 0
        %2359 = vmatprep.subr.bf16.mxu0 0
        %2360 = vmatpush1.bf16.msra.mxu0 0
        %2361 = vmatprep.subr.bf16.mxu0 0
        %2362 = vmatpush1.bf16.msra.mxu0 0
        %2363 = vmatprep.subr.bf16.mxu0 0
        %2364 = vmatpush1.bf16.msra.mxu0 %v1641
        %2365 = vmatprep.subr.bf16.mxu0 0
        %2366 = vmatpush1.bf16.msra.mxu0 %v1640
        %2367 = vmatprep.subr.bf16.mxu0 0
        %2368 = vmatpush2.bf16.msra.mxu0 0
        %2369 = vmatprep.subr.bf16.mxu0 0
        %2370 = vmatpush2.bf16.msra.mxu0 0
        %2371 = vmatprep.subr.bf16.mxu0 0
        %2372 = vmatpush2.bf16.msra.mxu0 0
        %2373 = vmatprep.subr.bf16.mxu0 0
        %2374 = vmatpush2.bf16.msra.mxu0 0
        %2375 = vmatprep.subr.bf16.mxu0 0
        %2376 = vmatpush2.bf16.msra.mxu0 0
        %2377 = vmatprep.subr.bf16.mxu0 0
        %2378 = vmatpush2.bf16.msra.mxu0 0
        %2379 = vmatprep.subr.bf16.mxu0 0
        %2380 = vmatpush2.bf16.msra.mxu0 0
        %2381 = vmatprep.subr.bf16.mxu0 0
        %2382 = vmatpush2.bf16.msra.mxu0 0
        %2383 = vmatprep.mubr.bf16.mxu0 0
        %2384 = vmatmul.mubr.bf16.gmra.mxu0 %v2349
        %v2385 = vpop.f32.mrf.mxu0
        %v2386 = vadd.f32 0.0, %v2385
        %v2387 = vpop.f32.mrf.mxu0
        %v2388 = vpop.f32.mrf.mxu0
        %v2389 = vadd.f32 0.0, %v2388
        %v2390 = vpop.f32.mrf.mxu0
        %2391 = vdwg.mxu0
        %v2392 = vadd.f32 %v2216, %v2386
        %v2393 = vadd.f32 %v2219, %v2389
        %2394 = vrot.lane.b32.xlu0 %v1877, 32
        %v2395 = vpop.permute.xlu0 %2394
        %2396 = vrot.lane.b32.xlu0 %v1878, 32
        %v2397 = vpop.permute.xlu0 %2396
        %v2399 = vsel %vm1138, %v2395, 0
        %v2402 = vsel %vm1138, %v2397, 0
        %2404 = vmatprep.subr.bf16.mxu0 0
        %2405 = vmatpush1.bf16.xpose.msra.mxu0 0
        %2406 = vmatprep.subr.bf16.mxu0 0
        %2407 = vmatpush1.bf16.xpose.msra.mxu0 0
        %2408 = vmatprep.subr.bf16.mxu0 0
        %2409 = vmatpush1.bf16.xpose.msra.mxu0 0
        %2410 = vmatprep.subr.bf16.mxu0 0
        %2411 = vmatpush1.bf16.xpose.msra.mxu0 0
        %2412 = vmatprep.subr.bf16.mxu0 0
        %2413 = vmatpush1.bf16.xpose.msra.mxu0 0
        %2414 = vmatprep.subr.bf16.mxu0 0
        %2415 = vmatpush1.bf16.xpose.msra.mxu0 0
        %2416 = vmatprep.subr.bf16.mxu0 0
        %2417 = vmatpush1.bf16.xpose.msra.mxu0 0
        %2418 = vmatprep.subr.bf16.mxu0 0
        %2419 = vmatpush1.bf16.xpose.msra.mxu0 %v2402
        %2420 = vmatprep.subr.bf16.mxu0 0
        %2421 = vmatpush2.bf16.xpose.msra.mxu0 0
        %2422 = vmatprep.subr.bf16.mxu0 0
        %2423 = vmatpush2.bf16.xpose.msra.mxu0 0
        %2424 = vmatprep.subr.bf16.mxu0 0
        %2425 = vmatpush2.bf16.xpose.msra.mxu0 0
        %2426 = vmatprep.subr.bf16.mxu0 0
        %2427 = vmatpush2.bf16.xpose.msra.mxu0 0
        %2428 = vmatprep.subr.bf16.mxu0 0
        %2429 = vmatpush2.bf16.xpose.msra.mxu0 0
        %2430 = vmatprep.subr.bf16.mxu0 0
        %2431 = vmatpush2.bf16.xpose.msra.mxu0 0
        %2432 = vmatprep.subr.bf16.mxu0 0
        %2433 = vmatpush2.bf16.xpose.msra.mxu0 0
        %2434 = vmatprep.subr.bf16.mxu0 0
        %2435 = vmatpush2.bf16.xpose.msra.mxu0 0
        %2436 = vmatprep.mubr.bf16.mxu0 0
        %2437 = vmatmul.mubr.bf16.gmra.mxu0 %v2399
        %v2438 = vpop.f32.mrf.mxu0
        %v2439 = vadd.f32 0.0, %v2438
        %v2440 = vpop.f32.mrf.mxu0
        %v2441 = vpop.f32.mrf.mxu0
        %v2442 = vadd.f32 0.0, %v2441
        %v2443 = vpop.f32.mrf.mxu0
        %2444 = vdwg.mxu0
        %v2445 = vmul.f32 %v2439, 0.17677669
        %v2446 = vmul.f32 %v2442, 0.17677669
        %v2447 = vsel %vm1934, -1e+09, %v2445
        %v2448 = vsel %vm1934, -1e+09, %v2446
        %v2449 = vsel %vm1196, %v2447, -inf
        %2450 = vmax.xlane.f32.xlu0 %v2449
        %v2451 = vpop.xlane.xlu0 %2450
        %v2452 = vsel %vm1196, %v2448, -inf
        %2453 = vmax.xlane.f32.xlu0 %v2452
        %v2454 = vpop.xlane.xlu0 %2453
        %v2455 = vsub.f32 %v2447, %v2451
        %v2456 = vsub.f32 %v2448, %v2454
        %v2457 = vmul.f32 %v2455, 1.442695
        %v2458 = vpow.pop %v2457
        %v2459 = vmul.f32 %v2456, 1.442695
        %v2460 = vpow.pop %v2459
        %v2461 = vsel %vm1196, %v2458, 0.0
        %2462 = vadd.xlane.f32.xlu0 %v2461
        %v2463 = vpop.xlane.xlu0 %2462
        %v2464 = vsel %vm1196, %v2460, 0.0
        %2465 = vadd.xlane.f32.xlu0 %v2464
        %v2466 = vpop.xlane.xlu0 %2465
        %v2467 = vrcp.pop %v2463
        %v2468 = vrcp.pop %v2466
        %v2469 = vmul.f32 %v2458, %v2467
        %v2470 = vmul.f32 %v2460, %v2468
        %v2471 = vpack.c.bf16 %v2470, %v2469
        %2472 = vrot.lane.b32.xlu0 %v1879, 32
        %v2473 = vpop.permute.xlu0 %2472
        %v2476 = vsel %vm1196, %v2471, 0
        %2478 = vmatprep.subr.bf16.mxu0 0
        %2479 = vmatpush1.bf16.msra.mxu0 0
        %2480 = vmatprep.subr.bf16.mxu0 0
        %2481 = vmatpush1.bf16.msra.mxu0 0
        %2482 = vmatprep.subr.bf16.mxu0 0
        %2483 = vmatpush1.bf16.msra.mxu0 0
        %2484 = vmatprep.subr.bf16.mxu0 0
        %2485 = vmatpush1.bf16.msra.mxu0 0
        %2486 = vmatprep.subr.bf16.mxu0 0
        %2487 = vmatpush1.bf16.msra.mxu0 0
        %2488 = vmatprep.subr.bf16.mxu0 0
        %2489 = vmatpush1.bf16.msra.mxu0 0
        %2490 = vmatprep.subr.bf16.mxu0 0
        %2491 = vmatpush1.bf16.msra.mxu0 0
        %2492 = vmatprep.subr.bf16.mxu0 0
        %2493 = vmatpush1.bf16.msra.mxu0 %v2473
        %2494 = vmatprep.subr.bf16.mxu0 0
        %2495 = vmatpush2.bf16.msra.mxu0 0
        %2496 = vmatprep.subr.bf16.mxu0 0
        %2497 = vmatpush2.bf16.msra.mxu0 0
        %2498 = vmatprep.subr.bf16.mxu0 0
        %2499 = vmatpush2.bf16.msra.mxu0 0
        %2500 = vmatprep.subr.bf16.mxu0 0
        %2501 = vmatpush2.bf16.msra.mxu0 0
        %2502 = vmatprep.subr.bf16.mxu0 0
        %2503 = vmatpush2.bf16.msra.mxu0 0
        %2504 = vmatprep.subr.bf16.mxu0 0
        %2505 = vmatpush2.bf16.msra.mxu0 0
        %2506 = vmatprep.subr.bf16.mxu0 0
        %2507 = vmatpush2.bf16.msra.mxu0 0
        %2508 = vmatprep.subr.bf16.mxu0 0
        %2509 = vmatpush2.bf16.msra.mxu0 0
        %2510 = vmatprep.mubr.bf16.mxu0 0
        %2511 = vmatmul.mubr.bf16.gmra.mxu0 %v2476
        %v2512 = vpop.f32.mrf.mxu0
        %v2513 = vadd.f32 0.0, %v2512
        %v2514 = vpop.f32.mrf.mxu0
        %v2515 = vpop.f32.mrf.mxu0
        %v2516 = vadd.f32 0.0, %v2515
        %v2517 = vpop.f32.mrf.mxu0
        %2518 = vdwg.mxu0
        %v2519 = vpack.c.bf16 %v2516, %v2513
        %v2521 = vsel %vm1138, %v2519, 0
        %2523 = vmatprep.subr.bf16.mxu0 0
        %2524 = vmatpush1.bf16.msra.mxu0 0
        %2525 = vmatprep.subr.bf16.mxu0 0
        %2526 = vmatpush1.bf16.msra.mxu0 0
        %2527 = vmatprep.subr.bf16.mxu0 0
        %2528 = vmatpush1.bf16.msra.mxu0 0
        %2529 = vmatprep.subr.bf16.mxu0 0
        %2530 = vmatpush1.bf16.msra.mxu0 0
        %2531 = vmatprep.subr.bf16.mxu0 0
        %2532 = vmatpush1.bf16.msra.mxu0 0
        %2533 = vmatprep.subr.bf16.mxu0 0
        %2534 = vmatpush1.bf16.msra.mxu0 0
        %2535 = vmatprep.subr.bf16.mxu0 0
        %2536 = vmatpush1.bf16.msra.mxu0 %v1825
        %2537 = vmatprep.subr.bf16.mxu0 0
        %2538 = vmatpush1.bf16.msra.mxu0 %v1824
        %2539 = vmatprep.subr.bf16.mxu0 0
        %2540 = vmatpush2.bf16.msra.mxu0 0
        %2541 = vmatprep.subr.bf16.mxu0 0
        %2542 = vmatpush2.bf16.msra.mxu0 0
        %2543 = vmatprep.subr.bf16.mxu0 0
        %2544 = vmatpush2.bf16.msra.mxu0 0
        %2545 = vmatprep.subr.bf16.mxu0 0
        %2546 = vmatpush2.bf16.msra.mxu0 0
        %2547 = vmatprep.subr.bf16.mxu0 0
        %2548 = vmatpush2.bf16.msra.mxu0 0
        %2549 = vmatprep.subr.bf16.mxu0 0
        %2550 = vmatpush2.bf16.msra.mxu0 0
        %2551 = vmatprep.subr.bf16.mxu0 0
        %2552 = vmatpush2.bf16.msra.mxu0 0
        %2553 = vmatprep.subr.bf16.mxu0 0
        %2554 = vmatpush2.bf16.msra.mxu0 0
        %2555 = vmatprep.mubr.bf16.mxu0 0
        %2556 = vmatmul.mubr.bf16.gmra.mxu0 %v2521
        %v2557 = vpop.f32.mrf.mxu0
        %v2558 = vadd.f32 0.0, %v2557
        %v2559 = vpop.f32.mrf.mxu0
        %v2560 = vpop.f32.mrf.mxu0
        %v2561 = vadd.f32 0.0, %v2560
        %v2562 = vpop.f32.mrf.mxu0
        %2563 = vdwg.mxu0
        %v2564 = vadd.f32 %v2392, %v2558
        %v2565 = vadd.f32 %v2393, %v2561
        %s2566 = scalar_lea.vmem %s536, 2 [#allocation5]
        %v2567 = vld [vmem:[%s2566] sm:$0x1]
        %vm2568 = vcmp.eq.f32.partialorder %v2567, 0.0
        %v2569 = vpack.c.bf16 %v1038, %v1034
        %v2570 = vpack.c.bf16 %v1040, %v1036
        %v2571 = vpack.c.bf16 %v1106, %v1103
        %v2573 = vsel %vm1138, %v2569, 0
        %v2576 = vsel %vm1138, %v2570, 0
        %2578 = vmatprep.subr.bf16.mxu0 0
        %2579 = vmatpush1.bf16.xpose.msra.mxu0 0
        %2580 = vmatprep.subr.bf16.mxu0 0
        %2581 = vmatpush1.bf16.xpose.msra.mxu0 0
        %2582 = vmatprep.subr.bf16.mxu0 0
        %2583 = vmatpush1.bf16.xpose.msra.mxu0 0
        %2584 = vmatprep.subr.bf16.mxu0 0
        %2585 = vmatpush1.bf16.xpose.msra.mxu0 0
        %2586 = vmatprep.subr.bf16.mxu0 0
        %2587 = vmatpush1.bf16.xpose.msra.mxu0 0
        %2588 = vmatprep.subr.bf16.mxu0 0
        %2589 = vmatpush1.bf16.xpose.msra.mxu0 0
        %2590 = vmatprep.subr.bf16.mxu0 0
        %2591 = vmatpush1.bf16.xpose.msra.mxu0 0
        %2592 = vmatprep.subr.bf16.mxu0 0
        %2593 = vmatpush1.bf16.xpose.msra.mxu0 %v2576
        %2594 = vmatprep.subr.bf16.mxu0 0
        %2595 = vmatpush2.bf16.xpose.msra.mxu0 0
        %2596 = vmatprep.subr.bf16.mxu0 0
        %2597 = vmatpush2.bf16.xpose.msra.mxu0 0
        %2598 = vmatprep.subr.bf16.mxu0 0
        %2599 = vmatpush2.bf16.xpose.msra.mxu0 0
        %2600 = vmatprep.subr.bf16.mxu0 0
        %2601 = vmatpush2.bf16.xpose.msra.mxu0 0
        %2602 = vmatprep.subr.bf16.mxu0 0
        %2603 = vmatpush2.bf16.xpose.msra.mxu0 0
        %2604 = vmatprep.subr.bf16.mxu0 0
        %2605 = vmatpush2.bf16.xpose.msra.mxu0 0
        %2606 = vmatprep.subr.bf16.mxu0 0
        %2607 = vmatpush2.bf16.xpose.msra.mxu0 0
        %2608 = vmatprep.subr.bf16.mxu0 0
        %2609 = vmatpush2.bf16.xpose.msra.mxu0 0
        %2610 = vmatprep.mubr.bf16.mxu0 0
        %2611 = vmatmul.mubr.bf16.gmra.mxu0 %v2573
        %v2612 = vpop.f32.mrf.mxu0
        %v2613 = vadd.f32 0.0, %v2612
        %v2614 = vpop.f32.mrf.mxu0
        %v2615 = vpop.f32.mrf.mxu0
        %v2616 = vadd.f32 0.0, %v2615
        %v2617 = vpop.f32.mrf.mxu0
        %2618 = vdwg.mxu0
        %v2619 = vmul.f32 %v2613, 0.17677669
        %v2620 = vmul.f32 %v2616, 0.17677669
        %v2621 = vsel %vm2568, 1, 0
        %v2622 = vlaneseq
        %v2623 = vshrl.u32 %v2622, 7
        %v2624 = vsub.s32 0, %v2623
        %v2625 = vrot.slane %v2621, %v2624
        %vm2626 = vcmp.eq.s32.totalorder %v2625, 1
        %v2627 = vsel %vm2626, -1e+09, %v2619
        %v2628 = vsel %vm2626, -1e+09, %v2620
        %v2629 = vsel %vm1196, %v2627, -inf
        %2630 = vmax.xlane.f32.xlu0 %v2629
        %v2631 = vpop.xlane.xlu0 %2630
        %v2632 = vsel %vm1196, %v2628, -inf
        %2633 = vmax.xlane.f32.xlu0 %v2632
        %v2634 = vpop.xlane.xlu0 %2633
        %v2635 = vsub.f32 %v2627, %v2631
        %v2636 = vsub.f32 %v2628, %v2634
        %v2637 = vmul.f32 %v2635, 1.442695
        %v2638 = vpow.pop %v2637
        %v2639 = vmul.f32 %v2636, 1.442695
        %v2640 = vpow.pop %v2639
        %v2641 = vsel %vm1196, %v2638, 0.0
        %2642 = vadd.xlane.f32.xlu0 %v2641
        %v2643 = vpop.xlane.xlu0 %2642
        %v2644 = vsel %vm1196, %v2640, 0.0
        %2645 = vadd.xlane.f32.xlu0 %v2644
        %v2646 = vpop.xlane.xlu0 %2645
        %v2647 = vrcp.pop %v2643
        %v2648 = vrcp.pop %v2646
        %v2649 = vmul.f32 %v2638, %v2647
        %v2650 = vmul.f32 %v2640, %v2648
        %v2651 = vpack.c.bf16 %v2650, %v2649
        %v2653 = vsel %vm1196, %v2651, 0
        %2655 = vmatprep.subr.bf16.mxu0 0
        %2656 = vmatpush1.bf16.msra.mxu0 0
        %2657 = vmatprep.subr.bf16.mxu0 0
        %2658 = vmatpush1.bf16.msra.mxu0 0
        %2659 = vmatprep.subr.bf16.mxu0 0
        %2660 = vmatpush1.bf16.msra.mxu0 0
        %2661 = vmatprep.subr.bf16.mxu0 0
        %2662 = vmatpush1.bf16.msra.mxu0 0
        %2663 = vmatprep.subr.bf16.mxu0 0
        %2664 = vmatpush1.bf16.msra.mxu0 0
        %2665 = vmatprep.subr.bf16.mxu0 0
        %2666 = vmatpush1.bf16.msra.mxu0 0
        %2667 = vmatprep.subr.bf16.mxu0 0
        %2668 = vmatpush1.bf16.msra.mxu0 0
        %2669 = vmatprep.subr.bf16.mxu0 0
        %2670 = vmatpush1.bf16.msra.mxu0 %v2571
        %2671 = vmatprep.subr.bf16.mxu0 0
        %2672 = vmatpush2.bf16.msra.mxu0 0
        %2673 = vmatprep.subr.bf16.mxu0 0
        %2674 = vmatpush2.bf16.msra.mxu0 0
        %2675 = vmatprep.subr.bf16.mxu0 0
        %2676 = vmatpush2.bf16.msra.mxu0 0
        %2677 = vmatprep.subr.bf16.mxu0 0
        %2678 = vmatpush2.bf16.msra.mxu0 0
        %2679 = vmatprep.subr.bf16.mxu0 0
        %2680 = vmatpush2.bf16.msra.mxu0 0
        %2681 = vmatprep.subr.bf16.mxu0 0
        %2682 = vmatpush2.bf16.msra.mxu0 0
        %2683 = vmatprep.subr.bf16.mxu0 0
        %2684 = vmatpush2.bf16.msra.mxu0 0
        %2685 = vmatprep.subr.bf16.mxu0 0
        %2686 = vmatpush2.bf16.msra.mxu0 0
        %2687 = vmatprep.mubr.bf16.mxu0 0
        %2688 = vmatmul.mubr.bf16.gmra.mxu0 %v2653
        %v2689 = vpop.f32.mrf.mxu0
        %v2690 = vadd.f32 0.0, %v2689
        %v2691 = vpop.f32.mrf.mxu0
        %v2692 = vpop.f32.mrf.mxu0
        %v2693 = vadd.f32 0.0, %v2692
        %v2694 = vpop.f32.mrf.mxu0
        %2695 = vdwg.mxu0
        %v2696 = vpack.c.bf16 %v2693, %v2690
        %2698 = vrot.lane.b32.xlu0 %v2569, 96
        %v2699 = vpop.permute.xlu0 %2698
        %2701 = vrot.lane.b32.xlu0 %v2570, 96
        %v2702 = vpop.permute.xlu0 %2701
        %v2704 = vsel %vm1138, %v2699, 0
        %v2707 = vsel %vm1138, %v2702, 0
        %2709 = vmatprep.subr.bf16.mxu0 0
        %2710 = vmatpush1.bf16.xpose.msra.mxu0 0
        %2711 = vmatprep.subr.bf16.mxu0 0
        %2712 = vmatpush1.bf16.xpose.msra.mxu0 0
        %2713 = vmatprep.subr.bf16.mxu0 0
        %2714 = vmatpush1.bf16.xpose.msra.mxu0 0
        %2715 = vmatprep.subr.bf16.mxu0 0
        %2716 = vmatpush1.bf16.xpose.msra.mxu0 0
        %2717 = vmatprep.subr.bf16.mxu0 0
        %2718 = vmatpush1.bf16.xpose.msra.mxu0 0
        %2719 = vmatprep.subr.bf16.mxu0 0
        %2720 = vmatpush1.bf16.xpose.msra.mxu0 0
        %2721 = vmatprep.subr.bf16.mxu0 0
        %2722 = vmatpush1.bf16.xpose.msra.mxu0 0
        %2723 = vmatprep.subr.bf16.mxu0 0
        %2724 = vmatpush1.bf16.xpose.msra.mxu0 %v2707
        %2725 = vmatprep.subr.bf16.mxu0 0
        %2726 = vmatpush2.bf16.xpose.msra.mxu0 0
        %2727 = vmatprep.subr.bf16.mxu0 0
        %2728 = vmatpush2.bf16.xpose.msra.mxu0 0
        %2729 = vmatprep.subr.bf16.mxu0 0
        %2730 = vmatpush2.bf16.xpose.msra.mxu0 0
        %2731 = vmatprep.subr.bf16.mxu0 0
        %2732 = vmatpush2.bf16.xpose.msra.mxu0 0
        %2733 = vmatprep.subr.bf16.mxu0 0
        %2734 = vmatpush2.bf16.xpose.msra.mxu0 0
        %2735 = vmatprep.subr.bf16.mxu0 0
        %2736 = vmatpush2.bf16.xpose.msra.mxu0 0
        %2737 = vmatprep.subr.bf16.mxu0 0
        %2738 = vmatpush2.bf16.xpose.msra.mxu0 0
        %2739 = vmatprep.subr.bf16.mxu0 0
        %2740 = vmatpush2.bf16.xpose.msra.mxu0 0
        %2741 = vmatprep.mubr.bf16.mxu0 0
        %2742 = vmatmul.mubr.bf16.gmra.mxu0 %v2704
        %v2743 = vpop.f32.mrf.mxu0
        %v2744 = vadd.f32 0.0, %v2743
        %v2745 = vpop.f32.mrf.mxu0
        %v2746 = vpop.f32.mrf.mxu0
        %v2747 = vadd.f32 0.0, %v2746
        %v2748 = vpop.f32.mrf.mxu0
        %2749 = vdwg.mxu0
        %v2750 = vmul.f32 %v2744, 0.17677669
        %v2751 = vmul.f32 %v2747, 0.17677669
        %v2752 = vsel %vm2626, -1e+09, %v2750
        %v2753 = vsel %vm2626, -1e+09, %v2751
        %v2754 = vsel %vm1196, %v2752, -inf
        %2755 = vmax.xlane.f32.xlu0 %v2754
        %v2756 = vpop.xlane.xlu0 %2755
        %v2757 = vsel %vm1196, %v2753, -inf
        %2758 = vmax.xlane.f32.xlu0 %v2757
        %v2759 = vpop.xlane.xlu0 %2758
        %v2760 = vsub.f32 %v2752, %v2756
        %v2761 = vsub.f32 %v2753, %v2759
        %v2762 = vmul.f32 %v2760, 1.442695
        %v2763 = vpow.pop %v2762
        %v2764 = vmul.f32 %v2761, 1.442695
        %v2765 = vpow.pop %v2764
        %v2766 = vsel %vm1196, %v2763, 0.0
        %2767 = vadd.xlane.f32.xlu0 %v2766
        %v2768 = vpop.xlane.xlu0 %2767
        %v2769 = vsel %vm1196, %v2765, 0.0
        %2770 = vadd.xlane.f32.xlu0 %v2769
        %v2771 = vpop.xlane.xlu0 %2770
        %v2772 = vrcp.pop %v2768
        %v2773 = vrcp.pop %v2771
        %v2774 = vmul.f32 %v2763, %v2772
        %v2775 = vmul.f32 %v2765, %v2773
        %v2776 = vpack.c.bf16 %v2775, %v2774
        %2778 = vrot.lane.b32.xlu0 %v2571, 96
        %v2779 = vpop.permute.xlu0 %2778
        %v2782 = vsel %vm1196, %v2776, 0
        %2784 = vmatprep.subr.bf16.mxu0 0
        %2785 = vmatpush1.bf16.msra.mxu0 0
        %2786 = vmatprep.subr.bf16.mxu0 0
        %2787 = vmatpush1.bf16.msra.mxu0 0
        %2788 = vmatprep.subr.bf16.mxu0 0
        %2789 = vmatpush1.bf16.msra.mxu0 0
        %2790 = vmatprep.subr.bf16.mxu0 0
        %2791 = vmatpush1.bf16.msra.mxu0 0
        %2792 = vmatprep.subr.bf16.mxu0 0
        %2793 = vmatpush1.bf16.msra.mxu0 0
        %2794 = vmatprep.subr.bf16.mxu0 0
        %2795 = vmatpush1.bf16.msra.mxu0 0
        %2796 = vmatprep.subr.bf16.mxu0 0
        %2797 = vmatpush1.bf16.msra.mxu0 0
        %2798 = vmatprep.subr.bf16.mxu0 0
        %2799 = vmatpush1.bf16.msra.mxu0 %v2779
        %2800 = vmatprep.subr.bf16.mxu0 0
        %2801 = vmatpush2.bf16.msra.mxu0 0
        %2802 = vmatprep.subr.bf16.mxu0 0
        %2803 = vmatpush2.bf16.msra.mxu0 0
        %2804 = vmatprep.subr.bf16.mxu0 0
        %2805 = vmatpush2.bf16.msra.mxu0 0
        %2806 = vmatprep.subr.bf16.mxu0 0
        %2807 = vmatpush2.bf16.msra.mxu0 0
        %2808 = vmatprep.subr.bf16.mxu0 0
        %2809 = vmatpush2.bf16.msra.mxu0 0
        %2810 = vmatprep.subr.bf16.mxu0 0
        %2811 = vmatpush2.bf16.msra.mxu0 0
        %2812 = vmatprep.subr.bf16.mxu0 0
        %2813 = vmatpush2.bf16.msra.mxu0 0
        %2814 = vmatprep.subr.bf16.mxu0 0
        %2815 = vmatpush2.bf16.msra.mxu0 0
        %2816 = vmatprep.mubr.bf16.mxu0 0
        %2817 = vmatmul.mubr.bf16.gmra.mxu0 %v2782
        %v2818 = vpop.f32.mrf.mxu0
        %v2819 = vadd.f32 0.0, %v2818
        %v2820 = vpop.f32.mrf.mxu0
        %v2821 = vpop.f32.mrf.mxu0
        %v2822 = vadd.f32 0.0, %v2821
        %v2823 = vpop.f32.mrf.mxu0
        %2824 = vdwg.mxu0
        %v2825 = vpack.c.bf16 %v2822, %v2819
        %v2827 = vsel %vm1138, %v2825, 0
        %2829 = vmatprep.subr.bf16.mxu0 0
        %2830 = vmatpush1.bf16.msra.mxu0 0
        %2831 = vmatprep.subr.bf16.mxu0 0
        %2832 = vmatpush1.bf16.msra.mxu0 0
        %2833 = vmatprep.subr.bf16.mxu0 0
        %2834 = vmatpush1.bf16.msra.mxu0 0
        %2835 = vmatprep.subr.bf16.mxu0 0
        %2836 = vmatpush1.bf16.msra.mxu0 0
        %2837 = vmatprep.subr.bf16.mxu0 0
        %2838 = vmatpush1.bf16.msra.mxu0 0
        %2839 = vmatprep.subr.bf16.mxu0 0
        %2840 = vmatpush1.bf16.msra.mxu0 0
        %2841 = vmatprep.subr.bf16.mxu0 0
        %2842 = vmatpush1.bf16.msra.mxu0 %v1403
        %2843 = vmatprep.subr.bf16.mxu0 0
        %2844 = vmatpush1.bf16.msra.mxu0 %v1402
        %2845 = vmatprep.subr.bf16.mxu0 0
        %2846 = vmatpush2.bf16.msra.mxu0 0
        %2847 = vmatprep.subr.bf16.mxu0 0
        %2848 = vmatpush2.bf16.msra.mxu0 0
        %2849 = vmatprep.subr.bf16.mxu0 0
        %2850 = vmatpush2.bf16.msra.mxu0 0
        %2851 = vmatprep.subr.bf16.mxu0 0
        %2852 = vmatpush2.bf16.msra.mxu0 0
        %2853 = vmatprep.subr.bf16.mxu0 0
        %2854 = vmatpush2.bf16.msra.mxu0 0
        %2855 = vmatprep.subr.bf16.mxu0 0
        %2856 = vmatpush2.bf16.msra.mxu0 0
        %2857 = vmatprep.subr.bf16.mxu0 0
        %2858 = vmatpush2.bf16.msra.mxu0 0
        %2859 = vmatprep.subr.bf16.mxu0 0
        %2860 = vmatpush2.bf16.msra.mxu0 0
        %2861 = vmatprep.mubr.bf16.mxu0 0
        %2862 = vmatmul.mubr.bf16.gmra.mxu0 %v2827
        %v2863 = vpop.f32.mrf.mxu0
        %v2864 = vadd.f32 0.0, %v2863
        %v2865 = vpop.f32.mrf.mxu0
        %v2866 = vpop.f32.mrf.mxu0
        %v2867 = vadd.f32 0.0, %v2866
        %v2868 = vpop.f32.mrf.mxu0
        %2869 = vdwg.mxu0
        %v2871 = vsel %vm1138, %v2696, 0
        %2873 = vmatprep.subr.bf16.mxu0 0
        %2874 = vmatpush1.bf16.msra.mxu0 0
        %2875 = vmatprep.subr.bf16.mxu0 0
        %2876 = vmatpush1.bf16.msra.mxu0 0
        %2877 = vmatprep.subr.bf16.mxu0 0
        %2878 = vmatpush1.bf16.msra.mxu0 0
        %2879 = vmatprep.subr.bf16.mxu0 0
        %2880 = vmatpush1.bf16.msra.mxu0 0
        %2881 = vmatprep.subr.bf16.mxu0 0
        %2882 = vmatpush1.bf16.msra.mxu0 0
        %2883 = vmatprep.subr.bf16.mxu0 0
        %2884 = vmatpush1.bf16.msra.mxu0 0
        %2885 = vmatprep.subr.bf16.mxu0 0
        %2886 = vmatpush1.bf16.msra.mxu0 %v1459
        %2887 = vmatprep.subr.bf16.mxu0 0
        %2888 = vmatpush1.bf16.msra.mxu0 %v1458
        %2889 = vmatprep.subr.bf16.mxu0 0
        %2890 = vmatpush2.bf16.msra.mxu0 0
        %2891 = vmatprep.subr.bf16.mxu0 0
        %2892 = vmatpush2.bf16.msra.mxu0 0
        %2893 = vmatprep.subr.bf16.mxu0 0
        %2894 = vmatpush2.bf16.msra.mxu0 0
        %2895 = vmatprep.subr.bf16.mxu0 0
        %2896 = vmatpush2.bf16.msra.mxu0 0
        %2897 = vmatprep.subr.bf16.mxu0 0
        %2898 = vmatpush2.bf16.msra.mxu0 0
        %2899 = vmatprep.subr.bf16.mxu0 0
        %2900 = vmatpush2.bf16.msra.mxu0 0
        %2901 = vmatprep.subr.bf16.mxu0 0
        %2902 = vmatpush2.bf16.msra.mxu0 0
        %2903 = vmatprep.subr.bf16.mxu0 0
        %2904 = vmatpush2.bf16.msra.mxu0 0
        %2905 = vmatprep.mubr.bf16.mxu0 0
        %2906 = vmatmul.mubr.bf16.gmra.mxu0 %v2871
        %v2907 = vpop.f32.mrf.mxu0
        %v2908 = vadd.f32 %v2864, %v2907
        %v2909 = vpop.f32.mrf.mxu0
        %v2910 = vpop.f32.mrf.mxu0
        %v2911 = vadd.f32 %v2867, %v2910
        %v2912 = vpop.f32.mrf.mxu0
        %2913 = vdwg.mxu0
        %2914 = vrot.lane.b32.xlu0 %v2569, 64
        %v2915 = vpop.permute.xlu0 %2914
        %2916 = vrot.lane.b32.xlu0 %v2570, 64
        %v2917 = vpop.permute.xlu0 %2916
        %v2919 = vsel %vm1138, %v2915, 0
        %v2922 = vsel %vm1138, %v2917, 0
        %2924 = vmatprep.subr.bf16.mxu0 0
        %2925 = vmatpush1.bf16.xpose.msra.mxu0 0
        %2926 = vmatprep.subr.bf16.mxu0 0
        %2927 = vmatpush1.bf16.xpose.msra.mxu0 0
        %2928 = vmatprep.subr.bf16.mxu0 0
        %2929 = vmatpush1.bf16.xpose.msra.mxu0 0
        %2930 = vmatprep.subr.bf16.mxu0 0
        %2931 = vmatpush1.bf16.xpose.msra.mxu0 0
        %2932 = vmatprep.subr.bf16.mxu0 0
        %2933 = vmatpush1.bf16.xpose.msra.mxu0 0
        %2934 = vmatprep.subr.bf16.mxu0 0
        %2935 = vmatpush1.bf16.xpose.msra.mxu0 0
        %2936 = vmatprep.subr.bf16.mxu0 0
        %2937 = vmatpush1.bf16.xpose.msra.mxu0 0
        %2938 = vmatprep.subr.bf16.mxu0 0
        %2939 = vmatpush1.bf16.xpose.msra.mxu0 %v2922
        %2940 = vmatprep.subr.bf16.mxu0 0
        %2941 = vmatpush2.bf16.xpose.msra.mxu0 0
        %2942 = vmatprep.subr.bf16.mxu0 0
        %2943 = vmatpush2.bf16.xpose.msra.mxu0 0
        %2944 = vmatprep.subr.bf16.mxu0 0
        %2945 = vmatpush2.bf16.xpose.msra.mxu0 0
        %2946 = vmatprep.subr.bf16.mxu0 0
        %2947 = vmatpush2.bf16.xpose.msra.mxu0 0
        %2948 = vmatprep.subr.bf16.mxu0 0
        %2949 = vmatpush2.bf16.xpose.msra.mxu0 0
        %2950 = vmatprep.subr.bf16.mxu0 0
        %2951 = vmatpush2.bf16.xpose.msra.mxu0 0
        %2952 = vmatprep.subr.bf16.mxu0 0
        %2953 = vmatpush2.bf16.xpose.msra.mxu0 0
        %2954 = vmatprep.subr.bf16.mxu0 0
        %2955 = vmatpush2.bf16.xpose.msra.mxu0 0
        %2956 = vmatprep.mubr.bf16.mxu0 0
        %2957 = vmatmul.mubr.bf16.gmra.mxu0 %v2919
        %v2958 = vpop.f32.mrf.mxu0
        %v2959 = vadd.f32 0.0, %v2958
        %v2960 = vpop.f32.mrf.mxu0
        %v2961 = vpop.f32.mrf.mxu0
        %v2962 = vadd.f32 0.0, %v2961
        %v2963 = vpop.f32.mrf.mxu0
        %2964 = vdwg.mxu0
        %v2965 = vmul.f32 %v2959, 0.17677669
        %v2966 = vmul.f32 %v2962, 0.17677669
        %v2967 = vsel %vm2626, -1e+09, %v2965
        %v2968 = vsel %vm2626, -1e+09, %v2966
        %v2969 = vsel %vm1196, %v2967, -inf
        %2970 = vmax.xlane.f32.xlu0 %v2969
        %v2971 = vpop.xlane.xlu0 %2970
        %v2972 = vsel %vm1196, %v2968, -inf
        %2973 = vmax.xlane.f32.xlu0 %v2972
        %v2974 = vpop.xlane.xlu0 %2973
        %v2975 = vsub.f32 %v2967, %v2971
        %v2976 = vsub.f32 %v2968, %v2974
        %v2977 = vmul.f32 %v2975, 1.442695
        %v2978 = vpow.pop %v2977
        %v2979 = vmul.f32 %v2976, 1.442695
        %v2980 = vpow.pop %v2979
        %v2981 = vsel %vm1196, %v2978, 0.0
        %2982 = vadd.xlane.f32.xlu0 %v2981
        %v2983 = vpop.xlane.xlu0 %2982
        %v2984 = vsel %vm1196, %v2980, 0.0
        %2985 = vadd.xlane.f32.xlu0 %v2984
        %v2986 = vpop.xlane.xlu0 %2985
        %v2987 = vrcp.pop %v2983
        %v2988 = vrcp.pop %v2986
        %v2989 = vmul.f32 %v2978, %v2987
        %v2990 = vmul.f32 %v2980, %v2988
        %v2991 = vpack.c.bf16 %v2990, %v2989
        %2992 = vrot.lane.b32.xlu0 %v2571, 64
        %v2993 = vpop.permute.xlu0 %2992
        %v2996 = vsel %vm1196, %v2991, 0
        %2998 = vmatprep.subr.bf16.mxu0 0
        %2999 = vmatpush1.bf16.msra.mxu0 0
        %3000 = vmatprep.subr.bf16.mxu0 0
        %3001 = vmatpush1.bf16.msra.mxu0 0
        %3002 = vmatprep.subr.bf16.mxu0 0
        %3003 = vmatpush1.bf16.msra.mxu0 0
        %3004 = vmatprep.subr.bf16.mxu0 0
        %3005 = vmatpush1.bf16.msra.mxu0 0
        %3006 = vmatprep.subr.bf16.mxu0 0
        %3007 = vmatpush1.bf16.msra.mxu0 0
        %3008 = vmatprep.subr.bf16.mxu0 0
        %3009 = vmatpush1.bf16.msra.mxu0 0
        %3010 = vmatprep.subr.bf16.mxu0 0
        %3011 = vmatpush1.bf16.msra.mxu0 0
        %3012 = vmatprep.subr.bf16.mxu0 0
        %3013 = vmatpush1.bf16.msra.mxu0 %v2993
        %3014 = vmatprep.subr.bf16.mxu0 0
        %3015 = vmatpush2.bf16.msra.mxu0 0
        %3016 = vmatprep.subr.bf16.mxu0 0
        %3017 = vmatpush2.bf16.msra.mxu0 0
        %3018 = vmatprep.subr.bf16.mxu0 0
        %3019 = vmatpush2.bf16.msra.mxu0 0
        %3020 = vmatprep.subr.bf16.mxu0 0
        %3021 = vmatpush2.bf16.msra.mxu0 0
        %3022 = vmatprep.subr.bf16.mxu0 0
        %3023 = vmatpush2.bf16.msra.mxu0 0
        %3024 = vmatprep.subr.bf16.mxu0 0
        %3025 = vmatpush2.bf16.msra.mxu0 0
        %3026 = vmatprep.subr.bf16.mxu0 0
        %3027 = vmatpush2.bf16.msra.mxu0 0
        %3028 = vmatprep.subr.bf16.mxu0 0
        %3029 = vmatpush2.bf16.msra.mxu0 0
        %3030 = vmatprep.mubr.bf16.mxu0 0
        %3031 = vmatmul.mubr.bf16.gmra.mxu0 %v2996
        %v3032 = vpop.f32.mrf.mxu0
        %v3033 = vadd.f32 0.0, %v3032
        %v3034 = vpop.f32.mrf.mxu0
        %v3035 = vpop.f32.mrf.mxu0
        %v3036 = vadd.f32 0.0, %v3035
        %v3037 = vpop.f32.mrf.mxu0
        %3038 = vdwg.mxu0
        %v3039 = vpack.c.bf16 %v3036, %v3033
        %v3041 = vsel %vm1138, %v3039, 0
        %3043 = vmatprep.subr.bf16.mxu0 0
        %3044 = vmatpush1.bf16.msra.mxu0 0
        %3045 = vmatprep.subr.bf16.mxu0 0
        %3046 = vmatpush1.bf16.msra.mxu0 0
        %3047 = vmatprep.subr.bf16.mxu0 0
        %3048 = vmatpush1.bf16.msra.mxu0 0
        %3049 = vmatprep.subr.bf16.mxu0 0
        %3050 = vmatpush1.bf16.msra.mxu0 0
        %3051 = vmatprep.subr.bf16.mxu0 0
        %3052 = vmatpush1.bf16.msra.mxu0 0
        %3053 = vmatprep.subr.bf16.mxu0 0
        %3054 = vmatpush1.bf16.msra.mxu0 0
        %3055 = vmatprep.subr.bf16.mxu0 0
        %3056 = vmatpush1.bf16.msra.mxu0 %v1641
        %3057 = vmatprep.subr.bf16.mxu0 0
        %3058 = vmatpush1.bf16.msra.mxu0 %v1640
        %3059 = vmatprep.subr.bf16.mxu0 0
        %3060 = vmatpush2.bf16.msra.mxu0 0
        %3061 = vmatprep.subr.bf16.mxu0 0
        %3062 = vmatpush2.bf16.msra.mxu0 0
        %3063 = vmatprep.subr.bf16.mxu0 0
        %3064 = vmatpush2.bf16.msra.mxu0 0
        %3065 = vmatprep.subr.bf16.mxu0 0
        %3066 = vmatpush2.bf16.msra.mxu0 0
        %3067 = vmatprep.subr.bf16.mxu0 0
        %3068 = vmatpush2.bf16.msra.mxu0 0
        %3069 = vmatprep.subr.bf16.mxu0 0
        %3070 = vmatpush2.bf16.msra.mxu0 0
        %3071 = vmatprep.subr.bf16.mxu0 0
        %3072 = vmatpush2.bf16.msra.mxu0 0
        %3073 = vmatprep.subr.bf16.mxu0 0
        %3074 = vmatpush2.bf16.msra.mxu0 0
        %3075 = vmatprep.mubr.bf16.mxu0 0
        %3076 = vmatmul.mubr.bf16.gmra.mxu0 %v3041
        %v3077 = vpop.f32.mrf.mxu0
        %v3078 = vadd.f32 0.0, %v3077
        %v3079 = vpop.f32.mrf.mxu0
        %v3080 = vpop.f32.mrf.mxu0
        %v3081 = vadd.f32 0.0, %v3080
        %v3082 = vpop.f32.mrf.mxu0
        %3083 = vdwg.mxu0
        %v3084 = vadd.f32 %v2908, %v3078
        %v3085 = vadd.f32 %v2911, %v3081
        %3086 = vrot.lane.b32.xlu0 %v2569, 32
        %v3087 = vpop.permute.xlu0 %3086
        %3088 = vrot.lane.b32.xlu0 %v2570, 32
        %v3089 = vpop.permute.xlu0 %3088
        %v3091 = vsel %vm1138, %v3087, 0
        %v3094 = vsel %vm1138, %v3089, 0
        %3096 = vmatprep.subr.bf16.mxu0 0
        %3097 = vmatpush1.bf16.xpose.msra.mxu0 0
        %3098 = vmatprep.subr.bf16.mxu0 0
        %3099 = vmatpush1.bf16.xpose.msra.mxu0 0
        %3100 = vmatprep.subr.bf16.mxu0 0
        %3101 = vmatpush1.bf16.xpose.msra.mxu0 0
        %3102 = vmatprep.subr.bf16.mxu0 0
        %3103 = vmatpush1.bf16.xpose.msra.mxu0 0
        %3104 = vmatprep.subr.bf16.mxu0 0
        %3105 = vmatpush1.bf16.xpose.msra.mxu0 0
        %3106 = vmatprep.subr.bf16.mxu0 0
        %3107 = vmatpush1.bf16.xpose.msra.mxu0 0
        %3108 = vmatprep.subr.bf16.mxu0 0
        %3109 = vmatpush1.bf16.xpose.msra.mxu0 0
        %3110 = vmatprep.subr.bf16.mxu0 0
        %3111 = vmatpush1.bf16.xpose.msra.mxu0 %v3094
        %3112 = vmatprep.subr.bf16.mxu0 0
        %3113 = vmatpush2.bf16.xpose.msra.mxu0 0
        %3114 = vmatprep.subr.bf16.mxu0 0
        %3115 = vmatpush2.bf16.xpose.msra.mxu0 0
        %3116 = vmatprep.subr.bf16.mxu0 0
        %3117 = vmatpush2.bf16.xpose.msra.mxu0 0
        %3118 = vmatprep.subr.bf16.mxu0 0
        %3119 = vmatpush2.bf16.xpose.msra.mxu0 0
        %3120 = vmatprep.subr.bf16.mxu0 0
        %3121 = vmatpush2.bf16.xpose.msra.mxu0 0
        %3122 = vmatprep.subr.bf16.mxu0 0
        %3123 = vmatpush2.bf16.xpose.msra.mxu0 0
        %3124 = vmatprep.subr.bf16.mxu0 0
        %3125 = vmatpush2.bf16.xpose.msra.mxu0 0
        %3126 = vmatprep.subr.bf16.mxu0 0
        %3127 = vmatpush2.bf16.xpose.msra.mxu0 0
        %3128 = vmatprep.mubr.bf16.mxu0 0
        %3129 = vmatmul.mubr.bf16.gmra.mxu0 %v3091
        %v3130 = vpop.f32.mrf.mxu0
        %v3131 = vadd.f32 0.0, %v3130
        %v3132 = vpop.f32.mrf.mxu0
        %v3133 = vpop.f32.mrf.mxu0
        %v3134 = vadd.f32 0.0, %v3133
        %v3135 = vpop.f32.mrf.mxu0
        %3136 = vdwg.mxu0
        %v3137 = vmul.f32 %v3131, 0.17677669
        %v3138 = vmul.f32 %v3134, 0.17677669
        %v3139 = vsel %vm2626, -1e+09, %v3137
        %v3140 = vsel %vm2626, -1e+09, %v3138
        %v3141 = vsel %vm1196, %v3139, -inf
        %3142 = vmax.xlane.f32.xlu0 %v3141
        %v3143 = vpop.xlane.xlu0 %3142
        %v3144 = vsel %vm1196, %v3140, -inf
        %3145 = vmax.xlane.f32.xlu0 %v3144
        %v3146 = vpop.xlane.xlu0 %3145
        %v3147 = vsub.f32 %v3139, %v3143
        %v3148 = vsub.f32 %v3140, %v3146
        %v3149 = vmul.f32 %v3147, 1.442695
        %v3150 = vpow.pop %v3149
        %v3151 = vmul.f32 %v3148, 1.442695
        %v3152 = vpow.pop %v3151
        %v3153 = vsel %vm1196, %v3150, 0.0
        %3154 = vadd.xlane.f32.xlu0 %v3153
        %v3155 = vpop.xlane.xlu0 %3154
        %v3156 = vsel %vm1196, %v3152, 0.0
        %3157 = vadd.xlane.f32.xlu0 %v3156
        %v3158 = vpop.xlane.xlu0 %3157
        %v3159 = vrcp.pop %v3155
        %v3160 = vrcp.pop %v3158
        %v3161 = vmul.f32 %v3150, %v3159
        %v3162 = vmul.f32 %v3152, %v3160
        %v3163 = vpack.c.bf16 %v3162, %v3161
        %3164 = vrot.lane.b32.xlu0 %v2571, 32
        %v3165 = vpop.permute.xlu0 %3164
        %v3168 = vsel %vm1196, %v3163, 0
        %3170 = vmatprep.subr.bf16.mxu0 0
        %3171 = vmatpush1.bf16.msra.mxu0 0
        %3172 = vmatprep.subr.bf16.mxu0 0
        %3173 = vmatpush1.bf16.msra.mxu0 0
        %3174 = vmatprep.subr.bf16.mxu0 0
        %3175 = vmatpush1.bf16.msra.mxu0 0
        %3176 = vmatprep.subr.bf16.mxu0 0
        %3177 = vmatpush1.bf16.msra.mxu0 0
        %3178 = vmatprep.subr.bf16.mxu0 0
        %3179 = vmatpush1.bf16.msra.mxu0 0
        %3180 = vmatprep.subr.bf16.mxu0 0
        %3181 = vmatpush1.bf16.msra.mxu0 0
        %3182 = vmatprep.subr.bf16.mxu0 0
        %3183 = vmatpush1.bf16.msra.mxu0 0
        %3184 = vmatprep.subr.bf16.mxu0 0
        %3185 = vmatpush1.bf16.msra.mxu0 %v3165
        %3186 = vmatprep.subr.bf16.mxu0 0
        %3187 = vmatpush2.bf16.msra.mxu0 0
        %3188 = vmatprep.subr.bf16.mxu0 0
        %3189 = vmatpush2.bf16.msra.mxu0 0
        %3190 = vmatprep.subr.bf16.mxu0 0
        %3191 = vmatpush2.bf16.msra.mxu0 0
        %3192 = vmatprep.subr.bf16.mxu0 0
        %3193 = vmatpush2.bf16.msra.mxu0 0
        %3194 = vmatprep.subr.bf16.mxu0 0
        %3195 = vmatpush2.bf16.msra.mxu0 0
        %3196 = vmatprep.subr.bf16.mxu0 0
        %3197 = vmatpush2.bf16.msra.mxu0 0
        %3198 = vmatprep.subr.bf16.mxu0 0
        %3199 = vmatpush2.bf16.msra.mxu0 0
        %3200 = vmatprep.subr.bf16.mxu0 0
        %3201 = vmatpush2.bf16.msra.mxu0 0
        %3202 = vmatprep.mubr.bf16.mxu0 0
        %3203 = vmatmul.mubr.bf16.gmra.mxu0 %v3168
        %v3204 = vpop.f32.mrf.mxu0
        %v3205 = vadd.f32 0.0, %v3204
        %v3206 = vpop.f32.mrf.mxu0
        %v3207 = vpop.f32.mrf.mxu0
        %v3208 = vadd.f32 0.0, %v3207
        %v3209 = vpop.f32.mrf.mxu0
        %3210 = vdwg.mxu0
        %v3211 = vpack.c.bf16 %v3208, %v3205
        %v3213 = vsel %vm1138, %v3211, 0
        %3215 = vmatprep.subr.bf16.mxu0 0
        %3216 = vmatpush1.bf16.msra.mxu0 0
        %3217 = vmatprep.subr.bf16.mxu0 0
        %3218 = vmatpush1.bf16.msra.mxu0 0
        %3219 = vmatprep.subr.bf16.mxu0 0
        %3220 = vmatpush1.bf16.msra.mxu0 0
        %3221 = vmatprep.subr.bf16.mxu0 0
        %3222 = vmatpush1.bf16.msra.mxu0 0
        %3223 = vmatprep.subr.bf16.mxu0 0
        %3224 = vmatpush1.bf16.msra.mxu0 0
        %3225 = vmatprep.subr.bf16.mxu0 0
        %3226 = vmatpush1.bf16.msra.mxu0 0
        %3227 = vmatprep.subr.bf16.mxu0 0
        %3228 = vmatpush1.bf16.msra.mxu0 %v1825
        %3229 = vmatprep.subr.bf16.mxu0 0
        %3230 = vmatpush1.bf16.msra.mxu0 %v1824
        %3231 = vmatprep.subr.bf16.mxu0 0
        %3232 = vmatpush2.bf16.msra.mxu0 0
        %3233 = vmatprep.subr.bf16.mxu0 0
        %3234 = vmatpush2.bf16.msra.mxu0 0
        %3235 = vmatprep.subr.bf16.mxu0 0
        %3236 = vmatpush2.bf16.msra.mxu0 0
        %3237 = vmatprep.subr.bf16.mxu0 0
        %3238 = vmatpush2.bf16.msra.mxu0 0
        %3239 = vmatprep.subr.bf16.mxu0 0
        %3240 = vmatpush2.bf16.msra.mxu0 0
        %3241 = vmatprep.subr.bf16.mxu0 0
        %3242 = vmatpush2.bf16.msra.mxu0 0
        %3243 = vmatprep.subr.bf16.mxu0 0
        %3244 = vmatpush2.bf16.msra.mxu0 0
        %3245 = vmatprep.subr.bf16.mxu0 0
        %3246 = vmatpush2.bf16.msra.mxu0 0
        %3247 = vmatprep.mubr.bf16.mxu0 0
        %3248 = vmatmul.mubr.bf16.gmra.mxu0 %v3213
        %v3249 = vpop.f32.mrf.mxu0
        %v3250 = vadd.f32 0.0, %v3249
        %v3251 = vpop.f32.mrf.mxu0
        %v3252 = vpop.f32.mrf.mxu0
        %v3253 = vadd.f32 0.0, %v3252
        %v3254 = vpop.f32.mrf.mxu0
        %3255 = vdwg.mxu0
        %v3256 = vadd.f32 %v3084, %v3250
        %v3257 = vadd.f32 %v3085, %v3253
        %s3258 = scalar_lea.vmem %s536, 3 [#allocation5]
        %v3259 = vld [vmem:[%s3258] sm:$0x1]
        %vm3260 = vcmp.eq.f32.partialorder %v3259, 0.0
        %v3261 = vpack.c.bf16 %v1048, %v1044
        %v3262 = vpack.c.bf16 %v1050, %v1046
        %v3263 = vpack.c.bf16 %v1114, %v1111
        %v3265 = vsel %vm1138, %v3261, 0
        %v3268 = vsel %vm1138, %v3262, 0
        %3270 = vmatprep.subr.bf16.mxu0 0
        %3271 = vmatpush1.bf16.xpose.msra.mxu0 0
        %3272 = vmatprep.subr.bf16.mxu0 0
        %3273 = vmatpush1.bf16.xpose.msra.mxu0 0
        %3274 = vmatprep.subr.bf16.mxu0 0
        %3275 = vmatpush1.bf16.xpose.msra.mxu0 0
        %3276 = vmatprep.subr.bf16.mxu0 0
        %3277 = vmatpush1.bf16.xpose.msra.mxu0 0
        %3278 = vmatprep.subr.bf16.mxu0 0
        %3279 = vmatpush1.bf16.xpose.msra.mxu0 0
        %3280 = vmatprep.subr.bf16.mxu0 0
        %3281 = vmatpush1.bf16.xpose.msra.mxu0 0
        %3282 = vmatprep.subr.bf16.mxu0 0
        %3283 = vmatpush1.bf16.xpose.msra.mxu0 0
        %3284 = vmatprep.subr.bf16.mxu0 0
        %3285 = vmatpush1.bf16.xpose.msra.mxu0 %v3268
        %3286 = vmatprep.subr.bf16.mxu0 0
        %3287 = vmatpush2.bf16.xpose.msra.mxu0 0
        %3288 = vmatprep.subr.bf16.mxu0 0
        %3289 = vmatpush2.bf16.xpose.msra.mxu0 0
        %3290 = vmatprep.subr.bf16.mxu0 0
        %3291 = vmatpush2.bf16.xpose.msra.mxu0 0
        %3292 = vmatprep.subr.bf16.mxu0 0
        %3293 = vmatpush2.bf16.xpose.msra.mxu0 0
        %3294 = vmatprep.subr.bf16.mxu0 0
        %3295 = vmatpush2.bf16.xpose.msra.mxu0 0
        %3296 = vmatprep.subr.bf16.mxu0 0
        %3297 = vmatpush2.bf16.xpose.msra.mxu0 0
        %3298 = vmatprep.subr.bf16.mxu0 0
        %3299 = vmatpush2.bf16.xpose.msra.mxu0 0
        %3300 = vmatprep.subr.bf16.mxu0 0
        %3301 = vmatpush2.bf16.xpose.msra.mxu0 0
        %3302 = vmatprep.mubr.bf16.mxu0 0
        %3303 = vmatmul.mubr.bf16.gmra.mxu0 %v3265
        %v3304 = vpop.f32.mrf.mxu0
        %v3305 = vadd.f32 0.0, %v3304
        %v3306 = vpop.f32.mrf.mxu0
        %v3307 = vpop.f32.mrf.mxu0
        %v3308 = vadd.f32 0.0, %v3307
        %v3309 = vpop.f32.mrf.mxu0
        %3310 = vdwg.mxu0
        %v3311 = vmul.f32 %v3305, 0.17677669
        %v3312 = vmul.f32 %v3308, 0.17677669
        %v3313 = vsel %vm3260, 1, 0
        %v3314 = vlaneseq
        %v3315 = vshrl.u32 %v3314, 7
        %v3316 = vsub.s32 0, %v3315
        %v3317 = vrot.slane %v3313, %v3316
        %vm3318 = vcmp.eq.s32.totalorder %v3317, 1
        %v3319 = vsel %vm3318, -1e+09, %v3311
        %v3320 = vsel %vm3318, -1e+09, %v3312
        %v3321 = vsel %vm1196, %v3319, -inf
        %3322 = vmax.xlane.f32.xlu0 %v3321
        %v3323 = vpop.xlane.xlu0 %3322
        %v3324 = vsel %vm1196, %v3320, -inf
        %3325 = vmax.xlane.f32.xlu0 %v3324
        %v3326 = vpop.xlane.xlu0 %3325
        %v3327 = vsub.f32 %v3319, %v3323
        %v3328 = vsub.f32 %v3320, %v3326
        %v3329 = vmul.f32 %v3327, 1.442695
        %v3330 = vpow.pop %v3329
        %v3331 = vmul.f32 %v3328, 1.442695
        %v3332 = vpow.pop %v3331
        %v3333 = vsel %vm1196, %v3330, 0.0
        %3334 = vadd.xlane.f32.xlu0 %v3333
        %v3335 = vpop.xlane.xlu0 %3334
        %v3336 = vsel %vm1196, %v3332, 0.0
        %3337 = vadd.xlane.f32.xlu0 %v3336
        %v3338 = vpop.xlane.xlu0 %3337
        %v3339 = vrcp.pop %v3335
        %v3340 = vrcp.pop %v3338
        %v3341 = vmul.f32 %v3330, %v3339
        %v3342 = vmul.f32 %v3332, %v3340
        %v3343 = vpack.c.bf16 %v3342, %v3341
        %v3345 = vsel %vm1196, %v3343, 0
        %3347 = vmatprep.subr.bf16.mxu0 0
        %3348 = vmatpush1.bf16.msra.mxu0 0
        %3349 = vmatprep.subr.bf16.mxu0 0
        %3350 = vmatpush1.bf16.msra.mxu0 0
        %3351 = vmatprep.subr.bf16.mxu0 0
        %3352 = vmatpush1.bf16.msra.mxu0 0
        %3353 = vmatprep.subr.bf16.mxu0 0
        %3354 = vmatpush1.bf16.msra.mxu0 0
        %3355 = vmatprep.subr.bf16.mxu0 0
        %3356 = vmatpush1.bf16.msra.mxu0 0
        %3357 = vmatprep.subr.bf16.mxu0 0
        %3358 = vmatpush1.bf16.msra.mxu0 0
        %3359 = vmatprep.subr.bf16.mxu0 0
        %3360 = vmatpush1.bf16.msra.mxu0 0
        %3361 = vmatprep.subr.bf16.mxu0 0
        %3362 = vmatpush1.bf16.msra.mxu0 %v3263
        %3363 = vmatprep.subr.bf16.mxu0 0
        %3364 = vmatpush2.bf16.msra.mxu0 0
        %3365 = vmatprep.subr.bf16.mxu0 0
        %3366 = vmatpush2.bf16.msra.mxu0 0
        %3367 = vmatprep.subr.bf16.mxu0 0
        %3368 = vmatpush2.bf16.msra.mxu0 0
        %3369 = vmatprep.subr.bf16.mxu0 0
        %3370 = vmatpush2.bf16.msra.mxu0 0
        %3371 = vmatprep.subr.bf16.mxu0 0
        %3372 = vmatpush2.bf16.msra.mxu0 0
        %3373 = vmatprep.subr.bf16.mxu0 0
        %3374 = vmatpush2.bf16.msra.mxu0 0
        %3375 = vmatprep.subr.bf16.mxu0 0
        %3376 = vmatpush2.bf16.msra.mxu0 0
        %3377 = vmatprep.subr.bf16.mxu0 0
        %3378 = vmatpush2.bf16.msra.mxu0 0
        %3379 = vmatprep.mubr.bf16.mxu0 0
        %3380 = vmatmul.mubr.bf16.gmra.mxu0 %v3345
        %v3381 = vpop.f32.mrf.mxu0
        %v3382 = vadd.f32 0.0, %v3381
        %v3383 = vpop.f32.mrf.mxu0
        %v3384 = vpop.f32.mrf.mxu0
        %v3385 = vadd.f32 0.0, %v3384
        %v3386 = vpop.f32.mrf.mxu0
        %3387 = vdwg.mxu0
        %v3388 = vpack.c.bf16 %v3385, %v3382
        %3390 = vrot.lane.b32.xlu0 %v3261, 96
        %v3391 = vpop.permute.xlu0 %3390
        %3393 = vrot.lane.b32.xlu0 %v3262, 96
        %v3394 = vpop.permute.xlu0 %3393
        %v3396 = vsel %vm1138, %v3391, 0
        %v3399 = vsel %vm1138, %v3394, 0
        %3401 = vmatprep.subr.bf16.mxu0 0
        %3402 = vmatpush1.bf16.xpose.msra.mxu0 0
        %3403 = vmatprep.subr.bf16.mxu0 0
        %3404 = vmatpush1.bf16.xpose.msra.mxu0 0
        %3405 = vmatprep.subr.bf16.mxu0 0
        %3406 = vmatpush1.bf16.xpose.msra.mxu0 0
        %3407 = vmatprep.subr.bf16.mxu0 0
        %3408 = vmatpush1.bf16.xpose.msra.mxu0 0
        %3409 = vmatprep.subr.bf16.mxu0 0
        %3410 = vmatpush1.bf16.xpose.msra.mxu0 0
        %3411 = vmatprep.subr.bf16.mxu0 0
        %3412 = vmatpush1.bf16.xpose.msra.mxu0 0
        %3413 = vmatprep.subr.bf16.mxu0 0
        %3414 = vmatpush1.bf16.xpose.msra.mxu0 0
        %3415 = vmatprep.subr.bf16.mxu0 0
        %3416 = vmatpush1.bf16.xpose.msra.mxu0 %v3399
        %3417 = vmatprep.subr.bf16.mxu0 0
        %3418 = vmatpush2.bf16.xpose.msra.mxu0 0
        %3419 = vmatprep.subr.bf16.mxu0 0
        %3420 = vmatpush2.bf16.xpose.msra.mxu0 0
        %3421 = vmatprep.subr.bf16.mxu0 0
        %3422 = vmatpush2.bf16.xpose.msra.mxu0 0
        %3423 = vmatprep.subr.bf16.mxu0 0
        %3424 = vmatpush2.bf16.xpose.msra.mxu0 0
        %3425 = vmatprep.subr.bf16.mxu0 0
        %3426 = vmatpush2.bf16.xpose.msra.mxu0 0
        %3427 = vmatprep.subr.bf16.mxu0 0
        %3428 = vmatpush2.bf16.xpose.msra.mxu0 0
        %3429 = vmatprep.subr.bf16.mxu0 0
        %3430 = vmatpush2.bf16.xpose.msra.mxu0 0
        %3431 = vmatprep.subr.bf16.mxu0 0
        %3432 = vmatpush2.bf16.xpose.msra.mxu0 0
        %3433 = vmatprep.mubr.bf16.mxu0 0
        %3434 = vmatmul.mubr.bf16.gmra.mxu0 %v3396
        %v3435 = vpop.f32.mrf.mxu0
        %v3436 = vadd.f32 0.0, %v3435
        %v3437 = vpop.f32.mrf.mxu0
        %v3438 = vpop.f32.mrf.mxu0
        %v3439 = vadd.f32 0.0, %v3438
        %v3440 = vpop.f32.mrf.mxu0
        %3441 = vdwg.mxu0
        %v3442 = vmul.f32 %v3436, 0.17677669
        %v3443 = vmul.f32 %v3439, 0.17677669
        %v3444 = vsel %vm3318, -1e+09, %v3442
        %v3445 = vsel %vm3318, -1e+09, %v3443
        %v3446 = vsel %vm1196, %v3444, -inf
        %3447 = vmax.xlane.f32.xlu0 %v3446
        %v3448 = vpop.xlane.xlu0 %3447
        %v3449 = vsel %vm1196, %v3445, -inf
        %3450 = vmax.xlane.f32.xlu0 %v3449
        %v3451 = vpop.xlane.xlu0 %3450
        %v3452 = vsub.f32 %v3444, %v3448
        %v3453 = vsub.f32 %v3445, %v3451
        %v3454 = vmul.f32 %v3452, 1.442695
        %v3455 = vpow.pop %v3454
        %v3456 = vmul.f32 %v3453, 1.442695
        %v3457 = vpow.pop %v3456
        %v3458 = vsel %vm1196, %v3455, 0.0
        %3459 = vadd.xlane.f32.xlu0 %v3458
        %v3460 = vpop.xlane.xlu0 %3459
        %v3461 = vsel %vm1196, %v3457, 0.0
        %3462 = vadd.xlane.f32.xlu0 %v3461
        %v3463 = vpop.xlane.xlu0 %3462
        %v3464 = vrcp.pop %v3460
        %v3465 = vrcp.pop %v3463
        %v3466 = vmul.f32 %v3455, %v3464
        %v3467 = vmul.f32 %v3457, %v3465
        %v3468 = vpack.c.bf16 %v3467, %v3466
        %3470 = vrot.lane.b32.xlu0 %v3263, 96
        %v3471 = vpop.permute.xlu0 %3470
        %v3474 = vsel %vm1196, %v3468, 0
        %3476 = vmatprep.subr.bf16.mxu0 0
        %3477 = vmatpush1.bf16.msra.mxu0 0
        %3478 = vmatprep.subr.bf16.mxu0 0
        %3479 = vmatpush1.bf16.msra.mxu0 0
        %3480 = vmatprep.subr.bf16.mxu0 0
        %3481 = vmatpush1.bf16.msra.mxu0 0
        %3482 = vmatprep.subr.bf16.mxu0 0
        %3483 = vmatpush1.bf16.msra.mxu0 0
        %3484 = vmatprep.subr.bf16.mxu0 0
        %3485 = vmatpush1.bf16.msra.mxu0 0
        %3486 = vmatprep.subr.bf16.mxu0 0
        %3487 = vmatpush1.bf16.msra.mxu0 0
        %3488 = vmatprep.subr.bf16.mxu0 0
        %3489 = vmatpush1.bf16.msra.mxu0 0
        %3490 = vmatprep.subr.bf16.mxu0 0
        %3491 = vmatpush1.bf16.msra.mxu0 %v3471
        %3492 = vmatprep.subr.bf16.mxu0 0
        %3493 = vmatpush2.bf16.msra.mxu0 0
        %3494 = vmatprep.subr.bf16.mxu0 0
        %3495 = vmatpush2.bf16.msra.mxu0 0
        %3496 = vmatprep.subr.bf16.mxu0 0
        %3497 = vmatpush2.bf16.msra.mxu0 0
        %3498 = vmatprep.subr.bf16.mxu0 0
        %3499 = vmatpush2.bf16.msra.mxu0 0
        %3500 = vmatprep.subr.bf16.mxu0 0
        %3501 = vmatpush2.bf16.msra.mxu0 0
        %3502 = vmatprep.subr.bf16.mxu0 0
        %3503 = vmatpush2.bf16.msra.mxu0 0
        %3504 = vmatprep.subr.bf16.mxu0 0
        %3505 = vmatpush2.bf16.msra.mxu0 0
        %3506 = vmatprep.subr.bf16.mxu0 0
        %3507 = vmatpush2.bf16.msra.mxu0 0
        %3508 = vmatprep.mubr.bf16.mxu0 0
        %3509 = vmatmul.mubr.bf16.gmra.mxu0 %v3474
        %v3510 = vpop.f32.mrf.mxu0
        %v3511 = vadd.f32 0.0, %v3510
        %v3512 = vpop.f32.mrf.mxu0
        %v3513 = vpop.f32.mrf.mxu0
        %v3514 = vadd.f32 0.0, %v3513
        %v3515 = vpop.f32.mrf.mxu0
        %3516 = vdwg.mxu0
        %v3517 = vpack.c.bf16 %v3514, %v3511
        %v3519 = vsel %vm1138, %v3517, 0
        %3521 = vmatprep.subr.bf16.mxu0 0
        %3522 = vmatpush1.bf16.msra.mxu0 0
        %3523 = vmatprep.subr.bf16.mxu0 0
        %3524 = vmatpush1.bf16.msra.mxu0 0
        %3525 = vmatprep.subr.bf16.mxu0 0
        %3526 = vmatpush1.bf16.msra.mxu0 0
        %3527 = vmatprep.subr.bf16.mxu0 0
        %3528 = vmatpush1.bf16.msra.mxu0 0
        %3529 = vmatprep.subr.bf16.mxu0 0
        %3530 = vmatpush1.bf16.msra.mxu0 0
        %3531 = vmatprep.subr.bf16.mxu0 0
        %3532 = vmatpush1.bf16.msra.mxu0 0
        %3533 = vmatprep.subr.bf16.mxu0 0
        %3534 = vmatpush1.bf16.msra.mxu0 %v1403
        %3535 = vmatprep.subr.bf16.mxu0 0
        %3536 = vmatpush1.bf16.msra.mxu0 %v1402
        %3537 = vmatprep.subr.bf16.mxu0 0
        %3538 = vmatpush2.bf16.msra.mxu0 0
        %3539 = vmatprep.subr.bf16.mxu0 0
        %3540 = vmatpush2.bf16.msra.mxu0 0
        %3541 = vmatprep.subr.bf16.mxu0 0
        %3542 = vmatpush2.bf16.msra.mxu0 0
        %3543 = vmatprep.subr.bf16.mxu0 0
        %3544 = vmatpush2.bf16.msra.mxu0 0
        %3545 = vmatprep.subr.bf16.mxu0 0
        %3546 = vmatpush2.bf16.msra.mxu0 0
        %3547 = vmatprep.subr.bf16.mxu0 0
        %3548 = vmatpush2.bf16.msra.mxu0 0
        %3549 = vmatprep.subr.bf16.mxu0 0
        %3550 = vmatpush2.bf16.msra.mxu0 0
        %3551 = vmatprep.subr.bf16.mxu0 0
        %3552 = vmatpush2.bf16.msra.mxu0 0
        %3553 = vmatprep.mubr.bf16.mxu0 0
        %3554 = vmatmul.mubr.bf16.gmra.mxu0 %v3519
        %v3555 = vpop.f32.mrf.mxu0
        %v3556 = vadd.f32 0.0, %v3555
        %v3557 = vpop.f32.mrf.mxu0
        %v3558 = vpop.f32.mrf.mxu0
        %v3559 = vadd.f32 0.0, %v3558
        %v3560 = vpop.f32.mrf.mxu0
        %3561 = vdwg.mxu0
        %v3563 = vsel %vm1138, %v3388, 0
        %3565 = vmatprep.subr.bf16.mxu0 0
        %3566 = vmatpush1.bf16.msra.mxu0 0
        %3567 = vmatprep.subr.bf16.mxu0 0
        %3568 = vmatpush1.bf16.msra.mxu0 0
        %3569 = vmatprep.subr.bf16.mxu0 0
        %3570 = vmatpush1.bf16.msra.mxu0 0
        %3571 = vmatprep.subr.bf16.mxu0 0
        %3572 = vmatpush1.bf16.msra.mxu0 0
        %3573 = vmatprep.subr.bf16.mxu0 0
        %3574 = vmatpush1.bf16.msra.mxu0 0
        %3575 = vmatprep.subr.bf16.mxu0 0
        %3576 = vmatpush1.bf16.msra.mxu0 0
        %3577 = vmatprep.subr.bf16.mxu0 0
        %3578 = vmatpush1.bf16.msra.mxu0 %v1459
        %3579 = vmatprep.subr.bf16.mxu0 0
        %3580 = vmatpush1.bf16.msra.mxu0 %v1458
        %3581 = vmatprep.subr.bf16.mxu0 0
        %3582 = vmatpush2.bf16.msra.mxu0 0
        %3583 = vmatprep.subr.bf16.mxu0 0
        %3584 = vmatpush2.bf16.msra.mxu0 0
        %3585 = vmatprep.subr.bf16.mxu0 0
        %3586 = vmatpush2.bf16.msra.mxu0 0
        %3587 = vmatprep.subr.bf16.mxu0 0
        %3588 = vmatpush2.bf16.msra.mxu0 0
        %3589 = vmatprep.subr.bf16.mxu0 0
        %3590 = vmatpush2.bf16.msra.mxu0 0
        %3591 = vmatprep.subr.bf16.mxu0 0
        %3592 = vmatpush2.bf16.msra.mxu0 0
        %3593 = vmatprep.subr.bf16.mxu0 0
        %3594 = vmatpush2.bf16.msra.mxu0 0
        %3595 = vmatprep.subr.bf16.mxu0 0
        %3596 = vmatpush2.bf16.msra.mxu0 0
        %3597 = vmatprep.mubr.bf16.mxu0 0
        %3598 = vmatmul.mubr.bf16.gmra.mxu0 %v3563
        %v3599 = vpop.f32.mrf.mxu0
        %v3600 = vadd.f32 %v3556, %v3599
        %v3601 = vpop.f32.mrf.mxu0
        %v3602 = vpop.f32.mrf.mxu0
        %v3603 = vadd.f32 %v3559, %v3602
        %v3604 = vpop.f32.mrf.mxu0
        %3605 = vdwg.mxu0
        %3606 = vrot.lane.b32.xlu0 %v3261, 64
        %v3607 = vpop.permute.xlu0 %3606
        %3608 = vrot.lane.b32.xlu0 %v3262, 64
        %v3609 = vpop.permute.xlu0 %3608
        %v3611 = vsel %vm1138, %v3607, 0
        %v3614 = vsel %vm1138, %v3609, 0
        %3616 = vmatprep.subr.bf16.mxu0 0
        %3617 = vmatpush1.bf16.xpose.msra.mxu0 0
        %3618 = vmatprep.subr.bf16.mxu0 0
        %3619 = vmatpush1.bf16.xpose.msra.mxu0 0
        %3620 = vmatprep.subr.bf16.mxu0 0
        %3621 = vmatpush1.bf16.xpose.msra.mxu0 0
        %3622 = vmatprep.subr.bf16.mxu0 0
        %3623 = vmatpush1.bf16.xpose.msra.mxu0 0
        %3624 = vmatprep.subr.bf16.mxu0 0
        %3625 = vmatpush1.bf16.xpose.msra.mxu0 0
        %3626 = vmatprep.subr.bf16.mxu0 0
        %3627 = vmatpush1.bf16.xpose.msra.mxu0 0
        %3628 = vmatprep.subr.bf16.mxu0 0
        %3629 = vmatpush1.bf16.xpose.msra.mxu0 0
        %3630 = vmatprep.subr.bf16.mxu0 0
        %3631 = vmatpush1.bf16.xpose.msra.mxu0 %v3614
        %3632 = vmatprep.subr.bf16.mxu0 0
        %3633 = vmatpush2.bf16.xpose.msra.mxu0 0
        %3634 = vmatprep.subr.bf16.mxu0 0
        %3635 = vmatpush2.bf16.xpose.msra.mxu0 0
        %3636 = vmatprep.subr.bf16.mxu0 0
        %3637 = vmatpush2.bf16.xpose.msra.mxu0 0
        %3638 = vmatprep.subr.bf16.mxu0 0
        %3639 = vmatpush2.bf16.xpose.msra.mxu0 0
        %3640 = vmatprep.subr.bf16.mxu0 0
        %3641 = vmatpush2.bf16.xpose.msra.mxu0 0
        %3642 = vmatprep.subr.bf16.mxu0 0
        %3643 = vmatpush2.bf16.xpose.msra.mxu0 0
        %3644 = vmatprep.subr.bf16.mxu0 0
        %3645 = vmatpush2.bf16.xpose.msra.mxu0 0
        %3646 = vmatprep.subr.bf16.mxu0 0
        %3647 = vmatpush2.bf16.xpose.msra.mxu0 0
        %3648 = vmatprep.mubr.bf16.mxu0 0
        %3649 = vmatmul.mubr.bf16.gmra.mxu0 %v3611
        %v3650 = vpop.f32.mrf.mxu0
        %v3651 = vadd.f32 0.0, %v3650
        %v3652 = vpop.f32.mrf.mxu0
        %v3653 = vpop.f32.mrf.mxu0
        %v3654 = vadd.f32 0.0, %v3653
        %v3655 = vpop.f32.mrf.mxu0
        %3656 = vdwg.mxu0
        %v3657 = vmul.f32 %v3651, 0.17677669
        %v3658 = vmul.f32 %v3654, 0.17677669
        %v3659 = vsel %vm3318, -1e+09, %v3657
        %v3660 = vsel %vm3318, -1e+09, %v3658
        %v3661 = vsel %vm1196, %v3659, -inf
        %3662 = vmax.xlane.f32.xlu0 %v3661
        %v3663 = vpop.xlane.xlu0 %3662
        %v3664 = vsel %vm1196, %v3660, -inf
        %3665 = vmax.xlane.f32.xlu0 %v3664
        %v3666 = vpop.xlane.xlu0 %3665
        %v3667 = vsub.f32 %v3659, %v3663
        %v3668 = vsub.f32 %v3660, %v3666
        %v3669 = vmul.f32 %v3667, 1.442695
        %v3670 = vpow.pop %v3669
        %v3671 = vmul.f32 %v3668, 1.442695
        %v3672 = vpow.pop %v3671
        %v3673 = vsel %vm1196, %v3670, 0.0
        %3674 = vadd.xlane.f32.xlu0 %v3673
        %v3675 = vpop.xlane.xlu0 %3674
        %v3676 = vsel %vm1196, %v3672, 0.0
        %3677 = vadd.xlane.f32.xlu0 %v3676
        %v3678 = vpop.xlane.xlu0 %3677
        %v3679 = vrcp.pop %v3675
        %v3680 = vrcp.pop %v3678
        %v3681 = vmul.f32 %v3670, %v3679
        %v3682 = vmul.f32 %v3672, %v3680
        %v3683 = vpack.c.bf16 %v3682, %v3681
        %3684 = vrot.lane.b32.xlu0 %v3263, 64
        %v3685 = vpop.permute.xlu0 %3684
        %v3688 = vsel %vm1196, %v3683, 0
        %3690 = vmatprep.subr.bf16.mxu0 0
        %3691 = vmatpush1.bf16.msra.mxu0 0
        %3692 = vmatprep.subr.bf16.mxu0 0
        %3693 = vmatpush1.bf16.msra.mxu0 0
        %3694 = vmatprep.subr.bf16.mxu0 0
        %3695 = vmatpush1.bf16.msra.mxu0 0
        %3696 = vmatprep.subr.bf16.mxu0 0
        %3697 = vmatpush1.bf16.msra.mxu0 0
        %3698 = vmatprep.subr.bf16.mxu0 0
        %3699 = vmatpush1.bf16.msra.mxu0 0
        %3700 = vmatprep.subr.bf16.mxu0 0
        %3701 = vmatpush1.bf16.msra.mxu0 0
        %3702 = vmatprep.subr.bf16.mxu0 0
        %3703 = vmatpush1.bf16.msra.mxu0 0
        %3704 = vmatprep.subr.bf16.mxu0 0
        %3705 = vmatpush1.bf16.msra.mxu0 %v3685
        %3706 = vmatprep.subr.bf16.mxu0 0
        %3707 = vmatpush2.bf16.msra.mxu0 0
        %3708 = vmatprep.subr.bf16.mxu0 0
        %3709 = vmatpush2.bf16.msra.mxu0 0
        %3710 = vmatprep.subr.bf16.mxu0 0
        %3711 = vmatpush2.bf16.msra.mxu0 0
        %3712 = vmatprep.subr.bf16.mxu0 0
        %3713 = vmatpush2.bf16.msra.mxu0 0
        %3714 = vmatprep.subr.bf16.mxu0 0
        %3715 = vmatpush2.bf16.msra.mxu0 0
        %3716 = vmatprep.subr.bf16.mxu0 0
        %3717 = vmatpush2.bf16.msra.mxu0 0
        %3718 = vmatprep.subr.bf16.mxu0 0
        %3719 = vmatpush2.bf16.msra.mxu0 0
        %3720 = vmatprep.subr.bf16.mxu0 0
        %3721 = vmatpush2.bf16.msra.mxu0 0
        %3722 = vmatprep.mubr.bf16.mxu0 0
        %3723 = vmatmul.mubr.bf16.gmra.mxu0 %v3688
        %v3724 = vpop.f32.mrf.mxu0
        %v3725 = vadd.f32 0.0, %v3724
        %v3726 = vpop.f32.mrf.mxu0
        %v3727 = vpop.f32.mrf.mxu0
        %v3728 = vadd.f32 0.0, %v3727
        %v3729 = vpop.f32.mrf.mxu0
        %3730 = vdwg.mxu0
        %v3731 = vpack.c.bf16 %v3728, %v3725
        %v3733 = vsel %vm1138, %v3731, 0
        %3735 = vmatprep.subr.bf16.mxu0 0
        %3736 = vmatpush1.bf16.msra.mxu0 0
        %3737 = vmatprep.subr.bf16.mxu0 0
        %3738 = vmatpush1.bf16.msra.mxu0 0
        %3739 = vmatprep.subr.bf16.mxu0 0
        %3740 = vmatpush1.bf16.msra.mxu0 0
        %3741 = vmatprep.subr.bf16.mxu0 0
        %3742 = vmatpush1.bf16.msra.mxu0 0
        %3743 = vmatprep.subr.bf16.mxu0 0
        %3744 = vmatpush1.bf16.msra.mxu0 0
        %3745 = vmatprep.subr.bf16.mxu0 0
        %3746 = vmatpush1.bf16.msra.mxu0 0
        %3747 = vmatprep.subr.bf16.mxu0 0
        %3748 = vmatpush1.bf16.msra.mxu0 %v1641
        %3749 = vmatprep.subr.bf16.mxu0 0
        %3750 = vmatpush1.bf16.msra.mxu0 %v1640
        %3751 = vmatprep.subr.bf16.mxu0 0
        %3752 = vmatpush2.bf16.msra.mxu0 0
        %3753 = vmatprep.subr.bf16.mxu0 0
        %3754 = vmatpush2.bf16.msra.mxu0 0
        %3755 = vmatprep.subr.bf16.mxu0 0
        %3756 = vmatpush2.bf16.msra.mxu0 0
        %3757 = vmatprep.subr.bf16.mxu0 0
        %3758 = vmatpush2.bf16.msra.mxu0 0
        %3759 = vmatprep.subr.bf16.mxu0 0
        %3760 = vmatpush2.bf16.msra.mxu0 0
        %3761 = vmatprep.subr.bf16.mxu0 0
        %3762 = vmatpush2.bf16.msra.mxu0 0
        %3763 = vmatprep.subr.bf16.mxu0 0
        %3764 = vmatpush2.bf16.msra.mxu0 0
        %3765 = vmatprep.subr.bf16.mxu0 0
        %3766 = vmatpush2.bf16.msra.mxu0 0
        %3767 = vmatprep.mubr.bf16.mxu0 0
        %3768 = vmatmul.mubr.bf16.gmra.mxu0 %v3733
        %v3769 = vpop.f32.mrf.mxu0
        %v3770 = vadd.f32 0.0, %v3769
        %v3771 = vpop.f32.mrf.mxu0
        %v3772 = vpop.f32.mrf.mxu0
        %v3773 = vadd.f32 0.0, %v3772
        %v3774 = vpop.f32.mrf.mxu0
        %3775 = vdwg.mxu0
        %v3776 = vadd.f32 %v3600, %v3770
        %v3777 = vadd.f32 %v3603, %v3773
        %3778 = vrot.lane.b32.xlu0 %v3261, 32
        %v3779 = vpop.permute.xlu0 %3778
        %3780 = vrot.lane.b32.xlu0 %v3262, 32
        %v3781 = vpop.permute.xlu0 %3780
        %v3783 = vsel %vm1138, %v3779, 0
        %v3786 = vsel %vm1138, %v3781, 0
        %3788 = vmatprep.subr.bf16.mxu0 0
        %3789 = vmatpush1.bf16.xpose.msra.mxu0 0
        %3790 = vmatprep.subr.bf16.mxu0 0
        %3791 = vmatpush1.bf16.xpose.msra.mxu0 0
        %3792 = vmatprep.subr.bf16.mxu0 0
        %3793 = vmatpush1.bf16.xpose.msra.mxu0 0
        %3794 = vmatprep.subr.bf16.mxu0 0
        %3795 = vmatpush1.bf16.xpose.msra.mxu0 0
        %3796 = vmatprep.subr.bf16.mxu0 0
        %3797 = vmatpush1.bf16.xpose.msra.mxu0 0
        %3798 = vmatprep.subr.bf16.mxu0 0
        %3799 = vmatpush1.bf16.xpose.msra.mxu0 0
        %3800 = vmatprep.subr.bf16.mxu0 0
        %3801 = vmatpush1.bf16.xpose.msra.mxu0 0
        %3802 = vmatprep.subr.bf16.mxu0 0
        %3803 = vmatpush1.bf16.xpose.msra.mxu0 %v3786
        %3804 = vmatprep.subr.bf16.mxu0 0
        %3805 = vmatpush2.bf16.xpose.msra.mxu0 0
        %3806 = vmatprep.subr.bf16.mxu0 0
        %3807 = vmatpush2.bf16.xpose.msra.mxu0 0
        %3808 = vmatprep.subr.bf16.mxu0 0
        %3809 = vmatpush2.bf16.xpose.msra.mxu0 0
        %3810 = vmatprep.subr.bf16.mxu0 0
        %3811 = vmatpush2.bf16.xpose.msra.mxu0 0
        %3812 = vmatprep.subr.bf16.mxu0 0
        %3813 = vmatpush2.bf16.xpose.msra.mxu0 0
        %3814 = vmatprep.subr.bf16.mxu0 0
        %3815 = vmatpush2.bf16.xpose.msra.mxu0 0
        %3816 = vmatprep.subr.bf16.mxu0 0
        %3817 = vmatpush2.bf16.xpose.msra.mxu0 0
        %3818 = vmatprep.subr.bf16.mxu0 0
        %3819 = vmatpush2.bf16.xpose.msra.mxu0 0
        %3820 = vmatprep.mubr.bf16.mxu0 0
        %3821 = vmatmul.mubr.bf16.gmra.mxu0 %v3783
        %v3822 = vpop.f32.mrf.mxu0
        %v3823 = vadd.f32 0.0, %v3822
        %v3824 = vpop.f32.mrf.mxu0
        %v3825 = vpop.f32.mrf.mxu0
        %v3826 = vadd.f32 0.0, %v3825
        %v3827 = vpop.f32.mrf.mxu0
        %3828 = vdwg.mxu0
        %v3829 = vmul.f32 %v3823, 0.17677669
        %v3830 = vmul.f32 %v3826, 0.17677669
        %v3831 = vsel %vm3318, -1e+09, %v3829
        %v3832 = vsel %vm3318, -1e+09, %v3830
        %v3833 = vsel %vm1196, %v3831, -inf
        %3834 = vmax.xlane.f32.xlu0 %v3833
        %v3835 = vpop.xlane.xlu0 %3834
        %v3836 = vsel %vm1196, %v3832, -inf
        %3837 = vmax.xlane.f32.xlu0 %v3836
        %v3838 = vpop.xlane.xlu0 %3837
        %v3839 = vsub.f32 %v3831, %v3835
        %v3840 = vsub.f32 %v3832, %v3838
        %v3841 = vmul.f32 %v3839, 1.442695
        %v3842 = vpow.pop %v3841
        %v3843 = vmul.f32 %v3840, 1.442695
        %v3844 = vpow.pop %v3843
        %v3845 = vsel %vm1196, %v3842, 0.0
        %3846 = vadd.xlane.f32.xlu0 %v3845
        %v3847 = vpop.xlane.xlu0 %3846
        %v3848 = vsel %vm1196, %v3844, 0.0
        %3849 = vadd.xlane.f32.xlu0 %v3848
        %v3850 = vpop.xlane.xlu0 %3849
        %v3851 = vrcp.pop %v3847
        %v3852 = vrcp.pop %v3850
        %v3853 = vmul.f32 %v3842, %v3851
        %v3854 = vmul.f32 %v3844, %v3852
        %v3855 = vpack.c.bf16 %v3854, %v3853
        %3856 = vrot.lane.b32.xlu0 %v3263, 32
        %v3857 = vpop.permute.xlu0 %3856
        %v3860 = vsel %vm1196, %v3855, 0
        %3862 = vmatprep.subr.bf16.mxu0 0
        %3863 = vmatpush1.bf16.msra.mxu0 0
        %3864 = vmatprep.subr.bf16.mxu0 0
        %3865 = vmatpush1.bf16.msra.mxu0 0
        %3866 = vmatprep.subr.bf16.mxu0 0
        %3867 = vmatpush1.bf16.msra.mxu0 0
        %3868 = vmatprep.subr.bf16.mxu0 0
        %3869 = vmatpush1.bf16.msra.mxu0 0
        %3870 = vmatprep.subr.bf16.mxu0 0
        %3871 = vmatpush1.bf16.msra.mxu0 0
        %3872 = vmatprep.subr.bf16.mxu0 0
        %3873 = vmatpush1.bf16.msra.mxu0 0
        %3874 = vmatprep.subr.bf16.mxu0 0
        %3875 = vmatpush1.bf16.msra.mxu0 0
        %3876 = vmatprep.subr.bf16.mxu0 0
        %3877 = vmatpush1.bf16.msra.mxu0 %v3857
        %3878 = vmatprep.subr.bf16.mxu0 0
        %3879 = vmatpush2.bf16.msra.mxu0 0
        %3880 = vmatprep.subr.bf16.mxu0 0
        %3881 = vmatpush2.bf16.msra.mxu0 0
        %3882 = vmatprep.subr.bf16.mxu0 0
        %3883 = vmatpush2.bf16.msra.mxu0 0
        %3884 = vmatprep.subr.bf16.mxu0 0
        %3885 = vmatpush2.bf16.msra.mxu0 0
        %3886 = vmatprep.subr.bf16.mxu0 0
        %3887 = vmatpush2.bf16.msra.mxu0 0
        %3888 = vmatprep.subr.bf16.mxu0 0
        %3889 = vmatpush2.bf16.msra.mxu0 0
        %3890 = vmatprep.subr.bf16.mxu0 0
        %3891 = vmatpush2.bf16.msra.mxu0 0
        %3892 = vmatprep.subr.bf16.mxu0 0
        %3893 = vmatpush2.bf16.msra.mxu0 0
        %3894 = vmatprep.mubr.bf16.mxu0 0
        %3895 = vmatmul.mubr.bf16.gmra.mxu0 %v3860
        %v3896 = vpop.f32.mrf.mxu0
        %v3897 = vadd.f32 0.0, %v3896
        %v3898 = vpop.f32.mrf.mxu0
        %v3899 = vpop.f32.mrf.mxu0
        %v3900 = vadd.f32 0.0, %v3899
        %v3901 = vpop.f32.mrf.mxu0
        %3902 = vdwg.mxu0
        %v3903 = vpack.c.bf16 %v3900, %v3897
        %v3905 = vsel %vm1138, %v3903, 0
        %3907 = vmatprep.subr.bf16.mxu0 0
        %3908 = vmatpush1.bf16.msra.mxu0 0
        %3909 = vmatprep.subr.bf16.mxu0 0
        %3910 = vmatpush1.bf16.msra.mxu0 0
        %3911 = vmatprep.subr.bf16.mxu0 0
        %3912 = vmatpush1.bf16.msra.mxu0 0
        %3913 = vmatprep.subr.bf16.mxu0 0
        %3914 = vmatpush1.bf16.msra.mxu0 0
        %3915 = vmatprep.subr.bf16.mxu0 0
        %3916 = vmatpush1.bf16.msra.mxu0 0
        %3917 = vmatprep.subr.bf16.mxu0 0
        %3918 = vmatpush1.bf16.msra.mxu0 0
        %3919 = vmatprep.subr.bf16.mxu0 0
        %3920 = vmatpush1.bf16.msra.mxu0 %v1825
        %3921 = vmatprep.subr.bf16.mxu0 0
        %3922 = vmatpush1.bf16.msra.mxu0 %v1824
        %3923 = vmatprep.subr.bf16.mxu0 0
        %3924 = vmatpush2.bf16.msra.mxu0 0
        %3925 = vmatprep.subr.bf16.mxu0 0
        %3926 = vmatpush2.bf16.msra.mxu0 0
        %3927 = vmatprep.subr.bf16.mxu0 0
        %3928 = vmatpush2.bf16.msra.mxu0 0
        %3929 = vmatprep.subr.bf16.mxu0 0
        %3930 = vmatpush2.bf16.msra.mxu0 0
        %3931 = vmatprep.subr.bf16.mxu0 0
        %3932 = vmatpush2.bf16.msra.mxu0 0
        %3933 = vmatprep.subr.bf16.mxu0 0
        %3934 = vmatpush2.bf16.msra.mxu0 0
        %3935 = vmatprep.subr.bf16.mxu0 0
        %3936 = vmatpush2.bf16.msra.mxu0 0
        %3937 = vmatprep.subr.bf16.mxu0 0
        %3938 = vmatpush2.bf16.msra.mxu0 0
        %3939 = vmatprep.mubr.bf16.mxu0 0
        %3940 = vmatmul.mubr.bf16.gmra.mxu0 %v3905
        %v3941 = vpop.f32.mrf.mxu0
        %v3942 = vadd.f32 0.0, %v3941
        %v3943 = vpop.f32.mrf.mxu0
        %v3944 = vpop.f32.mrf.mxu0
        %v3945 = vadd.f32 0.0, %v3944
        %v3946 = vpop.f32.mrf.mxu0
        %3947 = vdwg.mxu0
        %v3948 = vadd.f32 %v3776, %v3942
        %v3949 = vadd.f32 %v3777, %v3945
        %v3950 = vld [vmem:[%s7] sm:$0x1]
        %v3952 = vlaneseq
        %v3953 = vshrl.u32 %v3952, 7
        %v3954 = vsub.s32 0, %v3953
        %v3955 = vrot.slane %v3950, %v3954
        %v3957 = vadd.f32 %v1872, %v3955
        %v3958 = vadd.f32 %v1873, %v3955
        %v3959 = vadd.f32 %v2564, %v3955
        %v3960 = vadd.f32 %v2565, %v3955
        %v3961 = vadd.f32 %v3256, %v3955
        %v3962 = vadd.f32 %v3257, %v3955
        %v3963 = vadd.f32 %v3948, %v3955
        %v3964 = vadd.f32 %v3949, %v3955
        %v3965 = vadd.f32 %v614, %v3957
        %v3966 = vadd.f32 %v615, %v3958
        %v3967 = vadd.f32 %v616, %v3959
        %v3968 = vadd.f32 %v617, %v3960
        %v3969 = vadd.f32 %v618, %v3961
        %v3970 = vadd.f32 %v619, %v3962
        %v3971 = vadd.f32 %v620, %v3963
        %v3972 = vadd.f32 %v621, %v3964
        %v3973 = vld [vmem:[%s8] sm:$0x1]
        %v3974 = vld [vmem:[%s9] sm:$0x1]
        %3975 = vadd.xlane.f32.xlu0 %v3965
        %v3976 = vpop.xlane.xlu0 %3975
        %3977 = vadd.xlane.f32.xlu0 %v3966
        %v3978 = vpop.xlane.xlu0 %3977
        %3979 = vadd.xlane.f32.xlu0 %v3967
        %v3980 = vpop.xlane.xlu0 %3979
        %3981 = vadd.xlane.f32.xlu0 %v3968
        %v3982 = vpop.xlane.xlu0 %3981
        %3983 = vadd.xlane.f32.xlu0 %v3969
        %v3984 = vpop.xlane.xlu0 %3983
        %3985 = vadd.xlane.f32.xlu0 %v3970
        %v3986 = vpop.xlane.xlu0 %3985
        %3987 = vadd.xlane.f32.xlu0 %v3971
        %v3988 = vpop.xlane.xlu0 %3987
        %3989 = vadd.xlane.f32.xlu0 %v3972
        %v3990 = vpop.xlane.xlu0 %3989
        %v3991 = vmul.f32 %v3976, %v640
        %v3992 = vmul.f32 %v3978, %v640
        %v3993 = vmul.f32 %v3980, %v640
        %v3994 = vmul.f32 %v3982, %v640
        %v3995 = vmul.f32 %v3984, %v640
        %v3996 = vmul.f32 %v3986, %v640
        %v3997 = vmul.f32 %v3988, %v640
        %v3998 = vmul.f32 %v3990, %v640
        %v3999 = vsub.f32 %v3965, %v3991
        %v4000 = vsub.f32 %v3966, %v3992
        %v4001 = vsub.f32 %v3967, %v3993
        %v4002 = vsub.f32 %v3968, %v3994
        %v4003 = vsub.f32 %v3969, %v3995
        %v4004 = vsub.f32 %v3970, %v3996
        %v4005 = vsub.f32 %v3971, %v3997
        %v4006 = vsub.f32 %v3972, %v3998
        %v4007 = vmul.f32 %v3999, %v3999
        %v4008 = vmul.f32 %v4000, %v4000
        %v4009 = vmul.f32 %v4001, %v4001
        %v4010 = vmul.f32 %v4002, %v4002
        %v4011 = vmul.f32 %v4003, %v4003
        %v4012 = vmul.f32 %v4004, %v4004
        %v4013 = vmul.f32 %v4005, %v4005
        %v4014 = vmul.f32 %v4006, %v4006
        %4015 = vadd.xlane.f32.xlu0 %v4007
        %v4016 = vpop.xlane.xlu0 %4015
        %4017 = vadd.xlane.f32.xlu0 %v4008
        %v4018 = vpop.xlane.xlu0 %4017
        %4019 = vadd.xlane.f32.xlu0 %v4009
        %v4020 = vpop.xlane.xlu0 %4019
        %4021 = vadd.xlane.f32.xlu0 %v4010
        %v4022 = vpop.xlane.xlu0 %4021
        %4023 = vadd.xlane.f32.xlu0 %v4011
        %v4024 = vpop.xlane.xlu0 %4023
        %4025 = vadd.xlane.f32.xlu0 %v4012
        %v4026 = vpop.xlane.xlu0 %4025
        %4027 = vadd.xlane.f32.xlu0 %v4013
        %v4028 = vpop.xlane.xlu0 %4027
        %4029 = vadd.xlane.f32.xlu0 %v4014
        %v4030 = vpop.xlane.xlu0 %4029
        %v4031 = vmul.f32 %v4016, %v681
        %v4032 = vmul.f32 %v4018, %v681
        %v4033 = vmul.f32 %v4020, %v681
        %v4034 = vmul.f32 %v4022, %v681
        %v4035 = vmul.f32 %v4024, %v681
        %v4036 = vmul.f32 %v4026, %v681
        %v4037 = vmul.f32 %v4028, %v681
        %v4038 = vmul.f32 %v4030, %v681
        %v4039 = vrsqrt.pop %v4031
        %v4040 = vmul.f32 %v4031, %v4039
        %vm4041 = vcmp.eq.f32.partialorder %v4031, inf
        %v4042 = vsel %vm4041, %v4031, %v4040
        %vm4043 = vcmp.eq.f32.partialorder %v4031, 0.0
        %v4044 = vand.u32 %v4031, 2147483648
        %v4045 = vsel %vm4043, %v4044, %v4042
        %v4046 = vrsqrt.pop %v4032
        %v4047 = vmul.f32 %v4032, %v4046
        %vm4048 = vcmp.eq.f32.partialorder %v4032, inf
        %v4049 = vsel %vm4048, %v4032, %v4047
        %vm4050 = vcmp.eq.f32.partialorder %v4032, 0.0
        %v4051 = vand.u32 %v4032, 2147483648
        %v4052 = vsel %vm4050, %v4051, %v4049
        %v4053 = vrsqrt.pop %v4033
        %v4054 = vmul.f32 %v4033, %v4053
        %vm4055 = vcmp.eq.f32.partialorder %v4033, inf
        %v4056 = vsel %vm4055, %v4033, %v4054
        %vm4057 = vcmp.eq.f32.partialorder %v4033, 0.0
        %v4058 = vand.u32 %v4033, 2147483648
        %v4059 = vsel %vm4057, %v4058, %v4056
        %v4060 = vrsqrt.pop %v4034
        %v4061 = vmul.f32 %v4034, %v4060
        %vm4062 = vcmp.eq.f32.partialorder %v4034, inf
        %v4063 = vsel %vm4062, %v4034, %v4061
        %vm4064 = vcmp.eq.f32.partialorder %v4034, 0.0
        %v4065 = vand.u32 %v4034, 2147483648
        %v4066 = vsel %vm4064, %v4065, %v4063
        %v4067 = vrsqrt.pop %v4035
        %v4068 = vmul.f32 %v4035, %v4067
        %vm4069 = vcmp.eq.f32.partialorder %v4035, inf
        %v4070 = vsel %vm4069, %v4035, %v4068
        %vm4071 = vcmp.eq.f32.partialorder %v4035, 0.0
        %v4072 = vand.u32 %v4035, 2147483648
        %v4073 = vsel %vm4071, %v4072, %v4070
        %v4074 = vrsqrt.pop %v4036
        %v4075 = vmul.f32 %v4036, %v4074
        %vm4076 = vcmp.eq.f32.partialorder %v4036, inf
        %v4077 = vsel %vm4076, %v4036, %v4075
        %vm4078 = vcmp.eq.f32.partialorder %v4036, 0.0
        %v4079 = vand.u32 %v4036, 2147483648
        %v4080 = vsel %vm4078, %v4079, %v4077
        %v4081 = vrsqrt.pop %v4037
        %v4082 = vmul.f32 %v4037, %v4081
        %vm4083 = vcmp.eq.f32.partialorder %v4037, inf
        %v4084 = vsel %vm4083, %v4037, %v4082
        %vm4085 = vcmp.eq.f32.partialorder %v4037, 0.0
        %v4086 = vand.u32 %v4037, 2147483648
        %v4087 = vsel %vm4085, %v4086, %v4084
        %v4088 = vrsqrt.pop %v4038
        %v4089 = vmul.f32 %v4038, %v4088
        %vm4090 = vcmp.eq.f32.partialorder %v4038, inf
        %v4091 = vsel %vm4090, %v4038, %v4089
        %vm4092 = vcmp.eq.f32.partialorder %v4038, 0.0
        %v4093 = vand.u32 %v4038, 2147483648
        %v4094 = vsel %vm4092, %v4093, %v4091
        %v4095 = vadd.f32 %v4045, 1e-06
        %v4096 = vadd.f32 %v4052, 1e-06
        %v4097 = vadd.f32 %v4059, 1e-06
        %v4098 = vadd.f32 %v4066, 1e-06
        %v4099 = vadd.f32 %v4073, 1e-06
        %v4100 = vadd.f32 %v4080, 1e-06
        %v4101 = vadd.f32 %v4087, 1e-06
        %v4102 = vadd.f32 %v4094, 1e-06
        %v4103 = vrcp.pop %v4095
        %v4104 = vrcp.pop %v4096
        %v4105 = vrcp.pop %v4097
        %v4106 = vrcp.pop %v4098
        %v4107 = vrcp.pop %v4099
        %v4108 = vrcp.pop %v4100
        %v4109 = vrcp.pop %v4101
        %v4110 = vrcp.pop %v4102
        %v4112 = vlaneseq
        %v4113 = vshrl.u32 %v4112, 7
        %v4114 = vsub.s32 0, %v4113
        %v4115 = vrot.slane %v3973, %v4114
        %v4117 = vmul.f32 %v4115, %v3999
        %v4118 = vmul.f32 %v4115, %v4000
        %v4119 = vmul.f32 %v4115, %v4001
        %v4120 = vmul.f32 %v4115, %v4002
        %v4121 = vmul.f32 %v4115, %v4003
        %v4122 = vmul.f32 %v4115, %v4004
        %v4123 = vmul.f32 %v4115, %v4005
        %v4124 = vmul.f32 %v4115, %v4006
        %v4125 = vmul.f32 %v4117, %v4103
        %v4126 = vmul.f32 %v4118, %v4104
        %v4127 = vmul.f32 %v4119, %v4105
        %v4128 = vmul.f32 %v4120, %v4106
        %v4129 = vmul.f32 %v4121, %v4107
        %v4130 = vmul.f32 %v4122, %v4108
        %v4131 = vmul.f32 %v4123, %v4109
        %v4132 = vmul.f32 %v4124, %v4110
        %v4134 = vlaneseq
        %v4135 = vshrl.u32 %v4134, 7
        %v4136 = vsub.s32 0, %v4135
        %v4137 = vrot.slane %v3974, %v4136
        %v4139 = vadd.f32 %v4125, %v4137
        %v4140 = vadd.f32 %v4126, %v4137
        %v4141 = vadd.f32 %v4127, %v4137
        %v4142 = vadd.f32 %v4128, %v4137
        %v4143 = vadd.f32 %v4129, %v4137
        %v4144 = vadd.f32 %v4130, %v4137
        %v4145 = vadd.f32 %v4131, %v4137
        %v4146 = vadd.f32 %v4132, %v4137
        %v4147 = vpack.c.bf16 %v4140, %v4139
        %v4148 = vpack.c.bf16 %v4142, %v4141
        %v4149 = vpack.c.bf16 %v4144, %v4143
        %v4150 = vpack.c.bf16 %v4146, %v4145
        %v4151 = vld [vmem:[#allocation13] sm:$0xff]
        %v4152 = vld [vmem:[#allocation13 + $0x8] sm:$0xff]
        %v4153 = vld [vmem:[#allocation13 + $0x10] sm:$0xff]
        %v4154 = vld [vmem:[#allocation13 + $0x18] sm:$0xff]
        %v4155 = vld [vmem:[#allocation13 + $0x20] sm:$0xff]
        %v4156 = vld [vmem:[#allocation13 + $0x28] sm:$0xff]
        %v4157 = vld [vmem:[#allocation13 + $0x30] sm:$0xff]
        %v4158 = vld [vmem:[#allocation13 + $0x38] sm:$0xff]
        %v4159 = vld [vmem:[#allocation13 + $0x40] sm:$0xff]
        %v4160 = vld [vmem:[#allocation13 + $0x48] sm:$0xff]
        %v4161 = vld [vmem:[#allocation13 + $0x50] sm:$0xff]
        %v4162 = vld [vmem:[#allocation13 + $0x58] sm:$0xff]
        %v4163 = vld [vmem:[#allocation13 + $0x60] sm:$0xff]
        %v4164 = vld [vmem:[#allocation13 + $0x68] sm:$0xff]
        %v4165 = vld [vmem:[#allocation13 + $0x70] sm:$0xff]
        %v4166 = vld [vmem:[#allocation13 + $0x78] sm:$0xff]
        %v4167 = vld [vmem:[%s11] sm:$0x3]
        %v4169 = vlaneseq
        %v4170 = vshrl.u32 %v4169, 7
        %v4171 = vsub.s32 0, %v4170
        %v4172 = vrot.slane %v4167, %v4171
        %v4173 = vlaneseq
        %v4174 = vshrl.u32 %v4173, 7
        %v4175 = vsub.s32 1, %v4174
        %v4176 = vrot.slane %v4167, %v4175
        %v4195 = vunpack.c.l.b16 %v4151
        %v4196 = vunpack.c.h.b16 %v4151
        %v4197 = vunpack.c.l.b16 %v4152
        %v4198 = vunpack.c.h.b16 %v4152
        %v4199 = vunpack.c.l.b16 %v4153
        %v4200 = vunpack.c.h.b16 %v4153
        %v4201 = vunpack.c.l.b16 %v4154
        %v4202 = vunpack.c.h.b16 %v4154
        %v4203 = vunpack.c.l.b16 %v4155
        %v4204 = vunpack.c.h.b16 %v4155
        %v4205 = vunpack.c.l.b16 %v4156
        %v4206 = vunpack.c.h.b16 %v4156
        %v4207 = vunpack.c.l.b16 %v4157
        %v4208 = vunpack.c.h.b16 %v4157
        %v4209 = vunpack.c.l.b16 %v4158
        %v4210 = vunpack.c.h.b16 %v4158
        %v4211 = vunpack.c.l.b16 %v4159
        %v4212 = vunpack.c.h.b16 %v4159
        %v4213 = vunpack.c.l.b16 %v4160
        %v4214 = vunpack.c.h.b16 %v4160
        %v4215 = vunpack.c.l.b16 %v4161
        %v4216 = vunpack.c.h.b16 %v4161
        %v4217 = vunpack.c.l.b16 %v4162
        %v4218 = vunpack.c.h.b16 %v4162
        %v4219 = vunpack.c.l.b16 %v4163
        %v4220 = vunpack.c.h.b16 %v4163
        %v4221 = vunpack.c.l.b16 %v4164
        %v4222 = vunpack.c.h.b16 %v4164
        %v4223 = vunpack.c.l.b16 %v4165
        %v4224 = vunpack.c.h.b16 %v4165
        %v4225 = vunpack.c.l.b16 %v4166
        %v4226 = vunpack.c.h.b16 %v4166
        %v4227 = vpack.c.b16 %v4197, %v4195
        %v4228 = vpack.c.b16 %v4198, %v4196
        %v4229 = vpack.c.b16 %v4201, %v4199
        %v4230 = vpack.c.b16 %v4202, %v4200
        %v4231 = vpack.c.b16 %v4205, %v4203
        %v4232 = vpack.c.b16 %v4206, %v4204
        %v4233 = vpack.c.b16 %v4209, %v4207
        %v4234 = vpack.c.b16 %v4210, %v4208
        %v4235 = vpack.c.b16 %v4213, %v4211
        %v4236 = vpack.c.b16 %v4214, %v4212
        %v4237 = vpack.c.b16 %v4217, %v4215
        %v4238 = vpack.c.b16 %v4218, %v4216
        %v4239 = vpack.c.b16 %v4221, %v4219
        %v4240 = vpack.c.b16 %v4222, %v4220
        %v4241 = vpack.c.b16 %v4225, %v4223
        %v4242 = vpack.c.b16 %v4226, %v4224
        %4259 = vmatprep.subr.bf16.mxu0 %v4242
        %4260 = vmatpush1.bf16.msra.mxu0 %v4241
        %4261 = vmatprep.subr.bf16.mxu0 %v4240
        %4262 = vmatpush1.bf16.msra.mxu0 %v4239
        %4263 = vmatprep.subr.bf16.mxu0 %v4238
        %4264 = vmatpush1.bf16.msra.mxu0 %v4237
        %4265 = vmatprep.subr.bf16.mxu0 %v4236
        %4266 = vmatpush1.bf16.msra.mxu0 %v4235
        %4267 = vmatprep.subr.bf16.mxu0 %v4234
        %4268 = vmatpush1.bf16.msra.mxu0 %v4233
        %4269 = vmatprep.subr.bf16.mxu0 %v4232
        %4270 = vmatpush1.bf16.msra.mxu0 %v4231
        %4271 = vmatprep.subr.bf16.mxu0 %v4230
        %4272 = vmatpush1.bf16.msra.mxu0 %v4229
        %4273 = vmatprep.subr.bf16.mxu0 %v4228
        %4274 = vmatpush1.bf16.msra.mxu0 %v4227
        %4275 = vmatprep.subr.bf16.mxu0 0
        %4276 = vmatpush2.bf16.msra.mxu0 0
        %4277 = vmatprep.subr.bf16.mxu0 0
        %4278 = vmatpush2.bf16.msra.mxu0 0
        %4279 = vmatprep.subr.bf16.mxu0 0
        %4280 = vmatpush2.bf16.msra.mxu0 0
        %4281 = vmatprep.subr.bf16.mxu0 0
        %4282 = vmatpush2.bf16.msra.mxu0 0
        %4283 = vmatprep.subr.bf16.mxu0 0
        %4284 = vmatpush2.bf16.msra.mxu0 0
        %4285 = vmatprep.subr.bf16.mxu0 0
        %4286 = vmatpush2.bf16.msra.mxu0 0
        %4287 = vmatprep.subr.bf16.mxu0 0
        %4288 = vmatpush2.bf16.msra.mxu0 0
        %4289 = vmatprep.subr.bf16.mxu0 0
        %4290 = vmatpush2.bf16.msra.mxu0 0
        %4291 = vmatprep.mubr.bf16.mxu0 0
        %4292 = vmatmul.mubr.bf16.gmra.mxu0 %v4147
        %v4293 = vpop.f32.mrf.mxu0
        %v4294 = vadd.f32 %v4172, %v4293
        %v4295 = vpop.f32.mrf.mxu0
        %v4296 = vadd.f32 %v4176, %v4295
        %v4297 = vpop.f32.mrf.mxu0
        %v4298 = vadd.f32 %v4172, %v4297
        %v4299 = vpop.f32.mrf.mxu0
        %v4300 = vadd.f32 %v4176, %v4299
        %4301 = vmatprep.mubr.bf16.mxu0 0
        %4302 = vmatmul.mubr.bf16.gmra.mxu0 %v4148
        %v4303 = vpop.f32.mrf.mxu0
        %v4304 = vadd.f32 %v4172, %v4303
        %v4305 = vpop.f32.mrf.mxu0
        %v4306 = vadd.f32 %v4176, %v4305
        %v4307 = vpop.f32.mrf.mxu0
        %v4308 = vadd.f32 %v4172, %v4307
        %v4309 = vpop.f32.mrf.mxu0
        %v4310 = vadd.f32 %v4176, %v4309
        %4311 = vmatprep.mubr.bf16.mxu0 0
        %4312 = vmatmul.mubr.bf16.gmra.mxu0 %v4149
        %v4313 = vpop.f32.mrf.mxu0
        %v4314 = vadd.f32 %v4172, %v4313
        %v4315 = vpop.f32.mrf.mxu0
        %v4316 = vadd.f32 %v4176, %v4315
        %v4317 = vpop.f32.mrf.mxu0
        %v4318 = vadd.f32 %v4172, %v4317
        %v4319 = vpop.f32.mrf.mxu0
        %v4320 = vadd.f32 %v4176, %v4319
        %4321 = vmatprep.mubr.bf16.mxu0 0
        %4322 = vmatmul.mubr.bf16.gmra.mxu0 %v4150
        %v4323 = vpop.f32.mrf.mxu0
        %v4324 = vadd.f32 %v4172, %v4323
        %v4325 = vpop.f32.mrf.mxu0
        %v4326 = vadd.f32 %v4176, %v4325
        %v4327 = vpop.f32.mrf.mxu0
        %v4328 = vadd.f32 %v4172, %v4327
        %v4329 = vpop.f32.mrf.mxu0
        %v4330 = vadd.f32 %v4176, %v4329
        %4331 = vdwg.mxu0
        %v4332 = vmax.f32 %v4294, 0.0
        %v4333 = vmax.f32 %v4296, 0.0
        %v4334 = vmax.f32 %v4298, 0.0
        %v4335 = vmax.f32 %v4300, 0.0
        %v4336 = vmax.f32 %v4304, 0.0
        %v4337 = vmax.f32 %v4306, 0.0
        %v4338 = vmax.f32 %v4308, 0.0
        %v4339 = vmax.f32 %v4310, 0.0
        %v4340 = vmax.f32 %v4314, 0.0
        %v4341 = vmax.f32 %v4316, 0.0
        %v4342 = vmax.f32 %v4318, 0.0
        %v4343 = vmax.f32 %v4320, 0.0
        %v4344 = vmax.f32 %v4324, 0.0
        %v4345 = vmax.f32 %v4326, 0.0
        %v4346 = vmax.f32 %v4328, 0.0
        %v4347 = vmax.f32 %v4330, 0.0
        %v4348 = vpack.c.bf16 %v4334, %v4332
        %v4349 = vpack.c.bf16 %v4335, %v4333
        %v4350 = vpack.c.bf16 %v4338, %v4336
        %v4351 = vpack.c.bf16 %v4339, %v4337
        %v4352 = vpack.c.bf16 %v4342, %v4340
        %v4353 = vpack.c.bf16 %v4343, %v4341
        %v4354 = vpack.c.bf16 %v4346, %v4344
        %v4355 = vpack.c.bf16 %v4347, %v4345
        %v4356 = vld [vmem:[#allocation14] sm:$0xf]
        %v4357 = vld [vmem:[#allocation14 + $0x4] sm:$0xf]
        %v4358 = vld [vmem:[#allocation14 + $0x8] sm:$0xf]
        %v4359 = vld [vmem:[#allocation14 + $0xc] sm:$0xf]
        %v4360 = vld [vmem:[#allocation14 + $0x10] sm:$0xf]
        %v4361 = vld [vmem:[#allocation14 + $0x14] sm:$0xf]
        %v4362 = vld [vmem:[#allocation14 + $0x18] sm:$0xf]
        %v4363 = vld [vmem:[#allocation14 + $0x1c] sm:$0xf]
        %v4364 = vld [vmem:[#allocation14 + $0x20] sm:$0xf]
        %v4365 = vld [vmem:[#allocation14 + $0x24] sm:$0xf]
        %v4366 = vld [vmem:[#allocation14 + $0x28] sm:$0xf]
        %v4367 = vld [vmem:[#allocation14 + $0x2c] sm:$0xf]
        %v4368 = vld [vmem:[#allocation14 + $0x30] sm:$0xf]
        %v4369 = vld [vmem:[#allocation14 + $0x34] sm:$0xf]
        %v4370 = vld [vmem:[#allocation14 + $0x38] sm:$0xf]
        %v4371 = vld [vmem:[#allocation14 + $0x3c] sm:$0xf]
        %v4372 = vld [vmem:[#allocation14 + $0x40] sm:$0xf]
        %v4373 = vld [vmem:[#allocation14 + $0x44] sm:$0xf]
        %v4374 = vld [vmem:[#allocation14 + $0x48] sm:$0xf]
        %v4375 = vld [vmem:[#allocation14 + $0x4c] sm:$0xf]
        %v4376 = vld [vmem:[#allocation14 + $0x50] sm:$0xf]
        %v4377 = vld [vmem:[#allocation14 + $0x54] sm:$0xf]
        %v4378 = vld [vmem:[#allocation14 + $0x58] sm:$0xf]
        %v4379 = vld [vmem:[#allocation14 + $0x5c] sm:$0xf]
        %v4380 = vld [vmem:[#allocation14 + $0x60] sm:$0xf]
        %v4381 = vld [vmem:[#allocation14 + $0x64] sm:$0xf]
        %v4382 = vld [vmem:[#allocation14 + $0x68] sm:$0xf]
        %v4383 = vld [vmem:[#allocation14 + $0x6c] sm:$0xf]
        %v4384 = vld [vmem:[#allocation14 + $0x70] sm:$0xf]
        %v4385 = vld [vmem:[#allocation14 + $0x74] sm:$0xf]
        %v4386 = vld [vmem:[#allocation14 + $0x78] sm:$0xf]
        %v4387 = vld [vmem:[#allocation14 + $0x7c] sm:$0xf]
        %v4388 = vld [vmem:[%s13] sm:$0x1]
        %v4390 = vlaneseq
        %v4391 = vshrl.u32 %v4390, 7
        %v4392 = vsub.s32 0, %v4391
        %v4393 = vrot.slane %v4388, %v4392
        %v4427 = vunpack.c.l.b16 %v4356
        %v4428 = vunpack.c.l.b16 %v4357
        %v4429 = vunpack.c.l.b16 %v4358
        %v4430 = vunpack.c.l.b16 %v4359
        %v4431 = vunpack.c.l.b16 %v4360
        %v4432 = vunpack.c.l.b16 %v4361
        %v4433 = vunpack.c.l.b16 %v4362
        %v4434 = vunpack.c.l.b16 %v4363
        %v4435 = vunpack.c.l.b16 %v4364
        %v4436 = vunpack.c.l.b16 %v4365
        %v4437 = vunpack.c.l.b16 %v4366
        %v4438 = vunpack.c.l.b16 %v4367
        %v4439 = vunpack.c.l.b16 %v4368
        %v4440 = vunpack.c.l.b16 %v4369
        %v4441 = vunpack.c.l.b16 %v4370
        %v4442 = vunpack.c.l.b16 %v4371
        %v4443 = vunpack.c.l.b16 %v4372
        %v4444 = vunpack.c.l.b16 %v4373
        %v4445 = vunpack.c.l.b16 %v4374
        %v4446 = vunpack.c.l.b16 %v4375
        %v4447 = vunpack.c.l.b16 %v4376
        %v4448 = vunpack.c.l.b16 %v4377
        %v4449 = vunpack.c.l.b16 %v4378
        %v4450 = vunpack.c.l.b16 %v4379
        %v4451 = vunpack.c.l.b16 %v4380
        %v4452 = vunpack.c.l.b16 %v4381
        %v4453 = vunpack.c.l.b16 %v4382
        %v4454 = vunpack.c.l.b16 %v4383
        %v4455 = vunpack.c.l.b16 %v4384
        %v4456 = vunpack.c.l.b16 %v4385
        %v4457 = vunpack.c.l.b16 %v4386
        %v4458 = vunpack.c.l.b16 %v4387
        %v4459 = vpack.c.b16 %v4428, %v4427
        %v4460 = vpack.c.b16 %v4430, %v4429
        %v4461 = vpack.c.b16 %v4432, %v4431
        %v4462 = vpack.c.b16 %v4434, %v4433
        %v4463 = vpack.c.b16 %v4436, %v4435
        %v4464 = vpack.c.b16 %v4438, %v4437
        %v4465 = vpack.c.b16 %v4440, %v4439
        %v4466 = vpack.c.b16 %v4442, %v4441
        %v4467 = vpack.c.b16 %v4444, %v4443
        %v4468 = vpack.c.b16 %v4446, %v4445
        %v4469 = vpack.c.b16 %v4448, %v4447
        %v4470 = vpack.c.b16 %v4450, %v4449
        %v4471 = vpack.c.b16 %v4452, %v4451
        %v4472 = vpack.c.b16 %v4454, %v4453
        %v4473 = vpack.c.b16 %v4456, %v4455
        %v4474 = vpack.c.b16 %v4458, %v4457
        %4491 = vmatprep.subr.bf16.mxu0 0
        %4492 = vmatpush1.bf16.msra.mxu0 %v4466
        %4493 = vmatprep.subr.bf16.mxu0 0
        %4494 = vmatpush1.bf16.msra.mxu0 %v4465
        %4495 = vmatprep.subr.bf16.mxu0 0
        %4496 = vmatpush1.bf16.msra.mxu0 %v4464
        %4497 = vmatprep.subr.bf16.mxu0 0
        %4498 = vmatpush1.bf16.msra.mxu0 %v4463
        %4499 = vmatprep.subr.bf16.mxu0 0
        %4500 = vmatpush1.bf16.msra.mxu0 %v4462
        %4501 = vmatprep.subr.bf16.mxu0 0
        %4502 = vmatpush1.bf16.msra.mxu0 %v4461
        %4503 = vmatprep.subr.bf16.mxu0 0
        %4504 = vmatpush1.bf16.msra.mxu0 %v4460
        %4505 = vmatprep.subr.bf16.mxu0 0
        %4506 = vmatpush1.bf16.msra.mxu0 %v4459
        %4507 = vmatprep.subr.bf16.mxu0 0
        %4508 = vmatpush2.bf16.msra.mxu0 %v4474
        %4509 = vmatprep.subr.bf16.mxu0 0
        %4510 = vmatpush2.bf16.msra.mxu0 %v4473
        %4511 = vmatprep.subr.bf16.mxu0 0
        %4512 = vmatpush2.bf16.msra.mxu0 %v4472
        %4513 = vmatprep.subr.bf16.mxu0 0
        %4514 = vmatpush2.bf16.msra.mxu0 %v4471
        %4515 = vmatprep.subr.bf16.mxu0 0
        %4516 = vmatpush2.bf16.msra.mxu0 %v4470
        %4517 = vmatprep.subr.bf16.mxu0 0
        %4518 = vmatpush2.bf16.msra.mxu0 %v4469
        %4519 = vmatprep.subr.bf16.mxu0 0
        %4520 = vmatpush2.bf16.msra.mxu0 %v4468
        %4521 = vmatprep.subr.bf16.mxu0 0
        %4522 = vmatpush2.bf16.msra.mxu0 %v4467
        %4523 = vmatprep.mubr.bf16.mxu0 %v4349
        %4524 = vmatmul.mubr.bf16.gmra.mxu0 %v4348
        %v4525 = vpop.f32.mrf.mxu0
        %v4526 = vadd.f32 %v4393, %v4525
        %v4527 = vpop.f32.mrf.mxu0
        %v4528 = vpop.f32.mrf.mxu0
        %v4529 = vadd.f32 %v4393, %v4528
        %v4530 = vpop.f32.mrf.mxu0
        %4531 = vmatprep.mubr.bf16.mxu0 %v4351
        %4532 = vmatmul.mubr.bf16.gmra.mxu0 %v4350
        %v4533 = vpop.f32.mrf.mxu0
        %v4534 = vadd.f32 %v4393, %v4533
        %v4535 = vpop.f32.mrf.mxu0
        %v4536 = vpop.f32.mrf.mxu0
        %v4537 = vadd.f32 %v4393, %v4536
        %v4538 = vpop.f32.mrf.mxu0
        %4539 = vmatprep.mubr.bf16.mxu0 %v4353
        %4540 = vmatmul.mubr.bf16.gmra.mxu0 %v4352
        %v4541 = vpop.f32.mrf.mxu0
        %v4542 = vadd.f32 %v4393, %v4541
        %v4543 = vpop.f32.mrf.mxu0
        %v4544 = vpop.f32.mrf.mxu0
        %v4545 = vadd.f32 %v4393, %v4544
        %v4546 = vpop.f32.mrf.mxu0
        %4547 = vmatprep.mubr.bf16.mxu0 %v4355
        %4548 = vmatmul.mubr.bf16.gmra.mxu0 %v4354
        %v4549 = vpop.f32.mrf.mxu0
        %v4550 = vadd.f32 %v4393, %v4549
        %v4551 = vpop.f32.mrf.mxu0
        %v4552 = vpop.f32.mrf.mxu0
        %v4553 = vadd.f32 %v4393, %v4552
        %v4554 = vpop.f32.mrf.mxu0
        %4555 = vdwg.mxu0
        %v4556 = vadd.f32 %v3965, %v4526
        %v4557 = vadd.f32 %v3966, %v4529
        %v4558 = vadd.f32 %v3967, %v4534
        %v4559 = vadd.f32 %v3968, %v4537
        %v4560 = vadd.f32 %v3969, %v4542
        %v4561 = vadd.f32 %v3970, %v4545
        %v4562 = vadd.f32 %v3971, %v4550
        %v4563 = vadd.f32 %v3972, %v4553
        %4564 = vst [vmem:[%s609] sm:$0xff] %v4556
        %4565 = vst [vmem:[%s609 + $0x8] sm:$0xff] %v4557
        %4566 = vst [vmem:[%s609 + $0x10] sm:$0xff] %v4558
        %4567 = vst [vmem:[%s609 + $0x18] sm:$0xff] %v4559
        %4568 = vst [vmem:[%s609 + $0x20] sm:$0xff] %v4560
        %4569 = vst [vmem:[%s609 + $0x28] sm:$0xff] %v4561
        %4570 = vst [vmem:[%s609 + $0x30] sm:$0xff] %v4562
        %4571 = vst [vmem:[%s609 + $0x38] sm:$0xff] %v4563
        %s4572 = sand.u32 %s349, 1
        %s4573 = scalar_lea.sflag [#allocation4], %s4572
        %s4574 = sand.u32 %s349, 1
        %s4575 = smul.addr %s4574, 64
        %s4576 = scalar_lea.vmem [#allocation16], %s4575
        // Predicated region
        $region109: #{tpu_custom_call.1} parent=75 // pred_check
          %p4577 = pneg %p359
        $region110: #{tpu_custom_call.1} parent=75 // pred_check_branch
          %4579 = sbr.rel (%p4577) target = $region112
        $region111: #{tpu_custom_call.1} parent=75 // pred_region
          %s4580 = smul.u32 4, %s37
          %s4582 = ssub.s32 1024, 1024
          %4583 = vsyncadd %s4573, %s4582
          %s4584 = smul.addr %s4580, 2
          %s4585 = smul.addr %s4584, 128
          %s4586 = scalar_lea.hbm %s14, %s4585
          %s4587 = sshll.u32 %s4576, 4
          %s4588 = int_to_ptr.vmem [resolvable:$true] %s4587
          %4593 = dma.vmem_to_hbm [thread:$0]  %s4588, 1024, %s4586, %s4573, 128, 128, 8
        $region112: #{tpu_custom_call.1} parent=75 // pred_fallthru
          _
      $region76: #{tpu_custom_call.1} parent=5 // pred_fallthru
        _
      %p4594 = scmp.le.s32.totalorder 2, %s32
      // Predicated region
      $region113: #{tpu_custom_call.1} parent=5 // pred_check
        %p4595 = pneg %p4594
      $region114: #{tpu_custom_call.1} parent=5 // pred_check_branch
        %4597 = sbr.rel (%p4595) target = $region116
      $region115: #{tpu_custom_call.1} parent=5 // pred_region
        %s4598 = ssub.s32 %s32, 2
        // Predicated region
        $region117: #{tpu_custom_call.1} parent=115 // pred_check
          %p4599 = pneg %p365
        $region118: #{tpu_custom_call.1} parent=115 // pred_check_branch
          %4601 = sbr.rel (%p4599) target = $region120
        $region119: #{tpu_custom_call.1} parent=115 // pred_region
          %s4602 = sand.u32 %s350, 1
          %s4603 = scalar_lea.sflag [#allocation4], %s4602
          %s4604 = sand.u32 %s350, 1
          %s4605 = smul.addr %s4604, 64
          %s4606 = scalar_lea.vmem [#allocation16], %s4605
          %4607 = dma.done %s4603, 1024
        $region120: #{tpu_custom_call.1} parent=115 // pred_fallthru
          _
      $region116: #{tpu_custom_call.1} parent=5 // pred_fallthru
        _
    $region6: #{tpu_custom_call.1} parent=1 // loop_footer
      %s36 = sadd.s32 1, %s32
    $region7: #{tpu_custom_call.1} parent=1 // loop_footer_branch
      %31 = sbr.rel target = $region3
    $region8: #{tpu_custom_call.1} parent=1 // loop_exit
      _
    %4608 = vsyncpa [#allocation3], 1
    %s4609 = scalar_lea.sflag [#allocation3], 1
    %4610 = vsyncpa %s4609, 1
    %4611 = vsyncpa [#allocation6], 1
    %s4612 = scalar_lea.sflag [#allocation6], 1
    %4613 = vsyncpa %s4612, 1
    %4614 = vsyncpa [#allocation9], 1
    %4615 = vsyncpa [#allocation12], 1
    %4616 = vsyncpa [#allocation15], 1
    %4617 = vsyncpa [#allocation4], 1
    %s4618 = scalar_lea.sflag [#allocation4], 1
    %4619 = vsyncpa %s4618, 1

</llo_original>
